<compile_context>
chip_gen: v6e
topology: v6e:2x2x1
jax: 0.10.0
libtpu: 0.0.40
codegen_flags: <defaults>
</compile_context>

<pallas_src>
import functools

import jax
import jax.numpy as jnp
from jax.experimental import pallas as pl
from jax.experimental.pallas import tpu as pltpu


# ----------------------------------------------------------------------------
# Fused forward kernel (grid-less; whole working set resident in VMEM).
# ----------------------------------------------------------------------------
def fused_forward_kernel(conv_in_ref, x2_ref, conv_slab_ref, l1_ref, l2_ref,
                         o_ref, z_buf, zr_buf,
                         *, T, B, H1, H2, DP2, CIN3):
    f32 = jnp.float32

    # ------------------------------ conv branch ------------------------------
    # wrapper already reduced over L:  conv_in = [S | x_{L-1} | x_0] * (1/L)
    # conv_slab rows = [[W0+W1+W2 ; -W0 ; -W2] ; conv_b]
    prot = (jnp.dot(conv_in_ref[...], conv_slab_ref[0:CIN3, :],
                    preferred_element_type=f32)
            + conv_slab_ref[CIN3:CIN3 + 1, :])                       # (B, 16)

    # Shared LSTM cell. Gate columns: [i_f i_r | f_f f_r | o_f o_r | g_f g_r],
    # state hc/cc: (B, 2H) with forward dir in [:, :H], reverse dir in [:, H:].
    def cell(g, cc, H):
        sig = jax.nn.sigmoid(g[:, 0:6 * H])      # i, f, o  -> 1 EUP launch
        g_t = jnp.tanh(g[:, 6 * H:8 * H])        # g        -> 1 EUP launch
        i_g = sig[:, 0:2 * H]
        f_g = sig[:, 2 * H:4 * H]
        o_g = sig[:, 4 * H:6 * H]
        cc = f_g * cc + i_g * g_t
        hc = o_g * jnp.tanh(cc)                  # 3rd (and last) EUP launch
        return hc, cc

    # ------------------------------ BiLSTM layer 1 ---------------------------
    wih1 = l1_ref[0:DP2, :]                                          # (256, 8H1)
    whh1 = l1_ref[DP2:DP2 + 2 * H1, :]                               # (128, 8H1)
    b1 = l1_ref[DP2 + 2 * H1:DP2 + 2 * H1 + 1, :]                    # (1,   8H1)
    # x2 row-block s = [x(s) | x(T-1-s)] and wih1 is block-structured, so gin1
    # arrives direction-pre-blended: no per-step select / reversed indexing.
    gin1 = jnp.dot(x2_ref[...], wih1, preferred_element_type=f32) + b1   # (T*B, 8H1)

    hc = jnp.zeros((B, 2 * H1), f32)
    cc = jnp.zeros((B, 2 * H1), f32)
    for s in range(T):                            # static T -> fully unrolled
        g = gin1[s * B:(s + 1) * B, :] + jnp.dot(hc, whh1,
                                                 preferred_element_type=f32)
        hc, cc = cell(g, cc, H1)
        # z(s) = [h_f(s) | h_r(T-1-s)]; store full 128-lane-dense rows, once in
        # natural step order and once time-block-reversed (avoids any in-kernel
        # reversal / lane extraction when forming the layer-2 gate input).
        z_buf[s * B:(s + 1) * B, :] = hc
        zr_buf[(T - 1 - s) * B:(T - s) * B, :] = hc

    Z = z_buf[...]                                # row block s = z(s)
    Zr = zr_buf[...]                              # row block s = z(T-1-s)

    # ------------------------------ BiLSTM layer 2 ---------------------------
    A = l2_ref[0:2 * H1, :]                                          # (128, 8H2)
    Bm = l2_ref[2 * H1:4 * H1, :]                                    # (128, 8H2)
    whh2 = l2_ref[4 * H1:4 * H1 + 2 * H2, :]                         # (64,  8H2)
    b2 = l2_ref[4 * H1 + 2 * H2:4 * H1 + 2 * H2 + 1, :]              # (1,   8H2)
    # Pre-blended gate input: gin2(s) = z(s)@A + z(T-1-s)@B + b2 reproduces
    # [y1(s)@wih2_f  in fwd cols | y1(T-1-s)@wih2_r in rev cols].
    gin2 = (jnp.dot(Z, A, preferred_element_type=f32)
            + jnp.dot(Zr, Bm, preferred_element_type=f32) + b2)      # (T*B, 8H2)

    hc2 = jnp.zeros((B, 2 * H2), f32)
    cc2 = jnp.zeros((B, 2 * H2), f32)
    hc2_sum = jnp.zeros((B, 2 * H2), f32)
    for s in range(T):
        g = gin2[s * B:(s + 1) * B, :] + jnp.dot(hc2, whh2,
                                                 preferred_element_type=f32)
        hc2, cc2 = cell(g, cc2, H2)
        hc2_sum = hc2_sum + hc2                   # time-mean is order-free
    lstm2_mean = hc2_sum * (1.0 / T)              # (B, 2*H2)

    # --------------------------------- head ----------------------------------
    # attention_net over a length-1 sequence: softmax == 1.0 -> identity, and
    # fc1/fc2/fc (no activation between them) are collapsed at init into one
    # (80,) weight row + scalar bias stored in the last row of the lstm2 slab.
    fusion = jnp.concatenate([prot, lstm2_mean], axis=1)             # (B, 80)
    head = l2_ref[4 * H1 + 2 * H2 + 1:4 * H1 + 2 * H2 + 2, :]        # (1, 8H2)
    F = 2 * H2 + 16
    logit = (jnp.sum(fusion * head[:, 0:F], axis=1, keepdims=True)
             + head[:, F:F + 1])                                     # (B, 1)
    o_ref[...] = jax.nn.sigmoid(logit)


# ----------------------------------------------------------------------------
# One-time weight packing (runs at init; nothing of this is on the call path).
# ----------------------------------------------------------------------------
def _pack_gate_cols(a_f, a_r, H):
    """Per-direction [i|f|g|o] gate blocks -> [i_f i_r|f_f f_r|o_f o_r|g_f g_r]."""
    def blk(a, k):
        return a[:, k * H:(k + 1) * H]
    cols = []
    for k in (0, 1, 3, 2):                        # reorder gates to [i, f, o, g]
        cols.append(blk(a_f, k))
        cols.append(blk(a_r, k))
    return jnp.concatenate(cols, axis=1)


def pack_params(params, *, D1=83, H1=64, H2=32, DP=128):
    f32 = jnp.float32

    # conv: mean-over-L 'same' Conv1d folded into a single (3*Cin, Cout) matmul
    # against the wrapper-built [S | x_{L-1} | x_0]/L row.
    w0, w1, w2 = (params["conv_w"][k] for k in range(3))
    conv_w = jnp.concatenate([w0 + w1 + w2, -w0, -w2], axis=0)       # (3*Cin, 16)
    conv_slab = jnp.concatenate([conv_w, params["conv_b"]], axis=0)  # (3*Cin+1, 16)

    # LSTM 1: block-structured (2*DP, 8*H1) input weight so the wrapper-built
    # x2(t) = [x(t)|x(T-1-t)] yields a direction-pre-blended gate input;
    # D1 zero-padded to DP=128.  whh rows [:H]=h_fwd feed *_f cols only,
    # rows [H:]=h_rev feed *_r cols only.
    p1 = params["lstm1"]
    wf = jnp.pad(p1["wih_f"], ((0, DP - D1), (0, 0)))
    wr = jnp.pad(p1["wih_r"], ((0, DP - D1), (0, 0)))
    wih1 = jnp.concatenate([_pack_gate_cols(wf, jnp.zeros_like(wf), H1),
                            _pack_gate_cols(jnp.zeros_like(wr), wr, H1)], axis=0)
    whh1 = jnp.concatenate(
        [_pack_gate_cols(p1["whh_f"], jnp.zeros_like(p1["whh_f"]), H1),
         _pack_gate_cols(jnp.zeros_like(p1["whh_r"]), p1["whh_r"], H1)], axis=0)
    b1 = _pack_gate_cols(p1["b_f"], p1["b_r"], H1)
    l1_slab = jnp.concatenate([wih1, whh1, b1], axis=0)              # (385, 512)

    # LSTM 2: with z(s) = [h_f(s)|h_r(T-1-s)], the blended gate input is
    #   gin2(s) = z(s)@A + z(T-1-s)@B + b2
    # where A/B are block-zero rearrangements of wih2_{f,r}.
    p2 = params["lstm2"]
    wf2, wr2 = p2["wih_f"], p2["wih_r"]                              # (2*H1, 4*H2)

    def pf(X):  # place X's gates into forward-direction columns
        return _pack_gate_cols(X, jnp.zeros_like(X), H2)

    def pr(X):  # place X's gates into reverse-direction columns
        return _pack_gate_cols(jnp.zeros_like(X), X, H2)

    A = jnp.concatenate([pf(wf2[:H1]), pr(wr2[H1:])], axis=0)        # (128, 256)
    Bm = jnp.concatenate([pr(wr2[:H1]), pf(wf2[H1:])], axis=0)       # (128, 256)
    whh2 = jnp.concatenate(
        [_pack_gate_cols(p2["whh_f"], jnp.zeros_like(p2["whh_f"]), H2),
         _pack_gate_cols(jnp.zeros_like(p2["whh_r"]), p2["whh_r"], H2)], axis=0)
    b2 = _pack_gate_cols(p2["b_f"], p2["b_r"], H2)

    # Collapsed head: no activation between fc1/fc2/fc in the reference forward.
    w_head = params["fc1_w"] @ params["fc2_w"] @ params["fc_w"]      # (80, 1)
    b_head = (params["fc1_b"] @ params["fc2_w"] @ params["fc_w"]
              + params["fc2_b"] @ params["fc_w"] + params["fc_b"])   # (1, 1)
    F = 2 * H2 + 16
    head_row = jnp.concatenate(
        [w_head.T, b_head, jnp.zeros((1, 8 * H2 - F - 1), f32)], axis=1)  # (1, 256)

    l2_slab = jnp.concatenate([A, Bm, whh2, b2, head_row], axis=0)   # (322, 256)
    return dict(conv_slab=conv_slab, l1_slab=l1_slab, l2_slab=l2_slab)


# ----------------------------------------------------------------------------
# Parameter init (deterministic, PyTorch-default-style uniform bounds).
# conv_w is (K, Cin, Cout); LSTM biases stored pre-summed (b_ih + b_hh).
# w_omega/u_omega mirror the module's parameter set but provably never affect
# the output (softmax over a length-1 sequence axis == 1.0).
# ----------------------------------------------------------------------------
def init_params(key):
    ks = jax.random.split(key, 26)
    it = iter(range(26))

    def uni(shape, bound):
        return jax.random.uniform(ks[next(it)], shape, jnp.float32, -bound, bound)

    Cin, Cout, K = 1024, 16, 3
    D1, H1 = 83, 64
    D2, H2 = 128, 32
    p = {}

    cb = 1.0 / (Cin * K) ** 0.5
    p["conv_w"] = uni((K, Cin, Cout), cb)            # (k, in, out)
    p["conv_b"] = uni((1, Cout), cb)

    def lstm_params(D, H):
        kb = 1.0 / H ** 0.5
        return dict(
            wih_f=uni((D, 4 * H), kb), whh_f=uni((H, 4 * H), kb),
            b_f=uni((1, 4 * H), kb) + uni((1, 4 * H), kb),
            wih_r=uni((D, 4 * H), kb), whh_r=uni((H, 4 * H), kb),
            b_r=uni((1, 4 * H), kb) + uni((1, 4 * H), kb),
        )

    p["lstm1"] = lstm_params(D1, H1)
    p["lstm2"] = lstm_params(D2, H2)

    p["w_omega"] = uni((80, 80), 0.1)                # inert (length-1 softmax)
    p["u_omega"] = uni((80, 1), 0.1)                 # inert (length-1 softmax)

    p["fc1_w"] = uni((80, 16), 1.0 / 80 ** 0.5)
    p["fc1_b"] = uni((1, 16), 1.0 / 80 ** 0.5)
    p["fc2_w"] = uni((16, 5), 1.0 / 16 ** 0.5)
    p["fc2_b"] = uni((1, 5), 1.0 / 16 ** 0.5)
    p["fc_w"] = uni((5, 1), 1.0 / 5 ** 0.5)
    p["fc_b"] = uni((1, 1), 1.0 / 5 ** 0.5)
    return p


# ----------------------------------------------------------------------------
# Per-call forward: tiny data prep (L-reduction + x2 pairing) + one pallas_call.
# All weights arrive pre-packed; no per-call repacking.
# ----------------------------------------------------------------------------
@jax.jit
def forward(packed, bert_seq, x):
    B, L, Cin = bert_seq.shape
    _, T, D1 = x.shape
    H1, H2, DP = 64, 32, 128
    f32 = jnp.float32

    # Mean-over-L of the 'same' 3-tap Conv1d only needs the column sum and the
    # two endpoints (this reduction would fuse into the BERT-encoder epilogue).
    bert = bert_seq.astype(f32)
    s_all = jnp.sum(bert, axis=1)                                    # (B, Cin)
    conv_in = jnp.concatenate(
        [s_all, bert[:, L - 1, :], bert[:, 0, :]], axis=1) * (1.0 / L)  # (B, 3*Cin)

    # Time-major, zero-padded, direction-paired LSTM-1 input:
    #   x2 row-block t = [x(t) (padded to 128) | x(T-1-t) (padded to 128)]
    x_tm = jnp.transpose(x.astype(f32), (1, 0, 2))                   # (T, B, D1)
    x_tm = jnp.pad(x_tm, ((0, 0), (0, 0), (0, DP - D1)))             # (T, B, 128)
    x2 = jnp.concatenate([x_tm, x_tm[::-1]], axis=-1).reshape(T * B, 2 * DP)

    kernel = functools.partial(fused_forward_kernel, T=T, B=B, H1=H1, H2=H2,
                               DP2=2 * DP, CIN3=3 * Cin)
    return pl.pallas_call(
        kernel,
        out_shape=jax.ShapeDtypeStruct((B, 1), jnp.float32),
        scratch_shapes=[
            pltpu.VMEM((T * B, 2 * H1), jnp.float32),   # z(s), step order
            pltpu.VMEM((T * B, 2 * H1), jnp.float32),   # z(s), time-reversed order
        ],
    )(conv_in, x2, packed["conv_slab"], packed["l1_slab"], packed["l2_slab"])


if __name__ == "__main__":
    key = jax.random.PRNGKey(0)
    kp, kb, kx = jax.random.split(key, 3)
    params = init_params(kp)
    packed = pack_params(params)          # one-time packing, off the call path

    B, L, T = 2, 16, 8
    # TODO(synk): BERT encoder output is synthesized here instead of running prot_bert.
    bert_seq = jax.random.normal(kb, (B, L, 1024), jnp.float32)      # (B, L, 1024)
    x = jax.random.normal(kx, (B, T, 83), jnp.float32)               # (B, T, 83)

    out = forward(packed, bert_seq, x)
    jax.block_until_ready(out)
    assert out.shape == (B, 1)
    print("KERNEL_OK")
</pallas_src>

<mosaic_0001>
module attributes {stable_mosaic.version = 11 : i64} {
  func.func @fused_forward_kernel(%arg0: memref<2x3072xf32, #tpu.memory_space<vmem>>, %arg1: memref<16x256xf32, #tpu.memory_space<vmem>>, %arg2: memref<3073x16xf32, #tpu.memory_space<vmem>>, %arg3: memref<385x512xf32, #tpu.memory_space<vmem>>, %arg4: memref<322x256xf32, #tpu.memory_space<vmem>>, %arg5: memref<2x1xf32, #tpu.memory_space<vmem>>, %arg6: memref<16x128xf32, #tpu.memory_space<vmem>>, %arg7: memref<16x128xf32, #tpu.memory_space<vmem>>) attributes {dimension_semantics = [], scalar_prefetch = 0 : i64, scratch_operands = 2 : i64, tpu.core_type = #tpu.core_type<tc>} {
    %c0 = arith.constant 0 : index
    %c0_0 = arith.constant 0 : index
    %0 = vector.load %arg0[%c0, %c0_0] : memref<2x3072xf32, #tpu.memory_space<vmem>>, vector<2x3072xf32>
    %c0_1 = arith.constant 0 : index
    %c0_2 = arith.constant 0 : index
    %1 = vector.load %arg2[%c0_1, %c0_2] : memref<3073x16xf32, #tpu.memory_space<vmem>>, vector<3072x16xf32>
    %cst = arith.constant dense<0.000000e+00> : vector<2x16xf32>
    %2 = tpu.matmul %0, %1, %cst {dimension_numbers = #tpu.dot_dimension_numbers<[1], [0], [0], [1], [0, 0, 1, 1], [], []>} : vector<2x3072xf32>, vector<3072x16xf32>, vector<2x16xf32> -> vector<2x16xf32>
    %c3072 = arith.constant 3072 : index
    %c0_3 = arith.constant 0 : index
    %3 = vector.load %arg2[%c3072, %c0_3] : memref<3073x16xf32, #tpu.memory_space<vmem>>, vector<1x16xf32>
    %4 = vector.broadcast %3 : vector<1x16xf32> to vector<2x16xf32>
    %5 = arith.addf %2, %4 : vector<2x16xf32>
    %c0_4 = arith.constant 0 : index
    %c0_5 = arith.constant 0 : index
    %6 = vector.load %arg3[%c0_4, %c0_5] : memref<385x512xf32, #tpu.memory_space<vmem>>, vector<256x512xf32>
    %c256 = arith.constant 256 : index
    %c0_6 = arith.constant 0 : index
    %7 = vector.load %arg3[%c256, %c0_6] : memref<385x512xf32, #tpu.memory_space<vmem>>, vector<128x512xf32>
    %c384 = arith.constant 384 : index
    %c0_7 = arith.constant 0 : index
    %8 = vector.load %arg3[%c384, %c0_7] : memref<385x512xf32, #tpu.memory_space<vmem>>, vector<1x512xf32>
    %c0_8 = arith.constant 0 : index
    %c0_9 = arith.constant 0 : index
    %9 = vector.load %arg1[%c0_8, %c0_9] : memref<16x256xf32, #tpu.memory_space<vmem>>, vector<16x256xf32>
    %cst_10 = arith.constant dense<0.000000e+00> : vector<16x512xf32>
    %10 = tpu.matmul %9, %6, %cst_10 {dimension_numbers = #tpu.dot_dimension_numbers<[1], [0], [0], [1], [0, 0, 1, 1], [], []>} : vector<16x256xf32>, vector<256x512xf32>, vector<16x512xf32> -> vector<16x512xf32>
    %11 = vector.broadcast %8 : vector<1x512xf32> to vector<16x512xf32>
    %12 = arith.addf %10, %11 : vector<16x512xf32>
    %cst_11 = arith.constant 0.000000e+00 : f32
    %13 = vector.broadcast %cst_11 : f32 to vector<2x128xf32>
    %cst_12 = arith.constant 0.000000e+00 : f32
    %14 = vector.broadcast %cst_12 : f32 to vector<2x128xf32>
    %15 = vector.extract_strided_slice %12 {offsets = [0, 0], sizes = [2, 512], strides = [1, 1]} : vector<16x512xf32> to vector<2x512xf32>
    %cst_13 = arith.constant dense<0.000000e+00> : vector<2x512xf32>
    %16 = tpu.matmul %13, %7, %cst_13 {dimension_numbers = #tpu.dot_dimension_numbers<[1], [0], [0], [1], [0, 0, 1, 1], [], []>} : vector<2x128xf32>, vector<128x512xf32>, vector<2x512xf32> -> vector<2x512xf32>
    %17 = arith.addf %15, %16 : vector<2x512xf32>
    %18 = vector.extract_strided_slice %17 {offsets = [0, 0], sizes = [2, 384], strides = [1, 1]} : vector<2x512xf32> to vector<2x384xf32>
    %19 = arith.negf %18 : vector<2x384xf32>
    %20 = math.exp %19 : vector<2x384xf32>
    %cst_14 = arith.constant 1.000000e+00 : f32
    %21 = vector.broadcast %cst_14 : f32 to vector<2x384xf32>
    %22 = arith.addf %21, %20 : vector<2x384xf32>
    %23 = arith.divf %21, %22 : vector<2x384xf32>
    %24 = vector.extract_strided_slice %17 {offsets = [0, 384], sizes = [2, 128], strides = [1, 1]} : vector<2x512xf32> to vector<2x128xf32>
    %25 = math.tanh %24 : vector<2x128xf32>
    %26 = vector.extract_strided_slice %23 {offsets = [0, 0], sizes = [2, 128], strides = [1, 1]} : vector<2x384xf32> to vector<2x128xf32>
    %27 = vector.extract_strided_slice %23 {offsets = [0, 128], sizes = [2, 128], strides = [1, 1]} : vector<2x384xf32> to vector<2x128xf32>
    %28 = vector.extract_strided_slice %23 {offsets = [0, 256], sizes = [2, 128], strides = [1, 1]} : vector<2x384xf32> to vector<2x128xf32>
    %29 = arith.mulf %27, %14 : vector<2x128xf32>
    %30 = arith.mulf %26, %25 : vector<2x128xf32>
    %31 = arith.addf %29, %30 : vector<2x128xf32>
    %32 = math.tanh %31 : vector<2x128xf32>
    %33 = arith.mulf %28, %32 : vector<2x128xf32>
    %c0_15 = arith.constant 0 : index
    %c0_16 = arith.constant 0 : index
    %34 = vector.load %arg6[%c0_15, %c0_16] : memref<16x128xf32, #tpu.memory_space<vmem>>, vector<2x128xf32>
    tpu.vector_store %arg6[%c0_15, %c0_16], %33 {strides = array<i32>} : memref<16x128xf32, #tpu.memory_space<vmem>>, vector<2x128xf32>,
    %c14 = arith.constant 14 : index
    %c0_17 = arith.constant 0 : index
    %35 = vector.load %arg7[%c14, %c0_17] : memref<16x128xf32, #tpu.memory_space<vmem>>, vector<2x128xf32>
    tpu.vector_store %arg7[%c14, %c0_17], %33 {strides = array<i32>} : memref<16x128xf32, #tpu.memory_space<vmem>>, vector<2x128xf32>,
    %36 = vector.extract_strided_slice %12 {offsets = [2, 0], sizes = [2, 512], strides = [1, 1]} : vector<16x512xf32> to vector<2x512xf32>
    %cst_18 = arith.constant dense<0.000000e+00> : vector<2x512xf32>
    %37 = tpu.matmul %33, %7, %cst_18 {dimension_numbers = #tpu.dot_dimension_numbers<[1], [0], [0], [1], [0, 0, 1, 1], [], []>} : vector<2x128xf32>, vector<128x512xf32>, vector<2x512xf32> -> vector<2x512xf32>
    %38 = arith.addf %36, %37 : vector<2x512xf32>
    %39 = vector.extract_strided_slice %38 {offsets = [0, 0], sizes = [2, 384], strides = [1, 1]} : vector<2x512xf32> to vector<2x384xf32>
    %40 = arith.negf %39 : vector<2x384xf32>
    %41 = math.exp %40 : vector<2x384xf32>
    %cst_19 = arith.constant 1.000000e+00 : f32
    %42 = vector.broadcast %cst_19 : f32 to vector<2x384xf32>
    %43 = arith.addf %42, %41 : vector<2x384xf32>
    %44 = arith.divf %42, %43 : vector<2x384xf32>
    %45 = vector.extract_strided_slice %38 {offsets = [0, 384], sizes = [2, 128], strides = [1, 1]} : vector<2x512xf32> to vector<2x128xf32>
    %46 = math.tanh %45 : vector<2x128xf32>
    %47 = vector.extract_strided_slice %44 {offsets = [0, 0], sizes = [2, 128], strides = [1, 1]} : vector<2x384xf32> to vector<2x128xf32>
    %48 = vector.extract_strided_slice %44 {offsets = [0, 128], sizes = [2, 128], strides = [1, 1]} : vector<2x384xf32> to vector<2x128xf32>
    %49 = vector.extract_strided_slice %44 {offsets = [0, 256], sizes = [2, 128], strides = [1, 1]} : vector<2x384xf32> to vector<2x128xf32>
    %50 = arith.mulf %48, %31 : vector<2x128xf32>
    %51 = arith.mulf %47, %46 : vector<2x128xf32>
    %52 = arith.addf %50, %51 : vector<2x128xf32>
    %53 = math.tanh %52 : vector<2x128xf32>
    %54 = arith.mulf %49, %53 : vector<2x128xf32>
    %c2 = arith.constant 2 : index
    %c0_20 = arith.constant 0 : index
    %55 = vector.load %arg6[%c2, %c0_20] : memref<16x128xf32, #tpu.memory_space<vmem>>, vector<2x128xf32>
    tpu.vector_store %arg6[%c2, %c0_20], %54 {strides = array<i32>} : memref<16x128xf32, #tpu.memory_space<vmem>>, vector<2x128xf32>,
    %c12 = arith.constant 12 : index
    %c0_21 = arith.constant 0 : index
    %56 = vector.load %arg7[%c12, %c0_21] : memref<16x128xf32, #tpu.memory_space<vmem>>, vector<2x128xf32>
    tpu.vector_store %arg7[%c12, %c0_21], %54 {strides = array<i32>} : memref<16x128xf32, #tpu.memory_space<vmem>>, vector<2x128xf32>,
    %57 = vector.extract_strided_slice %12 {offsets = [4, 0], sizes = [2, 512], strides = [1, 1]} : vector<16x512xf32> to vector<2x512xf32>
    %cst_22 = arith.constant dense<0.000000e+00> : vector<2x512xf32>
    %58 = tpu.matmul %54, %7, %cst_22 {dimension_numbers = #tpu.dot_dimension_numbers<[1], [0], [0], [1], [0, 0, 1, 1], [], []>} : vector<2x128xf32>, vector<128x512xf32>, vector<2x512xf32> -> vector<2x512xf32>
    %59 = arith.addf %57, %58 : vector<2x512xf32>
    %60 = vector.extract_strided_slice %59 {offsets = [0, 0], sizes = [2, 384], strides = [1, 1]} : vector<2x512xf32> to vector<2x384xf32>
    %61 = arith.negf %60 : vector<2x384xf32>
    %62 = math.exp %61 : vector<2x384xf32>
    %cst_23 = arith.constant 1.000000e+00 : f32
    %63 = vector.broadcast %cst_23 : f32 to vector<2x384xf32>
    %64 = arith.addf %63, %62 : vector<2x384xf32>
    %65 = arith.divf %63, %64 : vector<2x384xf32>
    %66 = vector.extract_strided_slice %59 {offsets = [0, 384], sizes = [2, 128], strides = [1, 1]} : vector<2x512xf32> to vector<2x128xf32>
    %67 = math.tanh %66 : vector<2x128xf32>
    %68 = vector.extract_strided_slice %65 {offsets = [0, 0], sizes = [2, 128], strides = [1, 1]} : vector<2x384xf32> to vector<2x128xf32>
    %69 = vector.extract_strided_slice %65 {offsets = [0, 128], sizes = [2, 128], strides = [1, 1]} : vector<2x384xf32> to vector<2x128xf32>
    %70 = vector.extract_strided_slice %65 {offsets = [0, 256], sizes = [2, 128], strides = [1, 1]} : vector<2x384xf32> to vector<2x128xf32>
    %71 = arith.mulf %69, %52 : vector<2x128xf32>
    %72 = arith.mulf %68, %67 : vector<2x128xf32>
    %73 = arith.addf %71, %72 : vector<2x128xf32>
    %74 = math.tanh %73 : vector<2x128xf32>
    %75 = arith.mulf %70, %74 : vector<2x128xf32>
    %c4 = arith.constant 4 : index
    %c0_24 = arith.constant 0 : index
    %76 = vector.load %arg6[%c4, %c0_24] : memref<16x128xf32, #tpu.memory_space<vmem>>, vector<2x128xf32>
    tpu.vector_store %arg6[%c4, %c0_24], %75 {strides = array<i32>} : memref<16x128xf32, #tpu.memory_space<vmem>>, vector<2x128xf32>,
    %c10 = arith.constant 10 : index
    %c0_25 = arith.constant 0 : index
    %77 = vector.load %arg7[%c10, %c0_25] : memref<16x128xf32, #tpu.memory_space<vmem>>, vector<2x128xf32>
    tpu.vector_store %arg7[%c10, %c0_25], %75 {strides = array<i32>} : memref<16x128xf32, #tpu.memory_space<vmem>>, vector<2x128xf32>,
    %78 = vector.extract_strided_slice %12 {offsets = [6, 0], sizes = [2, 512], strides = [1, 1]} : vector<16x512xf32> to vector<2x512xf32>
    %cst_26 = arith.constant dense<0.000000e+00> : vector<2x512xf32>
    %79 = tpu.matmul %75, %7, %cst_26 {dimension_numbers = #tpu.dot_dimension_numbers<[1], [0], [0], [1], [0, 0, 1, 1], [], []>} : vector<2x128xf32>, vector<128x512xf32>, vector<2x512xf32> -> vector<2x512xf32>
    %80 = arith.addf %78, %79 : vector<2x512xf32>
    %81 = vector.extract_strided_slice %80 {offsets = [0, 0], sizes = [2, 384], strides = [1, 1]} : vector<2x512xf32> to vector<2x384xf32>
    %82 = arith.negf %81 : vector<2x384xf32>
    %83 = math.exp %82 : vector<2x384xf32>
    %cst_27 = arith.constant 1.000000e+00 : f32
    %84 = vector.broadcast %cst_27 : f32 to vector<2x384xf32>
    %85 = arith.addf %84, %83 : vector<2x384xf32>
    %86 = arith.divf %84, %85 : vector<2x384xf32>
    %87 = vector.extract_strided_slice %80 {offsets = [0, 384], sizes = [2, 128], strides = [1, 1]} : vector<2x512xf32> to vector<2x128xf32>
    %88 = math.tanh %87 : vector<2x128xf32>
    %89 = vector.extract_strided_slice %86 {offsets = [0, 0], sizes = [2, 128], strides = [1, 1]} : vector<2x384xf32> to vector<2x128xf32>
    %90 = vector.extract_strided_slice %86 {offsets = [0, 128], sizes = [2, 128], strides = [1, 1]} : vector<2x384xf32> to vector<2x128xf32>
    %91 = vector.extract_strided_slice %86 {offsets = [0, 256], sizes = [2, 128], strides = [1, 1]} : vector<2x384xf32> to vector<2x128xf32>
    %92 = arith.mulf %90, %73 : vector<2x128xf32>
    %93 = arith.mulf %89, %88 : vector<2x128xf32>
    %94 = arith.addf %92, %93 : vector<2x128xf32>
    %95 = math.tanh %94 : vector<2x128xf32>
    %96 = arith.mulf %91, %95 : vector<2x128xf32>
    %c6 = arith.constant 6 : index
    %c0_28 = arith.constant 0 : index
    %97 = vector.load %arg6[%c6, %c0_28] : memref<16x128xf32, #tpu.memory_space<vmem>>, vector<2x128xf32>
    tpu.vector_store %arg6[%c6, %c0_28], %96 {strides = array<i32>} : memref<16x128xf32, #tpu.memory_space<vmem>>, vector<2x128xf32>,
    %c8 = arith.constant 8 : index
    %c0_29 = arith.constant 0 : index
    %98 = vector.load %arg7[%c8, %c0_29] : memref<16x128xf32, #tpu.memory_space<vmem>>, vector<2x128xf32>
    tpu.vector_store %arg7[%c8, %c0_29], %96 {strides = array<i32>} : memref<16x128xf32, #tpu.memory_space<vmem>>, vector<2x128xf32>,
    %99 = vector.extract_strided_slice %12 {offsets = [8, 0], sizes = [2, 512], strides = [1, 1]} : vector<16x512xf32> to vector<2x512xf32>
    %cst_30 = arith.constant dense<0.000000e+00> : vector<2x512xf32>
    %100 = tpu.matmul %96, %7, %cst_30 {dimension_numbers = #tpu.dot_dimension_numbers<[1], [0], [0], [1], [0, 0, 1, 1], [], []>} : vector<2x128xf32>, vector<128x512xf32>, vector<2x512xf32> -> vector<2x512xf32>
    %101 = arith.addf %99, %100 : vector<2x512xf32>
    %102 = vector.extract_strided_slice %101 {offsets = [0, 0], sizes = [2, 384], strides = [1, 1]} : vector<2x512xf32> to vector<2x384xf32>
    %103 = arith.negf %102 : vector<2x384xf32>
    %104 = math.exp %103 : vector<2x384xf32>
    %cst_31 = arith.constant 1.000000e+00 : f32
    %105 = vector.broadcast %cst_31 : f32 to vector<2x384xf32>
    %106 = arith.addf %105, %104 : vector<2x384xf32>
    %107 = arith.divf %105, %106 : vector<2x384xf32>
    %108 = vector.extract_strided_slice %101 {offsets = [0, 384], sizes = [2, 128], strides = [1, 1]} : vector<2x512xf32> to vector<2x128xf32>
    %109 = math.tanh %108 : vector<2x128xf32>
    %110 = vector.extract_strided_slice %107 {offsets = [0, 0], sizes = [2, 128], strides = [1, 1]} : vector<2x384xf32> to vector<2x128xf32>
    %111 = vector.extract_strided_slice %107 {offsets = [0, 128], sizes = [2, 128], strides = [1, 1]} : vector<2x384xf32> to vector<2x128xf32>
    %112 = vector.extract_strided_slice %107 {offsets = [0, 256], sizes = [2, 128], strides = [1, 1]} : vector<2x384xf32> to vector<2x128xf32>
    %113 = arith.mulf %111, %94 : vector<2x128xf32>
    %114 = arith.mulf %110, %109 : vector<2x128xf32>
    %115 = arith.addf %113, %114 : vector<2x128xf32>
    %116 = math.tanh %115 : vector<2x128xf32>
    %117 = arith.mulf %112, %116 : vector<2x128xf32>
    %c8_32 = arith.constant 8 : index
    %c0_33 = arith.constant 0 : index
    %118 = vector.load %arg6[%c8_32, %c0_33] : memref<16x128xf32, #tpu.memory_space<vmem>>, vector<2x128xf32>
    tpu.vector_store %arg6[%c8_32, %c0_33], %117 {strides = array<i32>} : memref<16x128xf32, #tpu.memory_space<vmem>>, vector<2x128xf32>,
    %c6_34 = arith.constant 6 : index
    %c0_35 = arith.constant 0 : index
    %119 = vector.load %arg7[%c6_34, %c0_35] : memref<16x128xf32, #tpu.memory_space<vmem>>, vector<2x128xf32>
    tpu.vector_store %arg7[%c6_34, %c0_35], %117 {strides = array<i32>} : memref<16x128xf32, #tpu.memory_space<vmem>>, vector<2x128xf32>,
    %120 = vector.extract_strided_slice %12 {offsets = [10, 0], sizes = [2, 512], strides = [1, 1]} : vector<16x512xf32> to vector<2x512xf32>
    %cst_36 = arith.constant dense<0.000000e+00> : vector<2x512xf32>
    %121 = tpu.matmul %117, %7, %cst_36 {dimension_numbers = #tpu.dot_dimension_numbers<[1], [0], [0], [1], [0, 0, 1, 1], [], []>} : vector<2x128xf32>, vector<128x512xf32>, vector<2x512xf32> -> vector<2x512xf32>
    %122 = arith.addf %120, %121 : vector<2x512xf32>
    %123 = vector.extract_strided_slice %122 {offsets = [0, 0], sizes = [2, 384], strides = [1, 1]} : vector<2x512xf32> to vector<2x384xf32>
    %124 = arith.negf %123 : vector<2x384xf32>
    %125 = math.exp %124 : vector<2x384xf32>
    %cst_37 = arith.constant 1.000000e+00 : f32
    %126 = vector.broadcast %cst_37 : f32 to vector<2x384xf32>
    %127 = arith.addf %126, %125 : vector<2x384xf32>
    %128 = arith.divf %126, %127 : vector<2x384xf32>
    %129 = vector.extract_strided_slice %122 {offsets = [0, 384], sizes = [2, 128], strides = [1, 1]} : vector<2x512xf32> to vector<2x128xf32>
    %130 = math.tanh %129 : vector<2x128xf32>
    %131 = vector.extract_strided_slice %128 {offsets = [0, 0], sizes = [2, 128], strides = [1, 1]} : vector<2x384xf32> to vector<2x128xf32>
    %132 = vector.extract_strided_slice %128 {offsets = [0, 128], sizes = [2, 128], strides = [1, 1]} : vector<2x384xf32> to vector<2x128xf32>
    %133 = vector.extract_strided_slice %128 {offsets = [0, 256], sizes = [2, 128], strides = [1, 1]} : vector<2x384xf32> to vector<2x128xf32>
    %134 = arith.mulf %132, %115 : vector<2x128xf32>
    %135 = arith.mulf %131, %130 : vector<2x128xf32>
    %136 = arith.addf %134, %135 : vector<2x128xf32>
    %137 = math.tanh %136 : vector<2x128xf32>
    %138 = arith.mulf %133, %137 : vector<2x128xf32>
    %c10_38 = arith.constant 10 : index
    %c0_39 = arith.constant 0 : index
    %139 = vector.load %arg6[%c10_38, %c0_39] : memref<16x128xf32, #tpu.memory_space<vmem>>, vector<2x128xf32>
    tpu.vector_store %arg6[%c10_38, %c0_39], %138 {strides = array<i32>} : memref<16x128xf32, #tpu.memory_space<vmem>>, vector<2x128xf32>,
    %c4_40 = arith.constant 4 : index
    %c0_41 = arith.constant 0 : index
    %140 = vector.load %arg7[%c4_40, %c0_41] : memref<16x128xf32, #tpu.memory_space<vmem>>, vector<2x128xf32>
    tpu.vector_store %arg7[%c4_40, %c0_41], %138 {strides = array<i32>} : memref<16x128xf32, #tpu.memory_space<vmem>>, vector<2x128xf32>,
    %141 = vector.extract_strided_slice %12 {offsets = [12, 0], sizes = [2, 512], strides = [1, 1]} : vector<16x512xf32> to vector<2x512xf32>
    %cst_42 = arith.constant dense<0.000000e+00> : vector<2x512xf32>
    %142 = tpu.matmul %138, %7, %cst_42 {dimension_numbers = #tpu.dot_dimension_numbers<[1], [0], [0], [1], [0, 0, 1, 1], [], []>} : vector<2x128xf32>, vector<128x512xf32>, vector<2x512xf32> -> vector<2x512xf32>
    %143 = arith.addf %141, %142 : vector<2x512xf32>
    %144 = vector.extract_strided_slice %143 {offsets = [0, 0], sizes = [2, 384], strides = [1, 1]} : vector<2x512xf32> to vector<2x384xf32>
    %145 = arith.negf %144 : vector<2x384xf32>
    %146 = math.exp %145 : vector<2x384xf32>
    %cst_43 = arith.constant 1.000000e+00 : f32
    %147 = vector.broadcast %cst_43 : f32 to vector<2x384xf32>
    %148 = arith.addf %147, %146 : vector<2x384xf32>
    %149 = arith.divf %147, %148 : vector<2x384xf32>
    %150 = vector.extract_strided_slice %143 {offsets = [0, 384], sizes = [2, 128], strides = [1, 1]} : vector<2x512xf32> to vector<2x128xf32>
    %151 = math.tanh %150 : vector<2x128xf32>
    %152 = vector.extract_strided_slice %149 {offsets = [0, 0], sizes = [2, 128], strides = [1, 1]} : vector<2x384xf32> to vector<2x128xf32>
    %153 = vector.extract_strided_slice %149 {offsets = [0, 128], sizes = [2, 128], strides = [1, 1]} : vector<2x384xf32> to vector<2x128xf32>
    %154 = vector.extract_strided_slice %149 {offsets = [0, 256], sizes = [2, 128], strides = [1, 1]} : vector<2x384xf32> to vector<2x128xf32>
    %155 = arith.mulf %153, %136 : vector<2x128xf32>
    %156 = arith.mulf %152, %151 : vector<2x128xf32>
    %157 = arith.addf %155, %156 : vector<2x128xf32>
    %158 = math.tanh %157 : vector<2x128xf32>
    %159 = arith.mulf %154, %158 : vector<2x128xf32>
    %c12_44 = arith.constant 12 : index
    %c0_45 = arith.constant 0 : index
    %160 = vector.load %arg6[%c12_44, %c0_45] : memref<16x128xf32, #tpu.memory_space<vmem>>, vector<2x128xf32>
    tpu.vector_store %arg6[%c12_44, %c0_45], %159 {strides = array<i32>} : memref<16x128xf32, #tpu.memory_space<vmem>>, vector<2x128xf32>,
    %c2_46 = arith.constant 2 : index
    %c0_47 = arith.constant 0 : index
    %161 = vector.load %arg7[%c2_46, %c0_47] : memref<16x128xf32, #tpu.memory_space<vmem>>, vector<2x128xf32>
    tpu.vector_store %arg7[%c2_46, %c0_47], %159 {strides = array<i32>} : memref<16x128xf32, #tpu.memory_space<vmem>>, vector<2x128xf32>,
    %162 = vector.extract_strided_slice %12 {offsets = [14, 0], sizes = [2, 512], strides = [1, 1]} : vector<16x512xf32> to vector<2x512xf32>
    %cst_48 = arith.constant dense<0.000000e+00> : vector<2x512xf32>
    %163 = tpu.matmul %159, %7, %cst_48 {dimension_numbers = #tpu.dot_dimension_numbers<[1], [0], [0], [1], [0, 0, 1, 1], [], []>} : vector<2x128xf32>, vector<128x512xf32>, vector<2x512xf32> -> vector<2x512xf32>
    %164 = arith.addf %162, %163 : vector<2x512xf32>
    %165 = vector.extract_strided_slice %164 {offsets = [0, 0], sizes = [2, 384], strides = [1, 1]} : vector<2x512xf32> to vector<2x384xf32>
    %166 = arith.negf %165 : vector<2x384xf32>
    %167 = math.exp %166 : vector<2x384xf32>
    %cst_49 = arith.constant 1.000000e+00 : f32
    %168 = vector.broadcast %cst_49 : f32 to vector<2x384xf32>
    %169 = arith.addf %168, %167 : vector<2x384xf32>
    %170 = arith.divf %168, %169 : vector<2x384xf32>
    %171 = vector.extract_strided_slice %164 {offsets = [0, 384], sizes = [2, 128], strides = [1, 1]} : vector<2x512xf32> to vector<2x128xf32>
    %172 = math.tanh %171 : vector<2x128xf32>
    %173 = vector.extract_strided_slice %170 {offsets = [0, 0], sizes = [2, 128], strides = [1, 1]} : vector<2x384xf32> to vector<2x128xf32>
    %174 = vector.extract_strided_slice %170 {offsets = [0, 128], sizes = [2, 128], strides = [1, 1]} : vector<2x384xf32> to vector<2x128xf32>
    %175 = vector.extract_strided_slice %170 {offsets = [0, 256], sizes = [2, 128], strides = [1, 1]} : vector<2x384xf32> to vector<2x128xf32>
    %176 = arith.mulf %174, %157 : vector<2x128xf32>
    %177 = arith.mulf %173, %172 : vector<2x128xf32>
    %178 = arith.addf %176, %177 : vector<2x128xf32>
    %179 = math.tanh %178 : vector<2x128xf32>
    %180 = arith.mulf %175, %179 : vector<2x128xf32>
    %c14_50 = arith.constant 14 : index
    %c0_51 = arith.constant 0 : index
    %181 = vector.load %arg6[%c14_50, %c0_51] : memref<16x128xf32, #tpu.memory_space<vmem>>, vector<2x128xf32>
    tpu.vector_store %arg6[%c14_50, %c0_51], %180 {strides = array<i32>} : memref<16x128xf32, #tpu.memory_space<vmem>>, vector<2x128xf32>,
    %c0_52 = arith.constant 0 : index
    %c0_53 = arith.constant 0 : index
    %182 = vector.load %arg7[%c0_52, %c0_53] : memref<16x128xf32, #tpu.memory_space<vmem>>, vector<2x128xf32>
    tpu.vector_store %arg7[%c0_52, %c0_53], %180 {strides = array<i32>} : memref<16x128xf32, #tpu.memory_space<vmem>>, vector<2x128xf32>,
    %c0_54 = arith.constant 0 : index
    %c0_55 = arith.constant 0 : index
    %183 = vector.load %arg6[%c0_54, %c0_55] : memref<16x128xf32, #tpu.memory_space<vmem>>, vector<16x128xf32>
    %c0_56 = arith.constant 0 : index
    %c0_57 = arith.constant 0 : index
    %184 = vector.load %arg7[%c0_56, %c0_57] : memref<16x128xf32, #tpu.memory_space<vmem>>, vector<16x128xf32>
    %c0_58 = arith.constant 0 : index
    %c0_59 = arith.constant 0 : index
    %185 = vector.load %arg4[%c0_58, %c0_59] : memref<322x256xf32, #tpu.memory_space<vmem>>, vector<128x256xf32>
    %c128 = arith.constant 128 : index
    %c0_60 = arith.constant 0 : index
    %186 = vector.load %arg4[%c128, %c0_60] : memref<322x256xf32, #tpu.memory_space<vmem>>, vector<128x256xf32>
    %c256_61 = arith.constant 256 : index
    %c0_62 = arith.constant 0 : index
    %187 = vector.load %arg4[%c256_61, %c0_62] : memref<322x256xf32, #tpu.memory_space<vmem>>, vector<64x256xf32>
    %c320 = arith.constant 320 : index
    %c0_63 = arith.constant 0 : index
    %188 = vector.load %arg4[%c320, %c0_63] : memref<322x256xf32, #tpu.memory_space<vmem>>, vector<1x256xf32>
    %cst_64 = arith.constant dense<0.000000e+00> : vector<16x256xf32>
    %189 = tpu.matmul %183, %185, %cst_64 {dimension_numbers = #tpu.dot_dimension_numbers<[1], [0], [0], [1], [0, 0, 1, 1], [], []>} : vector<16x128xf32>, vector<128x256xf32>, vector<16x256xf32> -> vector<16x256xf32>
    %cst_65 = arith.constant dense<0.000000e+00> : vector<16x256xf32>
    %190 = tpu.matmul %184, %186, %cst_65 {dimension_numbers = #tpu.dot_dimension_numbers<[1], [0], [0], [1], [0, 0, 1, 1], [], []>} : vector<16x128xf32>, vector<128x256xf32>, vector<16x256xf32> -> vector<16x256xf32>
    %191 = arith.addf %189, %190 : vector<16x256xf32>
    %192 = vector.broadcast %188 : vector<1x256xf32> to vector<16x256xf32>
    %193 = arith.addf %191, %192 : vector<16x256xf32>
    %cst_66 = arith.constant 0.000000e+00 : f32
    %194 = vector.broadcast %cst_66 : f32 to vector<2x64xf32>
    %cst_67 = arith.constant 0.000000e+00 : f32
    %195 = vector.broadcast %cst_67 : f32 to vector<2x64xf32>
    %cst_68 = arith.constant 0.000000e+00 : f32
    %196 = vector.broadcast %cst_68 : f32 to vector<2x64xf32>
    %197 = vector.extract_strided_slice %193 {offsets = [0, 0], sizes = [2, 256], strides = [1, 1]} : vector<16x256xf32> to vector<2x256xf32>
    %cst_69 = arith.constant dense<0.000000e+00> : vector<2x256xf32>
    %198 = tpu.matmul %194, %187, %cst_69 {dimension_numbers = #tpu.dot_dimension_numbers<[1], [0], [0], [1], [0, 0, 1, 1], [], []>} : vector<2x64xf32>, vector<64x256xf32>, vector<2x256xf32> -> vector<2x256xf32>
    %199 = arith.addf %197, %198 : vector<2x256xf32>
    %200 = vector.extract_strided_slice %199 {offsets = [0, 0], sizes = [2, 192], strides = [1, 1]} : vector<2x256xf32> to vector<2x192xf32>
    %201 = arith.negf %200 : vector<2x192xf32>
    %202 = math.exp %201 : vector<2x192xf32>
    %cst_70 = arith.constant 1.000000e+00 : f32
    %203 = vector.broadcast %cst_70 : f32 to vector<2x192xf32>
    %204 = arith.addf %203, %202 : vector<2x192xf32>
    %205 = arith.divf %203, %204 : vector<2x192xf32>
    %206 = vector.extract_strided_slice %199 {offsets = [0, 192], sizes = [2, 64], strides = [1, 1]} : vector<2x256xf32> to vector<2x64xf32>
    %207 = math.tanh %206 : vector<2x64xf32>
    %208 = vector.extract_strided_slice %205 {offsets = [0, 0], sizes = [2, 64], strides = [1, 1]} : vector<2x192xf32> to vector<2x64xf32>
    %209 = vector.extract_strided_slice %205 {offsets = [0, 64], sizes = [2, 64], strides = [1, 1]} : vector<2x192xf32> to vector<2x64xf32>
    %210 = vector.extract_strided_slice %205 {offsets = [0, 128], sizes = [2, 64], strides = [1, 1]} : vector<2x192xf32> to vector<2x64xf32>
    %211 = arith.mulf %209, %195 : vector<2x64xf32>
    %212 = arith.mulf %208, %207 : vector<2x64xf32>
    %213 = arith.addf %211, %212 : vector<2x64xf32>
    %214 = math.tanh %213 : vector<2x64xf32>
    %215 = arith.mulf %210, %214 : vector<2x64xf32>
    %216 = arith.addf %196, %215 : vector<2x64xf32>
    %217 = vector.extract_strided_slice %193 {offsets = [2, 0], sizes = [2, 256], strides = [1, 1]} : vector<16x256xf32> to vector<2x256xf32>
    %cst_71 = arith.constant dense<0.000000e+00> : vector<2x256xf32>
    %218 = tpu.matmul %215, %187, %cst_71 {dimension_numbers = #tpu.dot_dimension_numbers<[1], [0], [0], [1], [0, 0, 1, 1], [], []>} : vector<2x64xf32>, vector<64x256xf32>, vector<2x256xf32> -> vector<2x256xf32>
    %219 = arith.addf %217, %218 : vector<2x256xf32>
    %220 = vector.extract_strided_slice %219 {offsets = [0, 0], sizes = [2, 192], strides = [1, 1]} : vector<2x256xf32> to vector<2x192xf32>
    %221 = arith.negf %220 : vector<2x192xf32>
    %222 = math.exp %221 : vector<2x192xf32>
    %cst_72 = arith.constant 1.000000e+00 : f32
    %223 = vector.broadcast %cst_72 : f32 to vector<2x192xf32>
    %224 = arith.addf %223, %222 : vector<2x192xf32>
    %225 = arith.divf %223, %224 : vector<2x192xf32>
    %226 = vector.extract_strided_slice %219 {offsets = [0, 192], sizes = [2, 64], strides = [1, 1]} : vector<2x256xf32> to vector<2x64xf32>
    %227 = math.tanh %226 : vector<2x64xf32>
    %228 = vector.extract_strided_slice %225 {offsets = [0, 0], sizes = [2, 64], strides = [1, 1]} : vector<2x192xf32> to vector<2x64xf32>
    %229 = vector.extract_strided_slice %225 {offsets = [0, 64], sizes = [2, 64], strides = [1, 1]} : vector<2x192xf32> to vector<2x64xf32>
    %230 = vector.extract_strided_slice %225 {offsets = [0, 128], sizes = [2, 64], strides = [1, 1]} : vector<2x192xf32> to vector<2x64xf32>
    %231 = arith.mulf %229, %213 : vector<2x64xf32>
    %232 = arith.mulf %228, %227 : vector<2x64xf32>
    %233 = arith.addf %231, %232 : vector<2x64xf32>
    %234 = math.tanh %233 : vector<2x64xf32>
    %235 = arith.mulf %230, %234 : vector<2x64xf32>
    %236 = arith.addf %216, %235 : vector<2x64xf32>
    %237 = vector.extract_strided_slice %193 {offsets = [4, 0], sizes = [2, 256], strides = [1, 1]} : vector<16x256xf32> to vector<2x256xf32>
    %cst_73 = arith.constant dense<0.000000e+00> : vector<2x256xf32>
    %238 = tpu.matmul %235, %187, %cst_73 {dimension_numbers = #tpu.dot_dimension_numbers<[1], [0], [0], [1], [0, 0, 1, 1], [], []>} : vector<2x64xf32>, vector<64x256xf32>, vector<2x256xf32> -> vector<2x256xf32>
    %239 = arith.addf %237, %238 : vector<2x256xf32>
    %240 = vector.extract_strided_slice %239 {offsets = [0, 0], sizes = [2, 192], strides = [1, 1]} : vector<2x256xf32> to vector<2x192xf32>
    %241 = arith.negf %240 : vector<2x192xf32>
    %242 = math.exp %241 : vector<2x192xf32>
    %cst_74 = arith.constant 1.000000e+00 : f32
    %243 = vector.broadcast %cst_74 : f32 to vector<2x192xf32>
    %244 = arith.addf %243, %242 : vector<2x192xf32>
    %245 = arith.divf %243, %244 : vector<2x192xf32>
    %246 = vector.extract_strided_slice %239 {offsets = [0, 192], sizes = [2, 64], strides = [1, 1]} : vector<2x256xf32> to vector<2x64xf32>
    %247 = math.tanh %246 : vector<2x64xf32>
    %248 = vector.extract_strided_slice %245 {offsets = [0, 0], sizes = [2, 64], strides = [1, 1]} : vector<2x192xf32> to vector<2x64xf32>
    %249 = vector.extract_strided_slice %245 {offsets = [0, 64], sizes = [2, 64], strides = [1, 1]} : vector<2x192xf32> to vector<2x64xf32>
    %250 = vector.extract_strided_slice %245 {offsets = [0, 128], sizes = [2, 64], strides = [1, 1]} : vector<2x192xf32> to vector<2x64xf32>
    %251 = arith.mulf %249, %233 : vector<2x64xf32>
    %252 = arith.mulf %248, %247 : vector<2x64xf32>
    %253 = arith.addf %251, %252 : vector<2x64xf32>
    %254 = math.tanh %253 : vector<2x64xf32>
    %255 = arith.mulf %250, %254 : vector<2x64xf32>
    %256 = arith.addf %236, %255 : vector<2x64xf32>
    %257 = vector.extract_strided_slice %193 {offsets = [6, 0], sizes = [2, 256], strides = [1, 1]} : vector<16x256xf32> to vector<2x256xf32>
    %cst_75 = arith.constant dense<0.000000e+00> : vector<2x256xf32>
    %258 = tpu.matmul %255, %187, %cst_75 {dimension_numbers = #tpu.dot_dimension_numbers<[1], [0], [0], [1], [0, 0, 1, 1], [], []>} : vector<2x64xf32>, vector<64x256xf32>, vector<2x256xf32> -> vector<2x256xf32>
    %259 = arith.addf %257, %258 : vector<2x256xf32>
    %260 = vector.extract_strided_slice %259 {offsets = [0, 0], sizes = [2, 192], strides = [1, 1]} : vector<2x256xf32> to vector<2x192xf32>
    %261 = arith.negf %260 : vector<2x192xf32>
    %262 = math.exp %261 : vector<2x192xf32>
    %cst_76 = arith.constant 1.000000e+00 : f32
    %263 = vector.broadcast %cst_76 : f32 to vector<2x192xf32>
    %264 = arith.addf %263, %262 : vector<2x192xf32>
    %265 = arith.divf %263, %264 : vector<2x192xf32>
    %266 = vector.extract_strided_slice %259 {offsets = [0, 192], sizes = [2, 64], strides = [1, 1]} : vector<2x256xf32> to vector<2x64xf32>
    %267 = math.tanh %266 : vector<2x64xf32>
    %268 = vector.extract_strided_slice %265 {offsets = [0, 0], sizes = [2, 64], strides = [1, 1]} : vector<2x192xf32> to vector<2x64xf32>
    %269 = vector.extract_strided_slice %265 {offsets = [0, 64], sizes = [2, 64], strides = [1, 1]} : vector<2x192xf32> to vector<2x64xf32>
    %270 = vector.extract_strided_slice %265 {offsets = [0, 128], sizes = [2, 64], strides = [1, 1]} : vector<2x192xf32> to vector<2x64xf32>
    %271 = arith.mulf %269, %253 : vector<2x64xf32>
    %272 = arith.mulf %268, %267 : vector<2x64xf32>
    %273 = arith.addf %271, %272 : vector<2x64xf32>
    %274 = math.tanh %273 : vector<2x64xf32>
    %275 = arith.mulf %270, %274 : vector<2x64xf32>
    %276 = arith.addf %256, %275 : vector<2x64xf32>
    %277 = vector.extract_strided_slice %193 {offsets = [8, 0], sizes = [2, 256], strides = [1, 1]} : vector<16x256xf32> to vector<2x256xf32>
    %cst_77 = arith.constant dense<0.000000e+00> : vector<2x256xf32>
    %278 = tpu.matmul %275, %187, %cst_77 {dimension_numbers = #tpu.dot_dimension_numbers<[1], [0], [0], [1], [0, 0, 1, 1], [], []>} : vector<2x64xf32>, vector<64x256xf32>, vector<2x256xf32> -> vector<2x256xf32>
    %279 = arith.addf %277, %278 : vector<2x256xf32>
    %280 = vector.extract_strided_slice %279 {offsets = [0, 0], sizes = [2, 192], strides = [1, 1]} : vector<2x256xf32> to vector<2x192xf32>
    %281 = arith.negf %280 : vector<2x192xf32>
    %282 = math.exp %281 : vector<2x192xf32>
    %cst_78 = arith.constant 1.000000e+00 : f32
    %283 = vector.broadcast %cst_78 : f32 to vector<2x192xf32>
    %284 = arith.addf %283, %282 : vector<2x192xf32>
    %285 = arith.divf %283, %284 : vector<2x192xf32>
    %286 = vector.extract_strided_slice %279 {offsets = [0, 192], sizes = [2, 64], strides = [1, 1]} : vector<2x256xf32> to vector<2x64xf32>
    %287 = math.tanh %286 : vector<2x64xf32>
    %288 = vector.extract_strided_slice %285 {offsets = [0, 0], sizes = [2, 64], strides = [1, 1]} : vector<2x192xf32> to vector<2x64xf32>
    %289 = vector.extract_strided_slice %285 {offsets = [0, 64], sizes = [2, 64], strides = [1, 1]} : vector<2x192xf32> to vector<2x64xf32>
    %290 = vector.extract_strided_slice %285 {offsets = [0, 128], sizes = [2, 64], strides = [1, 1]} : vector<2x192xf32> to vector<2x64xf32>
    %291 = arith.mulf %289, %273 : vector<2x64xf32>
    %292 = arith.mulf %288, %287 : vector<2x64xf32>
    %293 = arith.addf %291, %292 : vector<2x64xf32>
    %294 = math.tanh %293 : vector<2x64xf32>
    %295 = arith.mulf %290, %294 : vector<2x64xf32>
    %296 = arith.addf %276, %295 : vector<2x64xf32>
    %297 = vector.extract_strided_slice %193 {offsets = [10, 0], sizes = [2, 256], strides = [1, 1]} : vector<16x256xf32> to vector<2x256xf32>
    %cst_79 = arith.constant dense<0.000000e+00> : vector<2x256xf32>
    %298 = tpu.matmul %295, %187, %cst_79 {dimension_numbers = #tpu.dot_dimension_numbers<[1], [0], [0], [1], [0, 0, 1, 1], [], []>} : vector<2x64xf32>, vector<64x256xf32>, vector<2x256xf32> -> vector<2x256xf32>
    %299 = arith.addf %297, %298 : vector<2x256xf32>
    %300 = vector.extract_strided_slice %299 {offsets = [0, 0], sizes = [2, 192], strides = [1, 1]} : vector<2x256xf32> to vector<2x192xf32>
    %301 = arith.negf %300 : vector<2x192xf32>
    %302 = math.exp %301 : vector<2x192xf32>
    %cst_80 = arith.constant 1.000000e+00 : f32
    %303 = vector.broadcast %cst_80 : f32 to vector<2x192xf32>
    %304 = arith.addf %303, %302 : vector<2x192xf32>
    %305 = arith.divf %303, %304 : vector<2x192xf32>
    %306 = vector.extract_strided_slice %299 {offsets = [0, 192], sizes = [2, 64], strides = [1, 1]} : vector<2x256xf32> to vector<2x64xf32>
    %307 = math.tanh %306 : vector<2x64xf32>
    %308 = vector.extract_strided_slice %305 {offsets = [0, 0], sizes = [2, 64], strides = [1, 1]} : vector<2x192xf32> to vector<2x64xf32>
    %309 = vector.extract_strided_slice %305 {offsets = [0, 64], sizes = [2, 64], strides = [1, 1]} : vector<2x192xf32> to vector<2x64xf32>
    %310 = vector.extract_strided_slice %305 {offsets = [0, 128], sizes = [2, 64], strides = [1, 1]} : vector<2x192xf32> to vector<2x64xf32>
    %311 = arith.mulf %309, %293 : vector<2x64xf32>
    %312 = arith.mulf %308, %307 : vector<2x64xf32>
    %313 = arith.addf %311, %312 : vector<2x64xf32>
    %314 = math.tanh %313 : vector<2x64xf32>
    %315 = arith.mulf %310, %314 : vector<2x64xf32>
    %316 = arith.addf %296, %315 : vector<2x64xf32>
    %317 = vector.extract_strided_slice %193 {offsets = [12, 0], sizes = [2, 256], strides = [1, 1]} : vector<16x256xf32> to vector<2x256xf32>
    %cst_81 = arith.constant dense<0.000000e+00> : vector<2x256xf32>
    %318 = tpu.matmul %315, %187, %cst_81 {dimension_numbers = #tpu.dot_dimension_numbers<[1], [0], [0], [1], [0, 0, 1, 1], [], []>} : vector<2x64xf32>, vector<64x256xf32>, vector<2x256xf32> -> vector<2x256xf32>
    %319 = arith.addf %317, %318 : vector<2x256xf32>
    %320 = vector.extract_strided_slice %319 {offsets = [0, 0], sizes = [2, 192], strides = [1, 1]} : vector<2x256xf32> to vector<2x192xf32>
    %321 = arith.negf %320 : vector<2x192xf32>
    %322 = math.exp %321 : vector<2x192xf32>
    %cst_82 = arith.constant 1.000000e+00 : f32
    %323 = vector.broadcast %cst_82 : f32 to vector<2x192xf32>
    %324 = arith.addf %323, %322 : vector<2x192xf32>
    %325 = arith.divf %323, %324 : vector<2x192xf32>
    %326 = vector.extract_strided_slice %319 {offsets = [0, 192], sizes = [2, 64], strides = [1, 1]} : vector<2x256xf32> to vector<2x64xf32>
    %327 = math.tanh %326 : vector<2x64xf32>
    %328 = vector.extract_strided_slice %325 {offsets = [0, 0], sizes = [2, 64], strides = [1, 1]} : vector<2x192xf32> to vector<2x64xf32>
    %329 = vector.extract_strided_slice %325 {offsets = [0, 64], sizes = [2, 64], strides = [1, 1]} : vector<2x192xf32> to vector<2x64xf32>
    %330 = vector.extract_strided_slice %325 {offsets = [0, 128], sizes = [2, 64], strides = [1, 1]} : vector<2x192xf32> to vector<2x64xf32>
    %331 = arith.mulf %329, %313 : vector<2x64xf32>
    %332 = arith.mulf %328, %327 : vector<2x64xf32>
    %333 = arith.addf %331, %332 : vector<2x64xf32>
    %334 = math.tanh %333 : vector<2x64xf32>
    %335 = arith.mulf %330, %334 : vector<2x64xf32>
    %336 = arith.addf %316, %335 : vector<2x64xf32>
    %337 = vector.extract_strided_slice %193 {offsets = [14, 0], sizes = [2, 256], strides = [1, 1]} : vector<16x256xf32> to vector<2x256xf32>
    %cst_83 = arith.constant dense<0.000000e+00> : vector<2x256xf32>
    %338 = tpu.matmul %335, %187, %cst_83 {dimension_numbers = #tpu.dot_dimension_numbers<[1], [0], [0], [1], [0, 0, 1, 1], [], []>} : vector<2x64xf32>, vector<64x256xf32>, vector<2x256xf32> -> vector<2x256xf32>
    %339 = arith.addf %337, %338 : vector<2x256xf32>
    %340 = vector.extract_strided_slice %339 {offsets = [0, 0], sizes = [2, 192], strides = [1, 1]} : vector<2x256xf32> to vector<2x192xf32>
    %341 = arith.negf %340 : vector<2x192xf32>
    %342 = math.exp %341 : vector<2x192xf32>
    %cst_84 = arith.constant 1.000000e+00 : f32
    %343 = vector.broadcast %cst_84 : f32 to vector<2x192xf32>
    %344 = arith.addf %343, %342 : vector<2x192xf32>
    %345 = arith.divf %343, %344 : vector<2x192xf32>
    %346 = vector.extract_strided_slice %339 {offsets = [0, 192], sizes = [2, 64], strides = [1, 1]} : vector<2x256xf32> to vector<2x64xf32>
    %347 = math.tanh %346 : vector<2x64xf32>
    %348 = vector.extract_strided_slice %345 {offsets = [0, 0], sizes = [2, 64], strides = [1, 1]} : vector<2x192xf32> to vector<2x64xf32>
    %349 = vector.extract_strided_slice %345 {offsets = [0, 64], sizes = [2, 64], strides = [1, 1]} : vector<2x192xf32> to vector<2x64xf32>
    %350 = vector.extract_strided_slice %345 {offsets = [0, 128], sizes = [2, 64], strides = [1, 1]} : vector<2x192xf32> to vector<2x64xf32>
    %351 = arith.mulf %349, %333 : vector<2x64xf32>
    %352 = arith.mulf %348, %347 : vector<2x64xf32>
    %353 = arith.addf %351, %352 : vector<2x64xf32>
    %354 = math.tanh %353 : vector<2x64xf32>
    %355 = arith.mulf %350, %354 : vector<2x64xf32>
    %356 = arith.addf %336, %355 : vector<2x64xf32>
    %cst_85 = arith.constant 1.250000e-01 : f32
    %357 = vector.broadcast %cst_85 : f32 to vector<2x64xf32>
    %358 = arith.mulf %356, %357 : vector<2x64xf32>
    %359 = tpu.concatenate %5, %358 in 1 : vector<2x16xf32>, vector<2x64xf32> -> vector<2x80xf32>
    %c321 = arith.constant 321 : index
    %c0_86 = arith.constant 0 : index
    %360 = vector.load %arg4[%c321, %c0_86] : memref<322x256xf32, #tpu.memory_space<vmem>>, vector<1x256xf32>
    %361 = vector.extract_strided_slice %360 {offsets = [0, 0], sizes = [1, 80], strides = [1, 1]} : vector<1x256xf32> to vector<1x80xf32>
    %362 = vector.broadcast %361 : vector<1x80xf32> to vector<2x80xf32>
    %363 = arith.mulf %359, %362 : vector<2x80xf32>
    %cst_87 = arith.constant dense<0.000000e+00> : vector<2xf32>
    %364 = vector.multi_reduction <add>, %363, %cst_87 [1] : vector<2x80xf32> to vector<2xf32>
    %365 = vector.shape_cast %364 : vector<2xf32> to vector<2x1xf32>
    %366 = vector.extract_strided_slice %360 {offsets = [0, 80], sizes = [1, 1], strides = [1, 1]} : vector<1x256xf32> to vector<1x1xf32>
    %367 = vector.broadcast %366 : vector<1x1xf32> to vector<2x1xf32>
    %368 = arith.addf %365, %367 : vector<2x1xf32>
    %369 = arith.negf %368 : vector<2x1xf32>
    %370 = math.exp %369 : vector<2x1xf32>
    %cst_88 = arith.constant 1.000000e+00 : f32
    %371 = vector.broadcast %cst_88 : f32 to vector<2x1xf32>
    %372 = arith.addf %371, %370 : vector<2x1xf32>
    %373 = arith.divf %371, %372 : vector<2x1xf32>
    %c0_89 = arith.constant 0 : index
    %c0_90 = arith.constant 0 : index
    %374 = vector.load %arg5[%c0_89, %c0_90] : memref<2x1xf32, #tpu.memory_space<vmem>>, vector<2x1xf32>
    tpu.vector_store %arg5[%c0_89, %c0_90], %373 {strides = array<i32>} : memref<2x1xf32, #tpu.memory_space<vmem>>, vector<2x1xf32>,
    return
  }
}

</mosaic_0001>

<llo_original>
// kernel: forward.1
$region0: #{forward.1}
  #allocation0 [shape = 'u32[]', space=smem, size = 0x4, offset = 0x4, fixed_abs, tag = 'smem constant byte address 0x4 - core index']
  #allocation1 [shape = 'u32[144,128]{1,0:T(1,128)}', space=vmem, size = 0x12000, scoped, tag = 'internal scratch']
  #allocation2 [shape = 'f32[16,128]{1,0:T(8,128)}', space=vmem, size = 0x2000, scoped, tag = 'scratch operand']
  #allocation3 [shape = 'f32[16,128]{1,0:T(8,128)}', space=vmem, size = 0x2000, scoped, tag = 'scratch operand']
  %s0 = inlined_call_operand.vmem [shape: f32[2,3072], index: 0, kind: input, shape index: {}]
  %s1 = inlined_call_operand.vmem [shape: f32[16,256], index: 1, kind: input, shape index: {}]
  %s2 = inlined_call_operand.vmem [shape: f32[3073,16], index: 2, kind: input, shape index: {}]
  %s3 = inlined_call_operand.vmem [shape: f32[385,512], index: 3, kind: input, shape index: {}]
  %s4 = inlined_call_operand.vmem [shape: f32[322,256], index: 4, kind: input, shape index: {}]
  %s5 = inlined_call_operand.vmem [shape: f32[2,1], index: 5, kind: output, shape index: {}]
  %s6 = sld [smem:[#allocation0]]
  $region30: #{forward.1} parent=0
    _
  %s8 = ssub.s32 1, %s6
  %s9 = scalar_select 0, %s8, %s6
  // Predicated region
  $region2: #{forward.1} parent=0 // pred_check
    _
  $region3: #{forward.1} parent=0 // pred_check_branch
    %11 = sbr.rel (0) target = $region5
  $region4: #{forward.1} parent=0 // pred_region
    _
  $region5: #{forward.1} parent=0 // pred_fallthru
    _
  // Predicated region
  $region6: #{forward.1} parent=0 // pred_check
    _
  $region7: #{forward.1} parent=0 // pred_check_branch
    %13 = sbr.rel (0) target = $region9
  $region8: #{forward.1} parent=0 // pred_region
    _
  $region9: #{forward.1} parent=0 // pred_fallthru
    _
  // Predicated region
  $region10: #{forward.1} parent=0 // pred_check
    _
  $region11: #{forward.1} parent=0 // pred_check_branch
    %15 = sbr.rel (0) target = $region13
  $region12: #{forward.1} parent=0 // pred_region
    _
  $region13: #{forward.1} parent=0 // pred_fallthru
    _
  // Predicated region
  $region14: #{forward.1} parent=0 // pred_check
    _
  $region15: #{forward.1} parent=0 // pred_check_branch
    %17 = sbr.rel (0) target = $region17
  $region16: #{forward.1} parent=0 // pred_region
    _
  $region17: #{forward.1} parent=0 // pred_fallthru
    _
  // Predicated region
  $region18: #{forward.1} parent=0 // pred_check
    _
  $region19: #{forward.1} parent=0 // pred_check_branch
    %19 = sbr.rel (0) target = $region21
  $region20: #{forward.1} parent=0 // pred_region
    _
  $region21: #{forward.1} parent=0 // pred_fallthru
    _
  %v20 = vld [vmem:[%s0] sm:$0xff]
  %v21 = vld [vmem:[%s0 + $0x8] sm:$0xff]
  %v22 = vld [vmem:[%s0 + $0x10] sm:$0xff]
  %v23 = vld [vmem:[%s0 + $0x18] sm:$0xff]
  %v24 = vld [vmem:[%s0 + $0x20] sm:$0xff]
  %v25 = vld [vmem:[%s0 + $0x28] sm:$0xff]
  %v26 = vld [vmem:[%s2] sm:$0xff]
  %v27 = vld [vmem:[%s2 + $0x8] sm:$0xff]
  %v28 = vld [vmem:[%s2 + $0x10] sm:$0xff]
  %v29 = vld [vmem:[%s2 + $0x18] sm:$0xff]
  %v30 = vld [vmem:[%s2 + $0x20] sm:$0xff]
  %v31 = vld [vmem:[%s2 + $0x28] sm:$0xff]
  %v32 = vld [vmem:[%s2 + $0x30] sm:$0xff]
  %v33 = vld [vmem:[%s2 + $0x38] sm:$0xff]
  %v34 = vld [vmem:[%s2 + $0x40] sm:$0xff]
  %v35 = vld [vmem:[%s2 + $0x48] sm:$0xff]
  %v36 = vld [vmem:[%s2 + $0x50] sm:$0xff]
  %v37 = vld [vmem:[%s2 + $0x58] sm:$0xff]
  %v38 = vld [vmem:[%s2 + $0x60] sm:$0xff]
  %v39 = vld [vmem:[%s2 + $0x68] sm:$0xff]
  %v40 = vld [vmem:[%s2 + $0x70] sm:$0xff]
  %v41 = vld [vmem:[%s2 + $0x78] sm:$0xff]
  %v42 = vld [vmem:[%s2 + $0x80] sm:$0xff]
  %v43 = vld [vmem:[%s2 + $0x88] sm:$0xff]
  %v44 = vld [vmem:[%s2 + $0x90] sm:$0xff]
  %v45 = vld [vmem:[%s2 + $0x98] sm:$0xff]
  %v46 = vld [vmem:[%s2 + $0xa0] sm:$0xff]
  %v47 = vld [vmem:[%s2 + $0xa8] sm:$0xff]
  %v48 = vld [vmem:[%s2 + $0xb0] sm:$0xff]
  %v49 = vld [vmem:[%s2 + $0xb8] sm:$0xff]
  %v50 = vld [vmem:[%s2 + $0xc0] sm:$0xff]
  %v51 = vld [vmem:[%s2 + $0xc8] sm:$0xff]
  %v52 = vld [vmem:[%s2 + $0xd0] sm:$0xff]
  %v53 = vld [vmem:[%s2 + $0xd8] sm:$0xff]
  %v54 = vld [vmem:[%s2 + $0xe0] sm:$0xff]
  %v55 = vld [vmem:[%s2 + $0xe8] sm:$0xff]
  %v56 = vld [vmem:[%s2 + $0xf0] sm:$0xff]
  %v57 = vld [vmem:[%s2 + $0xf8] sm:$0xff]
  %v58 = vld [vmem:[%s2 + $0x100] sm:$0xff]
  %v59 = vld [vmem:[%s2 + $0x108] sm:$0xff]
  %v60 = vld [vmem:[%s2 + $0x110] sm:$0xff]
  %v61 = vld [vmem:[%s2 + $0x118] sm:$0xff]
  %v62 = vld [vmem:[%s2 + $0x120] sm:$0xff]
  %v63 = vld [vmem:[%s2 + $0x128] sm:$0xff]
  %v64 = vld [vmem:[%s2 + $0x130] sm:$0xff]
  %v65 = vld [vmem:[%s2 + $0x138] sm:$0xff]
  %v66 = vld [vmem:[%s2 + $0x140] sm:$0xff]
  %v67 = vld [vmem:[%s2 + $0x148] sm:$0xff]
  %v68 = vld [vmem:[%s2 + $0x150] sm:$0xff]
  %v69 = vld [vmem:[%s2 + $0x158] sm:$0xff]
  %v70 = vld [vmem:[%s2 + $0x160] sm:$0xff]
  %v71 = vld [vmem:[%s2 + $0x168] sm:$0xff]
  %v72 = vld [vmem:[%s2 + $0x170] sm:$0xff]
  %v73 = vld [vmem:[%s2 + $0x178] sm:$0xff]
  %v74 = vld [vmem:[%s2 + $0x180] sm:$0xff]
  %v75 = vld [vmem:[%s2 + $0x188] sm:$0xff]
  %v76 = vld [vmem:[%s2 + $0x190] sm:$0xff]
  %v77 = vld [vmem:[%s2 + $0x198] sm:$0xff]
  %v78 = vld [vmem:[%s2 + $0x1a0] sm:$0xff]
  %v79 = vld [vmem:[%s2 + $0x1a8] sm:$0xff]
  %v80 = vld [vmem:[%s2 + $0x1b0] sm:$0xff]
  %v81 = vld [vmem:[%s2 + $0x1b8] sm:$0xff]
  %v82 = vld [vmem:[%s2 + $0x1c0] sm:$0xff]
  %v83 = vld [vmem:[%s2 + $0x1c8] sm:$0xff]
  %v84 = vld [vmem:[%s2 + $0x1d0] sm:$0xff]
  %v85 = vld [vmem:[%s2 + $0x1d8] sm:$0xff]
  %v86 = vld [vmem:[%s2 + $0x1e0] sm:$0xff]
  %v87 = vld [vmem:[%s2 + $0x1e8] sm:$0xff]
  %v88 = vld [vmem:[%s2 + $0x1f0] sm:$0xff]
  %v89 = vld [vmem:[%s2 + $0x1f8] sm:$0xff]
  %v90 = vld [vmem:[%s2 + $0x200] sm:$0xff]
  %v91 = vld [vmem:[%s2 + $0x208] sm:$0xff]
  %v92 = vld [vmem:[%s2 + $0x210] sm:$0xff]
  %v93 = vld [vmem:[%s2 + $0x218] sm:$0xff]
  %v94 = vld [vmem:[%s2 + $0x220] sm:$0xff]
  %v95 = vld [vmem:[%s2 + $0x228] sm:$0xff]
  %v96 = vld [vmem:[%s2 + $0x230] sm:$0xff]
  %v97 = vld [vmem:[%s2 + $0x238] sm:$0xff]
  %v98 = vld [vmem:[%s2 + $0x240] sm:$0xff]
  %v99 = vld [vmem:[%s2 + $0x248] sm:$0xff]
  %v100 = vld [vmem:[%s2 + $0x250] sm:$0xff]
  %v101 = vld [vmem:[%s2 + $0x258] sm:$0xff]
  %v102 = vld [vmem:[%s2 + $0x260] sm:$0xff]
  %v103 = vld [vmem:[%s2 + $0x268] sm:$0xff]
  %v104 = vld [vmem:[%s2 + $0x270] sm:$0xff]
  %v105 = vld [vmem:[%s2 + $0x278] sm:$0xff]
  %v106 = vld [vmem:[%s2 + $0x280] sm:$0xff]
  %v107 = vld [vmem:[%s2 + $0x288] sm:$0xff]
  %v108 = vld [vmem:[%s2 + $0x290] sm:$0xff]
  %v109 = vld [vmem:[%s2 + $0x298] sm:$0xff]
  %v110 = vld [vmem:[%s2 + $0x2a0] sm:$0xff]
  %v111 = vld [vmem:[%s2 + $0x2a8] sm:$0xff]
  %v112 = vld [vmem:[%s2 + $0x2b0] sm:$0xff]
  %v113 = vld [vmem:[%s2 + $0x2b8] sm:$0xff]
  %v114 = vld [vmem:[%s2 + $0x2c0] sm:$0xff]
  %v115 = vld [vmem:[%s2 + $0x2c8] sm:$0xff]
  %v116 = vld [vmem:[%s2 + $0x2d0] sm:$0xff]
  %v117 = vld [vmem:[%s2 + $0x2d8] sm:$0xff]
  %v118 = vld [vmem:[%s2 + $0x2e0] sm:$0xff]
  %v119 = vld [vmem:[%s2 + $0x2e8] sm:$0xff]
  %v120 = vld [vmem:[%s2 + $0x2f0] sm:$0xff]
  %v121 = vld [vmem:[%s2 + $0x2f8] sm:$0xff]
  %v122 = vld [vmem:[%s2 + $0x300] sm:$0xff]
  %v123 = vld [vmem:[%s2 + $0x308] sm:$0xff]
  %v124 = vld [vmem:[%s2 + $0x310] sm:$0xff]
  %v125 = vld [vmem:[%s2 + $0x318] sm:$0xff]
  %v126 = vld [vmem:[%s2 + $0x320] sm:$0xff]
  %v127 = vld [vmem:[%s2 + $0x328] sm:$0xff]
  %v128 = vld [vmem:[%s2 + $0x330] sm:$0xff]
  %v129 = vld [vmem:[%s2 + $0x338] sm:$0xff]
  %v130 = vld [vmem:[%s2 + $0x340] sm:$0xff]
  %v131 = vld [vmem:[%s2 + $0x348] sm:$0xff]
  %v132 = vld [vmem:[%s2 + $0x350] sm:$0xff]
  %v133 = vld [vmem:[%s2 + $0x358] sm:$0xff]
  %v134 = vld [vmem:[%s2 + $0x360] sm:$0xff]
  %v135 = vld [vmem:[%s2 + $0x368] sm:$0xff]
  %v136 = vld [vmem:[%s2 + $0x370] sm:$0xff]
  %v137 = vld [vmem:[%s2 + $0x378] sm:$0xff]
  %v138 = vld [vmem:[%s2 + $0x380] sm:$0xff]
  %v139 = vld [vmem:[%s2 + $0x388] sm:$0xff]
  %v140 = vld [vmem:[%s2 + $0x390] sm:$0xff]
  %v141 = vld [vmem:[%s2 + $0x398] sm:$0xff]
  %v142 = vld [vmem:[%s2 + $0x3a0] sm:$0xff]
  %v143 = vld [vmem:[%s2 + $0x3a8] sm:$0xff]
  %v144 = vld [vmem:[%s2 + $0x3b0] sm:$0xff]
  %v145 = vld [vmem:[%s2 + $0x3b8] sm:$0xff]
  %v146 = vld [vmem:[%s2 + $0x3c0] sm:$0xff]
  %v147 = vld [vmem:[%s2 + $0x3c8] sm:$0xff]
  %v148 = vld [vmem:[%s2 + $0x3d0] sm:$0xff]
  %v149 = vld [vmem:[%s2 + $0x3d8] sm:$0xff]
  %v150 = vld [vmem:[%s2 + $0x3e0] sm:$0xff]
  %v151 = vld [vmem:[%s2 + $0x3e8] sm:$0xff]
  %v152 = vld [vmem:[%s2 + $0x3f0] sm:$0xff]
  %v153 = vld [vmem:[%s2 + $0x3f8] sm:$0xff]
  %v154 = vld [vmem:[%s2 + $0x400] sm:$0xff]
  %v155 = vld [vmem:[%s2 + $0x408] sm:$0xff]
  %v156 = vld [vmem:[%s2 + $0x410] sm:$0xff]
  %v157 = vld [vmem:[%s2 + $0x418] sm:$0xff]
  %v158 = vld [vmem:[%s2 + $0x420] sm:$0xff]
  %v159 = vld [vmem:[%s2 + $0x428] sm:$0xff]
  %v160 = vld [vmem:[%s2 + $0x430] sm:$0xff]
  %v161 = vld [vmem:[%s2 + $0x438] sm:$0xff]
  %v162 = vld [vmem:[%s2 + $0x440] sm:$0xff]
  %v163 = vld [vmem:[%s2 + $0x448] sm:$0xff]
  %v164 = vld [vmem:[%s2 + $0x450] sm:$0xff]
  %v165 = vld [vmem:[%s2 + $0x458] sm:$0xff]
  %v166 = vld [vmem:[%s2 + $0x460] sm:$0xff]
  %v167 = vld [vmem:[%s2 + $0x468] sm:$0xff]
  %v168 = vld [vmem:[%s2 + $0x470] sm:$0xff]
  %v169 = vld [vmem:[%s2 + $0x478] sm:$0xff]
  %v170 = vld [vmem:[%s2 + $0x480] sm:$0xff]
  %v171 = vld [vmem:[%s2 + $0x488] sm:$0xff]
  %v172 = vld [vmem:[%s2 + $0x490] sm:$0xff]
  %v173 = vld [vmem:[%s2 + $0x498] sm:$0xff]
  %v174 = vld [vmem:[%s2 + $0x4a0] sm:$0xff]
  %v175 = vld [vmem:[%s2 + $0x4a8] sm:$0xff]
  %v176 = vld [vmem:[%s2 + $0x4b0] sm:$0xff]
  %v177 = vld [vmem:[%s2 + $0x4b8] sm:$0xff]
  %v178 = vld [vmem:[%s2 + $0x4c0] sm:$0xff]
  %v179 = vld [vmem:[%s2 + $0x4c8] sm:$0xff]
  %v180 = vld [vmem:[%s2 + $0x4d0] sm:$0xff]
  %v181 = vld [vmem:[%s2 + $0x4d8] sm:$0xff]
  %v182 = vld [vmem:[%s2 + $0x4e0] sm:$0xff]
  %v183 = vld [vmem:[%s2 + $0x4e8] sm:$0xff]
  %v184 = vld [vmem:[%s2 + $0x4f0] sm:$0xff]
  %v185 = vld [vmem:[%s2 + $0x4f8] sm:$0xff]
  %v186 = vld [vmem:[%s2 + $0x500] sm:$0xff]
  %v187 = vld [vmem:[%s2 + $0x508] sm:$0xff]
  %v188 = vld [vmem:[%s2 + $0x510] sm:$0xff]
  %v189 = vld [vmem:[%s2 + $0x518] sm:$0xff]
  %v190 = vld [vmem:[%s2 + $0x520] sm:$0xff]
  %v191 = vld [vmem:[%s2 + $0x528] sm:$0xff]
  %v192 = vld [vmem:[%s2 + $0x530] sm:$0xff]
  %v193 = vld [vmem:[%s2 + $0x538] sm:$0xff]
  %v194 = vld [vmem:[%s2 + $0x540] sm:$0xff]
  %v195 = vld [vmem:[%s2 + $0x548] sm:$0xff]
  %v196 = vld [vmem:[%s2 + $0x550] sm:$0xff]
  %v197 = vld [vmem:[%s2 + $0x558] sm:$0xff]
  %v198 = vld [vmem:[%s2 + $0x560] sm:$0xff]
  %v199 = vld [vmem:[%s2 + $0x568] sm:$0xff]
  %v200 = vld [vmem:[%s2 + $0x570] sm:$0xff]
  %v201 = vld [vmem:[%s2 + $0x578] sm:$0xff]
  %v202 = vld [vmem:[%s2 + $0x580] sm:$0xff]
  %v203 = vld [vmem:[%s2 + $0x588] sm:$0xff]
  %v204 = vld [vmem:[%s2 + $0x590] sm:$0xff]
  %v205 = vld [vmem:[%s2 + $0x598] sm:$0xff]
  %v206 = vld [vmem:[%s2 + $0x5a0] sm:$0xff]
  %v207 = vld [vmem:[%s2 + $0x5a8] sm:$0xff]
  %v208 = vld [vmem:[%s2 + $0x5b0] sm:$0xff]
  %v209 = vld [vmem:[%s2 + $0x5b8] sm:$0xff]
  %v210 = vld [vmem:[%s2 + $0x5c0] sm:$0xff]
  %v211 = vld [vmem:[%s2 + $0x5c8] sm:$0xff]
  %v212 = vld [vmem:[%s2 + $0x5d0] sm:$0xff]
  %v213 = vld [vmem:[%s2 + $0x5d8] sm:$0xff]
  %v214 = vld [vmem:[%s2 + $0x5e0] sm:$0xff]
  %v215 = vld [vmem:[%s2 + $0x5e8] sm:$0xff]
  %v216 = vld [vmem:[%s2 + $0x5f0] sm:$0xff]
  %v217 = vld [vmem:[%s2 + $0x5f8] sm:$0xff]
  %v218 = vld [vmem:[%s2 + $0x600] sm:$0xff]
  %v219 = vld [vmem:[%s2 + $0x608] sm:$0xff]
  %v220 = vld [vmem:[%s2 + $0x610] sm:$0xff]
  %v221 = vld [vmem:[%s2 + $0x618] sm:$0xff]
  %v222 = vld [vmem:[%s2 + $0x620] sm:$0xff]
  %v223 = vld [vmem:[%s2 + $0x628] sm:$0xff]
  %v224 = vld [vmem:[%s2 + $0x630] sm:$0xff]
  %v225 = vld [vmem:[%s2 + $0x638] sm:$0xff]
  %v226 = vld [vmem:[%s2 + $0x640] sm:$0xff]
  %v227 = vld [vmem:[%s2 + $0x648] sm:$0xff]
  %v228 = vld [vmem:[%s2 + $0x650] sm:$0xff]
  %v229 = vld [vmem:[%s2 + $0x658] sm:$0xff]
  %v230 = vld [vmem:[%s2 + $0x660] sm:$0xff]
  %v231 = vld [vmem:[%s2 + $0x668] sm:$0xff]
  %v232 = vld [vmem:[%s2 + $0x670] sm:$0xff]
  %v233 = vld [vmem:[%s2 + $0x678] sm:$0xff]
  %v234 = vld [vmem:[%s2 + $0x680] sm:$0xff]
  %v235 = vld [vmem:[%s2 + $0x688] sm:$0xff]
  %v236 = vld [vmem:[%s2 + $0x690] sm:$0xff]
  %v237 = vld [vmem:[%s2 + $0x698] sm:$0xff]
  %v238 = vld [vmem:[%s2 + $0x6a0] sm:$0xff]
  %v239 = vld [vmem:[%s2 + $0x6a8] sm:$0xff]
  %v240 = vld [vmem:[%s2 + $0x6b0] sm:$0xff]
  %v241 = vld [vmem:[%s2 + $0x6b8] sm:$0xff]
  %v242 = vld [vmem:[%s2 + $0x6c0] sm:$0xff]
  %v243 = vld [vmem:[%s2 + $0x6c8] sm:$0xff]
  %v244 = vld [vmem:[%s2 + $0x6d0] sm:$0xff]
  %v245 = vld [vmem:[%s2 + $0x6d8] sm:$0xff]
  %v246 = vld [vmem:[%s2 + $0x6e0] sm:$0xff]
  %v247 = vld [vmem:[%s2 + $0x6e8] sm:$0xff]
  %v248 = vld [vmem:[%s2 + $0x6f0] sm:$0xff]
  %v249 = vld [vmem:[%s2 + $0x6f8] sm:$0xff]
  %v250 = vld [vmem:[%s2 + $0x700] sm:$0xff]
  %v251 = vld [vmem:[%s2 + $0x708] sm:$0xff]
  %v252 = vld [vmem:[%s2 + $0x710] sm:$0xff]
  %v253 = vld [vmem:[%s2 + $0x718] sm:$0xff]
  %v254 = vld [vmem:[%s2 + $0x720] sm:$0xff]
  %v255 = vld [vmem:[%s2 + $0x728] sm:$0xff]
  %v256 = vld [vmem:[%s2 + $0x730] sm:$0xff]
  %v257 = vld [vmem:[%s2 + $0x738] sm:$0xff]
  %v258 = vld [vmem:[%s2 + $0x740] sm:$0xff]
  %v259 = vld [vmem:[%s2 + $0x748] sm:$0xff]
  %v260 = vld [vmem:[%s2 + $0x750] sm:$0xff]
  %v261 = vld [vmem:[%s2 + $0x758] sm:$0xff]
  %v262 = vld [vmem:[%s2 + $0x760] sm:$0xff]
  %v263 = vld [vmem:[%s2 + $0x768] sm:$0xff]
  %v264 = vld [vmem:[%s2 + $0x770] sm:$0xff]
  %v265 = vld [vmem:[%s2 + $0x778] sm:$0xff]
  %v266 = vld [vmem:[%s2 + $0x780] sm:$0xff]
  %v267 = vld [vmem:[%s2 + $0x788] sm:$0xff]
  %v268 = vld [vmem:[%s2 + $0x790] sm:$0xff]
  %v269 = vld [vmem:[%s2 + $0x798] sm:$0xff]
  %v270 = vld [vmem:[%s2 + $0x7a0] sm:$0xff]
  %v271 = vld [vmem:[%s2 + $0x7a8] sm:$0xff]
  %v272 = vld [vmem:[%s2 + $0x7b0] sm:$0xff]
  %v273 = vld [vmem:[%s2 + $0x7b8] sm:$0xff]
  %v274 = vld [vmem:[%s2 + $0x7c0] sm:$0xff]
  %v275 = vld [vmem:[%s2 + $0x7c8] sm:$0xff]
  %v276 = vld [vmem:[%s2 + $0x7d0] sm:$0xff]
  %v277 = vld [vmem:[%s2 + $0x7d8] sm:$0xff]
  %v278 = vld [vmem:[%s2 + $0x7e0] sm:$0xff]
  %v279 = vld [vmem:[%s2 + $0x7e8] sm:$0xff]
  %v280 = vld [vmem:[%s2 + $0x7f0] sm:$0xff]
  %v281 = vld [vmem:[%s2 + $0x7f8] sm:$0xff]
  %v282 = vld [vmem:[%s2 + $0x800] sm:$0xff]
  %v283 = vld [vmem:[%s2 + $0x808] sm:$0xff]
  %v284 = vld [vmem:[%s2 + $0x810] sm:$0xff]
  %v285 = vld [vmem:[%s2 + $0x818] sm:$0xff]
  %v286 = vld [vmem:[%s2 + $0x820] sm:$0xff]
  %v287 = vld [vmem:[%s2 + $0x828] sm:$0xff]
  %v288 = vld [vmem:[%s2 + $0x830] sm:$0xff]
  %v289 = vld [vmem:[%s2 + $0x838] sm:$0xff]
  %v290 = vld [vmem:[%s2 + $0x840] sm:$0xff]
  %v291 = vld [vmem:[%s2 + $0x848] sm:$0xff]
  %v292 = vld [vmem:[%s2 + $0x850] sm:$0xff]
  %v293 = vld [vmem:[%s2 + $0x858] sm:$0xff]
  %v294 = vld [vmem:[%s2 + $0x860] sm:$0xff]
  %v295 = vld [vmem:[%s2 + $0x868] sm:$0xff]
  %v296 = vld [vmem:[%s2 + $0x870] sm:$0xff]
  %v297 = vld [vmem:[%s2 + $0x878] sm:$0xff]
  %v298 = vld [vmem:[%s2 + $0x880] sm:$0xff]
  %v299 = vld [vmem:[%s2 + $0x888] sm:$0xff]
  %v300 = vld [vmem:[%s2 + $0x890] sm:$0xff]
  %v301 = vld [vmem:[%s2 + $0x898] sm:$0xff]
  %v302 = vld [vmem:[%s2 + $0x8a0] sm:$0xff]
  %v303 = vld [vmem:[%s2 + $0x8a8] sm:$0xff]
  %v304 = vld [vmem:[%s2 + $0x8b0] sm:$0xff]
  %v305 = vld [vmem:[%s2 + $0x8b8] sm:$0xff]
  %v306 = vld [vmem:[%s2 + $0x8c0] sm:$0xff]
  %v307 = vld [vmem:[%s2 + $0x8c8] sm:$0xff]
  %v308 = vld [vmem:[%s2 + $0x8d0] sm:$0xff]
  %v309 = vld [vmem:[%s2 + $0x8d8] sm:$0xff]
  %v310 = vld [vmem:[%s2 + $0x8e0] sm:$0xff]
  %v311 = vld [vmem:[%s2 + $0x8e8] sm:$0xff]
  %v312 = vld [vmem:[%s2 + $0x8f0] sm:$0xff]
  %v313 = vld [vmem:[%s2 + $0x8f8] sm:$0xff]
  %v314 = vld [vmem:[%s2 + $0x900] sm:$0xff]
  %v315 = vld [vmem:[%s2 + $0x908] sm:$0xff]
  %v316 = vld [vmem:[%s2 + $0x910] sm:$0xff]
  %v317 = vld [vmem:[%s2 + $0x918] sm:$0xff]
  %v318 = vld [vmem:[%s2 + $0x920] sm:$0xff]
  %v319 = vld [vmem:[%s2 + $0x928] sm:$0xff]
  %v320 = vld [vmem:[%s2 + $0x930] sm:$0xff]
  %v321 = vld [vmem:[%s2 + $0x938] sm:$0xff]
  %v322 = vld [vmem:[%s2 + $0x940] sm:$0xff]
  %v323 = vld [vmem:[%s2 + $0x948] sm:$0xff]
  %v324 = vld [vmem:[%s2 + $0x950] sm:$0xff]
  %v325 = vld [vmem:[%s2 + $0x958] sm:$0xff]
  %v326 = vld [vmem:[%s2 + $0x960] sm:$0xff]
  %v327 = vld [vmem:[%s2 + $0x968] sm:$0xff]
  %v328 = vld [vmem:[%s2 + $0x970] sm:$0xff]
  %v329 = vld [vmem:[%s2 + $0x978] sm:$0xff]
  %v330 = vld [vmem:[%s2 + $0x980] sm:$0xff]
  %v331 = vld [vmem:[%s2 + $0x988] sm:$0xff]
  %v332 = vld [vmem:[%s2 + $0x990] sm:$0xff]
  %v333 = vld [vmem:[%s2 + $0x998] sm:$0xff]
  %v334 = vld [vmem:[%s2 + $0x9a0] sm:$0xff]
  %v335 = vld [vmem:[%s2 + $0x9a8] sm:$0xff]
  %v336 = vld [vmem:[%s2 + $0x9b0] sm:$0xff]
  %v337 = vld [vmem:[%s2 + $0x9b8] sm:$0xff]
  %v338 = vld [vmem:[%s2 + $0x9c0] sm:$0xff]
  %v339 = vld [vmem:[%s2 + $0x9c8] sm:$0xff]
  %v340 = vld [vmem:[%s2 + $0x9d0] sm:$0xff]
  %v341 = vld [vmem:[%s2 + $0x9d8] sm:$0xff]
  %v342 = vld [vmem:[%s2 + $0x9e0] sm:$0xff]
  %v343 = vld [vmem:[%s2 + $0x9e8] sm:$0xff]
  %v344 = vld [vmem:[%s2 + $0x9f0] sm:$0xff]
  %v345 = vld [vmem:[%s2 + $0x9f8] sm:$0xff]
  %v346 = vld [vmem:[%s2 + $0xa00] sm:$0xff]
  %v347 = vld [vmem:[%s2 + $0xa08] sm:$0xff]
  %v348 = vld [vmem:[%s2 + $0xa10] sm:$0xff]
  %v349 = vld [vmem:[%s2 + $0xa18] sm:$0xff]
  %v350 = vld [vmem:[%s2 + $0xa20] sm:$0xff]
  %v351 = vld [vmem:[%s2 + $0xa28] sm:$0xff]
  %v352 = vld [vmem:[%s2 + $0xa30] sm:$0xff]
  %v353 = vld [vmem:[%s2 + $0xa38] sm:$0xff]
  %v354 = vld [vmem:[%s2 + $0xa40] sm:$0xff]
  %v355 = vld [vmem:[%s2 + $0xa48] sm:$0xff]
  %v356 = vld [vmem:[%s2 + $0xa50] sm:$0xff]
  %v357 = vld [vmem:[%s2 + $0xa58] sm:$0xff]
  %v358 = vld [vmem:[%s2 + $0xa60] sm:$0xff]
  %v359 = vld [vmem:[%s2 + $0xa68] sm:$0xff]
  %v360 = vld [vmem:[%s2 + $0xa70] sm:$0xff]
  %v361 = vld [vmem:[%s2 + $0xa78] sm:$0xff]
  %v362 = vld [vmem:[%s2 + $0xa80] sm:$0xff]
  %v363 = vld [vmem:[%s2 + $0xa88] sm:$0xff]
  %v364 = vld [vmem:[%s2 + $0xa90] sm:$0xff]
  %v365 = vld [vmem:[%s2 + $0xa98] sm:$0xff]
  %v366 = vld [vmem:[%s2 + $0xaa0] sm:$0xff]
  %v367 = vld [vmem:[%s2 + $0xaa8] sm:$0xff]
  %v368 = vld [vmem:[%s2 + $0xab0] sm:$0xff]
  %v369 = vld [vmem:[%s2 + $0xab8] sm:$0xff]
  %v370 = vld [vmem:[%s2 + $0xac0] sm:$0xff]
  %v371 = vld [vmem:[%s2 + $0xac8] sm:$0xff]
  %v372 = vld [vmem:[%s2 + $0xad0] sm:$0xff]
  %v373 = vld [vmem:[%s2 + $0xad8] sm:$0xff]
  %v374 = vld [vmem:[%s2 + $0xae0] sm:$0xff]
  %v375 = vld [vmem:[%s2 + $0xae8] sm:$0xff]
  %v376 = vld [vmem:[%s2 + $0xaf0] sm:$0xff]
  %v377 = vld [vmem:[%s2 + $0xaf8] sm:$0xff]
  %v378 = vld [vmem:[%s2 + $0xb00] sm:$0xff]
  %v379 = vld [vmem:[%s2 + $0xb08] sm:$0xff]
  %v380 = vld [vmem:[%s2 + $0xb10] sm:$0xff]
  %v381 = vld [vmem:[%s2 + $0xb18] sm:$0xff]
  %v382 = vld [vmem:[%s2 + $0xb20] sm:$0xff]
  %v383 = vld [vmem:[%s2 + $0xb28] sm:$0xff]
  %v384 = vld [vmem:[%s2 + $0xb30] sm:$0xff]
  %v385 = vld [vmem:[%s2 + $0xb38] sm:$0xff]
  %v386 = vld [vmem:[%s2 + $0xb40] sm:$0xff]
  %v387 = vld [vmem:[%s2 + $0xb48] sm:$0xff]
  %v388 = vld [vmem:[%s2 + $0xb50] sm:$0xff]
  %v389 = vld [vmem:[%s2 + $0xb58] sm:$0xff]
  %v390 = vld [vmem:[%s2 + $0xb60] sm:$0xff]
  %v391 = vld [vmem:[%s2 + $0xb68] sm:$0xff]
  %v392 = vld [vmem:[%s2 + $0xb70] sm:$0xff]
  %v393 = vld [vmem:[%s2 + $0xb78] sm:$0xff]
  %v394 = vld [vmem:[%s2 + $0xb80] sm:$0xff]
  %v395 = vld [vmem:[%s2 + $0xb88] sm:$0xff]
  %v396 = vld [vmem:[%s2 + $0xb90] sm:$0xff]
  %v397 = vld [vmem:[%s2 + $0xb98] sm:$0xff]
  %v398 = vld [vmem:[%s2 + $0xba0] sm:$0xff]
  %v399 = vld [vmem:[%s2 + $0xba8] sm:$0xff]
  %v400 = vld [vmem:[%s2 + $0xbb0] sm:$0xff]
  %v401 = vld [vmem:[%s2 + $0xbb8] sm:$0xff]
  %v402 = vld [vmem:[%s2 + $0xbc0] sm:$0xff]
  %v403 = vld [vmem:[%s2 + $0xbc8] sm:$0xff]
  %v404 = vld [vmem:[%s2 + $0xbd0] sm:$0xff]
  %v405 = vld [vmem:[%s2 + $0xbd8] sm:$0xff]
  %v406 = vld [vmem:[%s2 + $0xbe0] sm:$0xff]
  %v407 = vld [vmem:[%s2 + $0xbe8] sm:$0xff]
  %v408 = vld [vmem:[%s2 + $0xbf0] sm:$0xff]
  %v409 = vld [vmem:[%s2 + $0xbf8] sm:$0xff]
  %v410 = vld [vmem:[%s2 + $0xc00] sm:$0x1]
  %v411 = vlaneseq
  %v412 = vshrl.u32 %v411, 7
  %v413 = vsub.s32 0, %v412
  %v414 = vrot.slane %v410, %v413
  %v421 = vcombine.high %v20, %v20
  %v423 = vunpack.c.l.s4 1983009808
  %v424 = vunpack.c.0.s8 %v423
  %v425 = vlaneseq
  %v426 = vshrl.u32 %v425, 7
  %v427 = vsub.s32 %v424, %v426
  %v428 = vrot.slane %v20, %v427
  %v430 = vunpack.c.l.s4 1983009808
  %v431 = vunpack.c.0.s8 %v430
  %v432 = vlaneseq
  %v433 = vshrl.u32 %v432, 7
  %v434 = vsub.s32 %v431, %v433
  %v435 = vrot.slane %v421, %v434
  %v436 = vcombine.high %v428, %v428
  %v437 = vcombine.high %v435, %v435
  %v438 = vcombine.high %v21, %v21
  %v440 = vunpack.c.l.s4 1983009808
  %v441 = vunpack.c.0.s8 %v440
  %v442 = vlaneseq
  %v443 = vshrl.u32 %v442, 7
  %v444 = vsub.s32 %v441, %v443
  %v445 = vrot.slane %v21, %v444
  %v447 = vunpack.c.l.s4 1983009808
  %v448 = vunpack.c.0.s8 %v447
  %v449 = vlaneseq
  %v450 = vshrl.u32 %v449, 7
  %v451 = vsub.s32 %v448, %v450
  %v452 = vrot.slane %v438, %v451
  %v453 = vcombine.high %v445, %v445
  %v454 = vcombine.high %v452, %v452
  %v455 = vcombine.high %v22, %v22
  %v457 = vunpack.c.l.s4 1983009808
  %v458 = vunpack.c.0.s8 %v457
  %v459 = vlaneseq
  %v460 = vshrl.u32 %v459, 7
  %v461 = vsub.s32 %v458, %v460
  %v462 = vrot.slane %v22, %v461
  %v464 = vunpack.c.l.s4 1983009808
  %v465 = vunpack.c.0.s8 %v464
  %v466 = vlaneseq
  %v467 = vshrl.u32 %v466, 7
  %v468 = vsub.s32 %v465, %v467
  %v469 = vrot.slane %v455, %v468
  %v470 = vcombine.high %v462, %v462
  %v471 = vcombine.high %v469, %v469
  %v472 = vcombine.high %v23, %v23
  %v474 = vunpack.c.l.s4 1983009808
  %v475 = vunpack.c.0.s8 %v474
  %v476 = vlaneseq
  %v477 = vshrl.u32 %v476, 7
  %v478 = vsub.s32 %v475, %v477
  %v479 = vrot.slane %v23, %v478
  %v481 = vunpack.c.l.s4 1983009808
  %v482 = vunpack.c.0.s8 %v481
  %v483 = vlaneseq
  %v484 = vshrl.u32 %v483, 7
  %v485 = vsub.s32 %v482, %v484
  %v486 = vrot.slane %v472, %v485
  %v487 = vcombine.high %v479, %v479
  %v488 = vcombine.high %v486, %v486
  %v489 = vcombine.high %v24, %v24
  %v491 = vunpack.c.l.s4 1983009808
  %v492 = vunpack.c.0.s8 %v491
  %v493 = vlaneseq
  %v494 = vshrl.u32 %v493, 7
  %v495 = vsub.s32 %v492, %v494
  %v496 = vrot.slane %v24, %v495
  %v498 = vunpack.c.l.s4 1983009808
  %v499 = vunpack.c.0.s8 %v498
  %v500 = vlaneseq
  %v501 = vshrl.u32 %v500, 7
  %v502 = vsub.s32 %v499, %v501
  %v503 = vrot.slane %v489, %v502
  %v504 = vcombine.high %v496, %v496
  %v505 = vcombine.high %v503, %v503
  %v506 = vcombine.high %v25, %v25
  %v508 = vunpack.c.l.s4 1983009808
  %v509 = vunpack.c.0.s8 %v508
  %v510 = vlaneseq
  %v511 = vshrl.u32 %v510, 7
  %v512 = vsub.s32 %v509, %v511
  %v513 = vrot.slane %v25, %v512
  %v515 = vunpack.c.l.s4 1983009808
  %v516 = vunpack.c.0.s8 %v515
  %v517 = vlaneseq
  %v518 = vshrl.u32 %v517, 7
  %v519 = vsub.s32 %v516, %v518
  %v520 = vrot.slane %v506, %v519
  %v521 = vcombine.high %v513, %v513
  %v522 = vcombine.high %v520, %v520
  %547 = vmatprep.subr.mxu0 0.0
  %548 = vmatpush1.msra.mxu0 %v41
  %549 = vmatprep.subr.mxu0 0.0
  %550 = vmatpush1.msra.mxu0 %v40
  %551 = vmatprep.subr.mxu0 0.0
  %552 = vmatpush1.msra.mxu0 %v39
  %553 = vmatprep.subr.mxu0 0.0
  %554 = vmatpush1.msra.mxu0 %v38
  %555 = vmatprep.subr.mxu0 0.0
  %556 = vmatpush1.msra.mxu0 %v37
  %557 = vmatprep.subr.mxu0 0.0
  %558 = vmatpush1.msra.mxu0 %v36
  %559 = vmatprep.subr.mxu0 0.0
  %560 = vmatpush1.msra.mxu0 %v35
  %561 = vmatprep.subr.mxu0 0.0
  %562 = vmatpush1.msra.mxu0 %v34
  %563 = vmatprep.subr.mxu0 0.0
  %564 = vmatpush1.msra.mxu0 %v33
  %565 = vmatprep.subr.mxu0 0.0
  %566 = vmatpush1.msra.mxu0 %v32
  %567 = vmatprep.subr.mxu0 0.0
  %568 = vmatpush1.msra.mxu0 %v31
  %569 = vmatprep.subr.mxu0 0.0
  %570 = vmatpush1.msra.mxu0 %v30
  %571 = vmatprep.subr.mxu0 0.0
  %572 = vmatpush1.msra.mxu0 %v29
  %573 = vmatprep.subr.mxu0 0.0
  %574 = vmatpush1.msra.mxu0 %v28
  %575 = vmatprep.subr.mxu0 0.0
  %576 = vmatpush1.msra.mxu0 %v27
  %577 = vmatprep.subr.mxu0 0.0
  %578 = vmatpush1.msra.mxu0 %v26
  %579 = vmatprep.subr.mxu0 0.0
  %580 = vmatpush2.msra.mxu0 %v57
  %581 = vmatprep.subr.mxu0 0.0
  %582 = vmatpush2.msra.mxu0 %v56
  %583 = vmatprep.subr.mxu0 0.0
  %584 = vmatpush2.msra.mxu0 %v55
  %585 = vmatprep.subr.mxu0 0.0
  %586 = vmatpush2.msra.mxu0 %v54
  %587 = vmatprep.subr.mxu0 0.0
  %588 = vmatpush2.msra.mxu0 %v53
  %589 = vmatprep.subr.mxu0 0.0
  %590 = vmatpush2.msra.mxu0 %v52
  %591 = vmatprep.subr.mxu0 0.0
  %592 = vmatpush2.msra.mxu0 %v51
  %593 = vmatprep.subr.mxu0 0.0
  %594 = vmatpush2.msra.mxu0 %v50
  %595 = vmatprep.subr.mxu0 0.0
  %596 = vmatpush2.msra.mxu0 %v49
  %597 = vmatprep.subr.mxu0 0.0
  %598 = vmatpush2.msra.mxu0 %v48
  %599 = vmatprep.subr.mxu0 0.0
  %600 = vmatpush2.msra.mxu0 %v47
  %601 = vmatprep.subr.mxu0 0.0
  %602 = vmatpush2.msra.mxu0 %v46
  %603 = vmatprep.subr.mxu0 0.0
  %604 = vmatpush2.msra.mxu0 %v45
  %605 = vmatprep.subr.mxu0 0.0
  %606 = vmatpush2.msra.mxu0 %v44
  %607 = vmatprep.subr.mxu0 0.0
  %608 = vmatpush2.msra.mxu0 %v43
  %609 = vmatprep.subr.mxu0 0.0
  %610 = vmatpush2.msra.mxu0 %v42
  %611 = vmatprep.mubr.f32.mxu0 %v436
  %612 = vmatmul.mubr.f32.gmra.mxu0 %v428
  %v613 = vpop.f32.mrf.mxu0
  %v614 = vadd.f32 %v414, %v613
  %v615 = vpop.f32.mrf.mxu0
  %616 = vdwg.mxu0
  %617 = vmatprep.subr.mxu0 0.0
  %618 = vmatpush1.msra.mxu0 %v73
  %619 = vmatprep.subr.mxu0 0.0
  %620 = vmatpush1.msra.mxu0 %v72
  %621 = vmatprep.subr.mxu0 0.0
  %622 = vmatpush1.msra.mxu0 %v71
  %623 = vmatprep.subr.mxu0 0.0
  %624 = vmatpush1.msra.mxu0 %v70
  %625 = vmatprep.subr.mxu0 0.0
  %626 = vmatpush1.msra.mxu0 %v69
  %627 = vmatprep.subr.mxu0 0.0
  %628 = vmatpush1.msra.mxu0 %v68
  %629 = vmatprep.subr.mxu0 0.0
  %630 = vmatpush1.msra.mxu0 %v67
  %631 = vmatprep.subr.mxu0 0.0
  %632 = vmatpush1.msra.mxu0 %v66
  %633 = vmatprep.subr.mxu0 0.0
  %634 = vmatpush1.msra.mxu0 %v65
  %635 = vmatprep.subr.mxu0 0.0
  %636 = vmatpush1.msra.mxu0 %v64
  %637 = vmatprep.subr.mxu0 0.0
  %638 = vmatpush1.msra.mxu0 %v63
  %639 = vmatprep.subr.mxu0 0.0
  %640 = vmatpush1.msra.mxu0 %v62
  %641 = vmatprep.subr.mxu0 0.0
  %642 = vmatpush1.msra.mxu0 %v61
  %643 = vmatprep.subr.mxu0 0.0
  %644 = vmatpush1.msra.mxu0 %v60
  %645 = vmatprep.subr.mxu0 0.0
  %646 = vmatpush1.msra.mxu0 %v59
  %647 = vmatprep.subr.mxu0 0.0
  %648 = vmatpush1.msra.mxu0 %v58
  %649 = vmatprep.subr.mxu0 0.0
  %650 = vmatpush2.msra.mxu0 %v89
  %651 = vmatprep.subr.mxu0 0.0
  %652 = vmatpush2.msra.mxu0 %v88
  %653 = vmatprep.subr.mxu0 0.0
  %654 = vmatpush2.msra.mxu0 %v87
  %655 = vmatprep.subr.mxu0 0.0
  %656 = vmatpush2.msra.mxu0 %v86
  %657 = vmatprep.subr.mxu0 0.0
  %658 = vmatpush2.msra.mxu0 %v85
  %659 = vmatprep.subr.mxu0 0.0
  %660 = vmatpush2.msra.mxu0 %v84
  %661 = vmatprep.subr.mxu0 0.0
  %662 = vmatpush2.msra.mxu0 %v83
  %663 = vmatprep.subr.mxu0 0.0
  %664 = vmatpush2.msra.mxu0 %v82
  %665 = vmatprep.subr.mxu0 0.0
  %666 = vmatpush2.msra.mxu0 %v81
  %667 = vmatprep.subr.mxu0 0.0
  %668 = vmatpush2.msra.mxu0 %v80
  %669 = vmatprep.subr.mxu0 0.0
  %670 = vmatpush2.msra.mxu0 %v79
  %671 = vmatprep.subr.mxu0 0.0
  %672 = vmatpush2.msra.mxu0 %v78
  %673 = vmatprep.subr.mxu0 0.0
  %674 = vmatpush2.msra.mxu0 %v77
  %675 = vmatprep.subr.mxu0 0.0
  %676 = vmatpush2.msra.mxu0 %v76
  %677 = vmatprep.subr.mxu0 0.0
  %678 = vmatpush2.msra.mxu0 %v75
  %679 = vmatprep.subr.mxu0 0.0
  %680 = vmatpush2.msra.mxu0 %v74
  %681 = vmatprep.mubr.f32.mxu0 %v437
  %682 = vmatmul.mubr.f32.gmra.mxu0 %v435
  %v683 = vpop.f32.mrf.mxu0
  %v684 = vadd.f32 %v614, %v683
  %v685 = vpop.f32.mrf.mxu0
  %686 = vdwg.mxu0
  %687 = vmatprep.subr.mxu0 0.0
  %688 = vmatpush1.msra.mxu0 %v105
  %689 = vmatprep.subr.mxu0 0.0
  %690 = vmatpush1.msra.mxu0 %v104
  %691 = vmatprep.subr.mxu0 0.0
  %692 = vmatpush1.msra.mxu0 %v103
  %693 = vmatprep.subr.mxu0 0.0
  %694 = vmatpush1.msra.mxu0 %v102
  %695 = vmatprep.subr.mxu0 0.0
  %696 = vmatpush1.msra.mxu0 %v101
  %697 = vmatprep.subr.mxu0 0.0
  %698 = vmatpush1.msra.mxu0 %v100
  %699 = vmatprep.subr.mxu0 0.0
  %700 = vmatpush1.msra.mxu0 %v99
  %701 = vmatprep.subr.mxu0 0.0
  %702 = vmatpush1.msra.mxu0 %v98
  %703 = vmatprep.subr.mxu0 0.0
  %704 = vmatpush1.msra.mxu0 %v97
  %705 = vmatprep.subr.mxu0 0.0
  %706 = vmatpush1.msra.mxu0 %v96
  %707 = vmatprep.subr.mxu0 0.0
  %708 = vmatpush1.msra.mxu0 %v95
  %709 = vmatprep.subr.mxu0 0.0
  %710 = vmatpush1.msra.mxu0 %v94
  %711 = vmatprep.subr.mxu0 0.0
  %712 = vmatpush1.msra.mxu0 %v93
  %713 = vmatprep.subr.mxu0 0.0
  %714 = vmatpush1.msra.mxu0 %v92
  %715 = vmatprep.subr.mxu0 0.0
  %716 = vmatpush1.msra.mxu0 %v91
  %717 = vmatprep.subr.mxu0 0.0
  %718 = vmatpush1.msra.mxu0 %v90
  %719 = vmatprep.subr.mxu0 0.0
  %720 = vmatpush2.msra.mxu0 %v121
  %721 = vmatprep.subr.mxu0 0.0
  %722 = vmatpush2.msra.mxu0 %v120
  %723 = vmatprep.subr.mxu0 0.0
  %724 = vmatpush2.msra.mxu0 %v119
  %725 = vmatprep.subr.mxu0 0.0
  %726 = vmatpush2.msra.mxu0 %v118
  %727 = vmatprep.subr.mxu0 0.0
  %728 = vmatpush2.msra.mxu0 %v117
  %729 = vmatprep.subr.mxu0 0.0
  %730 = vmatpush2.msra.mxu0 %v116
  %731 = vmatprep.subr.mxu0 0.0
  %732 = vmatpush2.msra.mxu0 %v115
  %733 = vmatprep.subr.mxu0 0.0
  %734 = vmatpush2.msra.mxu0 %v114
  %735 = vmatprep.subr.mxu0 0.0
  %736 = vmatpush2.msra.mxu0 %v113
  %737 = vmatprep.subr.mxu0 0.0
  %738 = vmatpush2.msra.mxu0 %v112
  %739 = vmatprep.subr.mxu0 0.0
  %740 = vmatpush2.msra.mxu0 %v111
  %741 = vmatprep.subr.mxu0 0.0
  %742 = vmatpush2.msra.mxu0 %v110
  %743 = vmatprep.subr.mxu0 0.0
  %744 = vmatpush2.msra.mxu0 %v109
  %745 = vmatprep.subr.mxu0 0.0
  %746 = vmatpush2.msra.mxu0 %v108
  %747 = vmatprep.subr.mxu0 0.0
  %748 = vmatpush2.msra.mxu0 %v107
  %749 = vmatprep.subr.mxu0 0.0
  %750 = vmatpush2.msra.mxu0 %v106
  %751 = vmatprep.mubr.f32.mxu0 %v453
  %752 = vmatmul.mubr.f32.gmra.mxu0 %v445
  %v753 = vpop.f32.mrf.mxu0
  %v754 = vadd.f32 %v684, %v753
  %v755 = vpop.f32.mrf.mxu0
  %756 = vdwg.mxu0
  %757 = vmatprep.subr.mxu0 0.0
  %758 = vmatpush1.msra.mxu0 %v137
  %759 = vmatprep.subr.mxu0 0.0
  %760 = vmatpush1.msra.mxu0 %v136
  %761 = vmatprep.subr.mxu0 0.0
  %762 = vmatpush1.msra.mxu0 %v135
  %763 = vmatprep.subr.mxu0 0.0
  %764 = vmatpush1.msra.mxu0 %v134
  %765 = vmatprep.subr.mxu0 0.0
  %766 = vmatpush1.msra.mxu0 %v133
  %767 = vmatprep.subr.mxu0 0.0
  %768 = vmatpush1.msra.mxu0 %v132
  %769 = vmatprep.subr.mxu0 0.0
  %770 = vmatpush1.msra.mxu0 %v131
  %771 = vmatprep.subr.mxu0 0.0
  %772 = vmatpush1.msra.mxu0 %v130
  %773 = vmatprep.subr.mxu0 0.0
  %774 = vmatpush1.msra.mxu0 %v129
  %775 = vmatprep.subr.mxu0 0.0
  %776 = vmatpush1.msra.mxu0 %v128
  %777 = vmatprep.subr.mxu0 0.0
  %778 = vmatpush1.msra.mxu0 %v127
  %779 = vmatprep.subr.mxu0 0.0
  %780 = vmatpush1.msra.mxu0 %v126
  %781 = vmatprep.subr.mxu0 0.0
  %782 = vmatpush1.msra.mxu0 %v125
  %783 = vmatprep.subr.mxu0 0.0
  %784 = vmatpush1.msra.mxu0 %v124
  %785 = vmatprep.subr.mxu0 0.0
  %786 = vmatpush1.msra.mxu0 %v123
  %787 = vmatprep.subr.mxu0 0.0
  %788 = vmatpush1.msra.mxu0 %v122
  %789 = vmatprep.subr.mxu0 0.0
  %790 = vmatpush2.msra.mxu0 %v153
  %791 = vmatprep.subr.mxu0 0.0
  %792 = vmatpush2.msra.mxu0 %v152
  %793 = vmatprep.subr.mxu0 0.0
  %794 = vmatpush2.msra.mxu0 %v151
  %795 = vmatprep.subr.mxu0 0.0
  %796 = vmatpush2.msra.mxu0 %v150
  %797 = vmatprep.subr.mxu0 0.0
  %798 = vmatpush2.msra.mxu0 %v149
  %799 = vmatprep.subr.mxu0 0.0
  %800 = vmatpush2.msra.mxu0 %v148
  %801 = vmatprep.subr.mxu0 0.0
  %802 = vmatpush2.msra.mxu0 %v147
  %803 = vmatprep.subr.mxu0 0.0
  %804 = vmatpush2.msra.mxu0 %v146
  %805 = vmatprep.subr.mxu0 0.0
  %806 = vmatpush2.msra.mxu0 %v145
  %807 = vmatprep.subr.mxu0 0.0
  %808 = vmatpush2.msra.mxu0 %v144
  %809 = vmatprep.subr.mxu0 0.0
  %810 = vmatpush2.msra.mxu0 %v143
  %811 = vmatprep.subr.mxu0 0.0
  %812 = vmatpush2.msra.mxu0 %v142
  %813 = vmatprep.subr.mxu0 0.0
  %814 = vmatpush2.msra.mxu0 %v141
  %815 = vmatprep.subr.mxu0 0.0
  %816 = vmatpush2.msra.mxu0 %v140
  %817 = vmatprep.subr.mxu0 0.0
  %818 = vmatpush2.msra.mxu0 %v139
  %819 = vmatprep.subr.mxu0 0.0
  %820 = vmatpush2.msra.mxu0 %v138
  %821 = vmatprep.mubr.f32.mxu0 %v454
  %822 = vmatmul.mubr.f32.gmra.mxu0 %v452
  %v823 = vpop.f32.mrf.mxu0
  %v824 = vadd.f32 %v754, %v823
  %v825 = vpop.f32.mrf.mxu0
  %826 = vdwg.mxu0
  %827 = vmatprep.subr.mxu0 0.0
  %828 = vmatpush1.msra.mxu0 %v169
  %829 = vmatprep.subr.mxu0 0.0
  %830 = vmatpush1.msra.mxu0 %v168
  %831 = vmatprep.subr.mxu0 0.0
  %832 = vmatpush1.msra.mxu0 %v167
  %833 = vmatprep.subr.mxu0 0.0
  %834 = vmatpush1.msra.mxu0 %v166
  %835 = vmatprep.subr.mxu0 0.0
  %836 = vmatpush1.msra.mxu0 %v165
  %837 = vmatprep.subr.mxu0 0.0
  %838 = vmatpush1.msra.mxu0 %v164
  %839 = vmatprep.subr.mxu0 0.0
  %840 = vmatpush1.msra.mxu0 %v163
  %841 = vmatprep.subr.mxu0 0.0
  %842 = vmatpush1.msra.mxu0 %v162
  %843 = vmatprep.subr.mxu0 0.0
  %844 = vmatpush1.msra.mxu0 %v161
  %845 = vmatprep.subr.mxu0 0.0
  %846 = vmatpush1.msra.mxu0 %v160
  %847 = vmatprep.subr.mxu0 0.0
  %848 = vmatpush1.msra.mxu0 %v159
  %849 = vmatprep.subr.mxu0 0.0
  %850 = vmatpush1.msra.mxu0 %v158
  %851 = vmatprep.subr.mxu0 0.0
  %852 = vmatpush1.msra.mxu0 %v157
  %853 = vmatprep.subr.mxu0 0.0
  %854 = vmatpush1.msra.mxu0 %v156
  %855 = vmatprep.subr.mxu0 0.0
  %856 = vmatpush1.msra.mxu0 %v155
  %857 = vmatprep.subr.mxu0 0.0
  %858 = vmatpush1.msra.mxu0 %v154
  %859 = vmatprep.subr.mxu0 0.0
  %860 = vmatpush2.msra.mxu0 %v185
  %861 = vmatprep.subr.mxu0 0.0
  %862 = vmatpush2.msra.mxu0 %v184
  %863 = vmatprep.subr.mxu0 0.0
  %864 = vmatpush2.msra.mxu0 %v183
  %865 = vmatprep.subr.mxu0 0.0
  %866 = vmatpush2.msra.mxu0 %v182
  %867 = vmatprep.subr.mxu0 0.0
  %868 = vmatpush2.msra.mxu0 %v181
  %869 = vmatprep.subr.mxu0 0.0
  %870 = vmatpush2.msra.mxu0 %v180
  %871 = vmatprep.subr.mxu0 0.0
  %872 = vmatpush2.msra.mxu0 %v179
  %873 = vmatprep.subr.mxu0 0.0
  %874 = vmatpush2.msra.mxu0 %v178
  %875 = vmatprep.subr.mxu0 0.0
  %876 = vmatpush2.msra.mxu0 %v177
  %877 = vmatprep.subr.mxu0 0.0
  %878 = vmatpush2.msra.mxu0 %v176
  %879 = vmatprep.subr.mxu0 0.0
  %880 = vmatpush2.msra.mxu0 %v175
  %881 = vmatprep.subr.mxu0 0.0
  %882 = vmatpush2.msra.mxu0 %v174
  %883 = vmatprep.subr.mxu0 0.0
  %884 = vmatpush2.msra.mxu0 %v173
  %885 = vmatprep.subr.mxu0 0.0
  %886 = vmatpush2.msra.mxu0 %v172
  %887 = vmatprep.subr.mxu0 0.0
  %888 = vmatpush2.msra.mxu0 %v171
  %889 = vmatprep.subr.mxu0 0.0
  %890 = vmatpush2.msra.mxu0 %v170
  %891 = vmatprep.mubr.f32.mxu0 %v470
  %892 = vmatmul.mubr.f32.gmra.mxu0 %v462
  %v893 = vpop.f32.mrf.mxu0
  %v894 = vadd.f32 %v824, %v893
  %v895 = vpop.f32.mrf.mxu0
  %896 = vdwg.mxu0
  %897 = vmatprep.subr.mxu0 0.0
  %898 = vmatpush1.msra.mxu0 %v201
  %899 = vmatprep.subr.mxu0 0.0
  %900 = vmatpush1.msra.mxu0 %v200
  %901 = vmatprep.subr.mxu0 0.0
  %902 = vmatpush1.msra.mxu0 %v199
  %903 = vmatprep.subr.mxu0 0.0
  %904 = vmatpush1.msra.mxu0 %v198
  %905 = vmatprep.subr.mxu0 0.0
  %906 = vmatpush1.msra.mxu0 %v197
  %907 = vmatprep.subr.mxu0 0.0
  %908 = vmatpush1.msra.mxu0 %v196
  %909 = vmatprep.subr.mxu0 0.0
  %910 = vmatpush1.msra.mxu0 %v195
  %911 = vmatprep.subr.mxu0 0.0
  %912 = vmatpush1.msra.mxu0 %v194
  %913 = vmatprep.subr.mxu0 0.0
  %914 = vmatpush1.msra.mxu0 %v193
  %915 = vmatprep.subr.mxu0 0.0
  %916 = vmatpush1.msra.mxu0 %v192
  %917 = vmatprep.subr.mxu0 0.0
  %918 = vmatpush1.msra.mxu0 %v191
  %919 = vmatprep.subr.mxu0 0.0
  %920 = vmatpush1.msra.mxu0 %v190
  %921 = vmatprep.subr.mxu0 0.0
  %922 = vmatpush1.msra.mxu0 %v189
  %923 = vmatprep.subr.mxu0 0.0
  %924 = vmatpush1.msra.mxu0 %v188
  %925 = vmatprep.subr.mxu0 0.0
  %926 = vmatpush1.msra.mxu0 %v187
  %927 = vmatprep.subr.mxu0 0.0
  %928 = vmatpush1.msra.mxu0 %v186
  %929 = vmatprep.subr.mxu0 0.0
  %930 = vmatpush2.msra.mxu0 %v217
  %931 = vmatprep.subr.mxu0 0.0
  %932 = vmatpush2.msra.mxu0 %v216
  %933 = vmatprep.subr.mxu0 0.0
  %934 = vmatpush2.msra.mxu0 %v215
  %935 = vmatprep.subr.mxu0 0.0
  %936 = vmatpush2.msra.mxu0 %v214
  %937 = vmatprep.subr.mxu0 0.0
  %938 = vmatpush2.msra.mxu0 %v213
  %939 = vmatprep.subr.mxu0 0.0
  %940 = vmatpush2.msra.mxu0 %v212
  %941 = vmatprep.subr.mxu0 0.0
  %942 = vmatpush2.msra.mxu0 %v211
  %943 = vmatprep.subr.mxu0 0.0
  %944 = vmatpush2.msra.mxu0 %v210
  %945 = vmatprep.subr.mxu0 0.0
  %946 = vmatpush2.msra.mxu0 %v209
  %947 = vmatprep.subr.mxu0 0.0
  %948 = vmatpush2.msra.mxu0 %v208
  %949 = vmatprep.subr.mxu0 0.0
  %950 = vmatpush2.msra.mxu0 %v207
  %951 = vmatprep.subr.mxu0 0.0
  %952 = vmatpush2.msra.mxu0 %v206
  %953 = vmatprep.subr.mxu0 0.0
  %954 = vmatpush2.msra.mxu0 %v205
  %955 = vmatprep.subr.mxu0 0.0
  %956 = vmatpush2.msra.mxu0 %v204
  %957 = vmatprep.subr.mxu0 0.0
  %958 = vmatpush2.msra.mxu0 %v203
  %959 = vmatprep.subr.mxu0 0.0
  %960 = vmatpush2.msra.mxu0 %v202
  %961 = vmatprep.mubr.f32.mxu0 %v471
  %962 = vmatmul.mubr.f32.gmra.mxu0 %v469
  %v963 = vpop.f32.mrf.mxu0
  %v964 = vadd.f32 %v894, %v963
  %v965 = vpop.f32.mrf.mxu0
  %966 = vdwg.mxu0
  %967 = vmatprep.subr.mxu0 0.0
  %968 = vmatpush1.msra.mxu0 %v233
  %969 = vmatprep.subr.mxu0 0.0
  %970 = vmatpush1.msra.mxu0 %v232
  %971 = vmatprep.subr.mxu0 0.0
  %972 = vmatpush1.msra.mxu0 %v231
  %973 = vmatprep.subr.mxu0 0.0
  %974 = vmatpush1.msra.mxu0 %v230
  %975 = vmatprep.subr.mxu0 0.0
  %976 = vmatpush1.msra.mxu0 %v229
  %977 = vmatprep.subr.mxu0 0.0
  %978 = vmatpush1.msra.mxu0 %v228
  %979 = vmatprep.subr.mxu0 0.0
  %980 = vmatpush1.msra.mxu0 %v227
  %981 = vmatprep.subr.mxu0 0.0
  %982 = vmatpush1.msra.mxu0 %v226
  %983 = vmatprep.subr.mxu0 0.0
  %984 = vmatpush1.msra.mxu0 %v225
  %985 = vmatprep.subr.mxu0 0.0
  %986 = vmatpush1.msra.mxu0 %v224
  %987 = vmatprep.subr.mxu0 0.0
  %988 = vmatpush1.msra.mxu0 %v223
  %989 = vmatprep.subr.mxu0 0.0
  %990 = vmatpush1.msra.mxu0 %v222
  %991 = vmatprep.subr.mxu0 0.0
  %992 = vmatpush1.msra.mxu0 %v221
  %993 = vmatprep.subr.mxu0 0.0
  %994 = vmatpush1.msra.mxu0 %v220
  %995 = vmatprep.subr.mxu0 0.0
  %996 = vmatpush1.msra.mxu0 %v219
  %997 = vmatprep.subr.mxu0 0.0
  %998 = vmatpush1.msra.mxu0 %v218
  %999 = vmatprep.subr.mxu0 0.0
  %1000 = vmatpush2.msra.mxu0 %v249
  %1001 = vmatprep.subr.mxu0 0.0
  %1002 = vmatpush2.msra.mxu0 %v248
  %1003 = vmatprep.subr.mxu0 0.0
  %1004 = vmatpush2.msra.mxu0 %v247
  %1005 = vmatprep.subr.mxu0 0.0
  %1006 = vmatpush2.msra.mxu0 %v246
  %1007 = vmatprep.subr.mxu0 0.0
  %1008 = vmatpush2.msra.mxu0 %v245
  %1009 = vmatprep.subr.mxu0 0.0
  %1010 = vmatpush2.msra.mxu0 %v244
  %1011 = vmatprep.subr.mxu0 0.0
  %1012 = vmatpush2.msra.mxu0 %v243
  %1013 = vmatprep.subr.mxu0 0.0
  %1014 = vmatpush2.msra.mxu0 %v242
  %1015 = vmatprep.subr.mxu0 0.0
  %1016 = vmatpush2.msra.mxu0 %v241
  %1017 = vmatprep.subr.mxu0 0.0
  %1018 = vmatpush2.msra.mxu0 %v240
  %1019 = vmatprep.subr.mxu0 0.0
  %1020 = vmatpush2.msra.mxu0 %v239
  %1021 = vmatprep.subr.mxu0 0.0
  %1022 = vmatpush2.msra.mxu0 %v238
  %1023 = vmatprep.subr.mxu0 0.0
  %1024 = vmatpush2.msra.mxu0 %v237
  %1025 = vmatprep.subr.mxu0 0.0
  %1026 = vmatpush2.msra.mxu0 %v236
  %1027 = vmatprep.subr.mxu0 0.0
  %1028 = vmatpush2.msra.mxu0 %v235
  %1029 = vmatprep.subr.mxu0 0.0
  %1030 = vmatpush2.msra.mxu0 %v234
  %1031 = vmatprep.mubr.f32.mxu0 %v487
  %1032 = vmatmul.mubr.f32.gmra.mxu0 %v479
  %v1033 = vpop.f32.mrf.mxu0
  %v1034 = vadd.f32 %v964, %v1033
  %v1035 = vpop.f32.mrf.mxu0
  %1036 = vdwg.mxu0
  %1037 = vmatprep.subr.mxu0 0.0
  %1038 = vmatpush1.msra.mxu0 %v265
  %1039 = vmatprep.subr.mxu0 0.0
  %1040 = vmatpush1.msra.mxu0 %v264
  %1041 = vmatprep.subr.mxu0 0.0
  %1042 = vmatpush1.msra.mxu0 %v263
  %1043 = vmatprep.subr.mxu0 0.0
  %1044 = vmatpush1.msra.mxu0 %v262
  %1045 = vmatprep.subr.mxu0 0.0
  %1046 = vmatpush1.msra.mxu0 %v261
  %1047 = vmatprep.subr.mxu0 0.0
  %1048 = vmatpush1.msra.mxu0 %v260
  %1049 = vmatprep.subr.mxu0 0.0
  %1050 = vmatpush1.msra.mxu0 %v259
  %1051 = vmatprep.subr.mxu0 0.0
  %1052 = vmatpush1.msra.mxu0 %v258
  %1053 = vmatprep.subr.mxu0 0.0
  %1054 = vmatpush1.msra.mxu0 %v257
  %1055 = vmatprep.subr.mxu0 0.0
  %1056 = vmatpush1.msra.mxu0 %v256
  %1057 = vmatprep.subr.mxu0 0.0
  %1058 = vmatpush1.msra.mxu0 %v255
  %1059 = vmatprep.subr.mxu0 0.0
  %1060 = vmatpush1.msra.mxu0 %v254
  %1061 = vmatprep.subr.mxu0 0.0
  %1062 = vmatpush1.msra.mxu0 %v253
  %1063 = vmatprep.subr.mxu0 0.0
  %1064 = vmatpush1.msra.mxu0 %v252
  %1065 = vmatprep.subr.mxu0 0.0
  %1066 = vmatpush1.msra.mxu0 %v251
  %1067 = vmatprep.subr.mxu0 0.0
  %1068 = vmatpush1.msra.mxu0 %v250
  %1069 = vmatprep.subr.mxu0 0.0
  %1070 = vmatpush2.msra.mxu0 %v281
  %1071 = vmatprep.subr.mxu0 0.0
  %1072 = vmatpush2.msra.mxu0 %v280
  %1073 = vmatprep.subr.mxu0 0.0
  %1074 = vmatpush2.msra.mxu0 %v279
  %1075 = vmatprep.subr.mxu0 0.0
  %1076 = vmatpush2.msra.mxu0 %v278
  %1077 = vmatprep.subr.mxu0 0.0
  %1078 = vmatpush2.msra.mxu0 %v277
  %1079 = vmatprep.subr.mxu0 0.0
  %1080 = vmatpush2.msra.mxu0 %v276
  %1081 = vmatprep.subr.mxu0 0.0
  %1082 = vmatpush2.msra.mxu0 %v275
  %1083 = vmatprep.subr.mxu0 0.0
  %1084 = vmatpush2.msra.mxu0 %v274
  %1085 = vmatprep.subr.mxu0 0.0
  %1086 = vmatpush2.msra.mxu0 %v273
  %1087 = vmatprep.subr.mxu0 0.0
  %1088 = vmatpush2.msra.mxu0 %v272
  %1089 = vmatprep.subr.mxu0 0.0
  %1090 = vmatpush2.msra.mxu0 %v271
  %1091 = vmatprep.subr.mxu0 0.0
  %1092 = vmatpush2.msra.mxu0 %v270
  %1093 = vmatprep.subr.mxu0 0.0
  %1094 = vmatpush2.msra.mxu0 %v269
  %1095 = vmatprep.subr.mxu0 0.0
  %1096 = vmatpush2.msra.mxu0 %v268
  %1097 = vmatprep.subr.mxu0 0.0
  %1098 = vmatpush2.msra.mxu0 %v267
  %1099 = vmatprep.subr.mxu0 0.0
  %1100 = vmatpush2.msra.mxu0 %v266
  %1101 = vmatprep.mubr.f32.mxu0 %v488
  %1102 = vmatmul.mubr.f32.gmra.mxu0 %v486
  %v1103 = vpop.f32.mrf.mxu0
  %v1104 = vadd.f32 %v1034, %v1103
  %v1105 = vpop.f32.mrf.mxu0
  %1106 = vdwg.mxu0
  %1107 = vmatprep.subr.mxu0 0.0
  %1108 = vmatpush1.msra.mxu0 %v297
  %1109 = vmatprep.subr.mxu0 0.0
  %1110 = vmatpush1.msra.mxu0 %v296
  %1111 = vmatprep.subr.mxu0 0.0
  %1112 = vmatpush1.msra.mxu0 %v295
  %1113 = vmatprep.subr.mxu0 0.0
  %1114 = vmatpush1.msra.mxu0 %v294
  %1115 = vmatprep.subr.mxu0 0.0
  %1116 = vmatpush1.msra.mxu0 %v293
  %1117 = vmatprep.subr.mxu0 0.0
  %1118 = vmatpush1.msra.mxu0 %v292
  %1119 = vmatprep.subr.mxu0 0.0
  %1120 = vmatpush1.msra.mxu0 %v291
  %1121 = vmatprep.subr.mxu0 0.0
  %1122 = vmatpush1.msra.mxu0 %v290
  %1123 = vmatprep.subr.mxu0 0.0
  %1124 = vmatpush1.msra.mxu0 %v289
  %1125 = vmatprep.subr.mxu0 0.0
  %1126 = vmatpush1.msra.mxu0 %v288
  %1127 = vmatprep.subr.mxu0 0.0
  %1128 = vmatpush1.msra.mxu0 %v287
  %1129 = vmatprep.subr.mxu0 0.0
  %1130 = vmatpush1.msra.mxu0 %v286
  %1131 = vmatprep.subr.mxu0 0.0
  %1132 = vmatpush1.msra.mxu0 %v285
  %1133 = vmatprep.subr.mxu0 0.0
  %1134 = vmatpush1.msra.mxu0 %v284
  %1135 = vmatprep.subr.mxu0 0.0
  %1136 = vmatpush1.msra.mxu0 %v283
  %1137 = vmatprep.subr.mxu0 0.0
  %1138 = vmatpush1.msra.mxu0 %v282
  %1139 = vmatprep.subr.mxu0 0.0
  %1140 = vmatpush2.msra.mxu0 %v313
  %1141 = vmatprep.subr.mxu0 0.0
  %1142 = vmatpush2.msra.mxu0 %v312
  %1143 = vmatprep.subr.mxu0 0.0
  %1144 = vmatpush2.msra.mxu0 %v311
  %1145 = vmatprep.subr.mxu0 0.0
  %1146 = vmatpush2.msra.mxu0 %v310
  %1147 = vmatprep.subr.mxu0 0.0
  %1148 = vmatpush2.msra.mxu0 %v309
  %1149 = vmatprep.subr.mxu0 0.0
  %1150 = vmatpush2.msra.mxu0 %v308
  %1151 = vmatprep.subr.mxu0 0.0
  %1152 = vmatpush2.msra.mxu0 %v307
  %1153 = vmatprep.subr.mxu0 0.0
  %1154 = vmatpush2.msra.mxu0 %v306
  %1155 = vmatprep.subr.mxu0 0.0
  %1156 = vmatpush2.msra.mxu0 %v305
  %1157 = vmatprep.subr.mxu0 0.0
  %1158 = vmatpush2.msra.mxu0 %v304
  %1159 = vmatprep.subr.mxu0 0.0
  %1160 = vmatpush2.msra.mxu0 %v303
  %1161 = vmatprep.subr.mxu0 0.0
  %1162 = vmatpush2.msra.mxu0 %v302
  %1163 = vmatprep.subr.mxu0 0.0
  %1164 = vmatpush2.msra.mxu0 %v301
  %1165 = vmatprep.subr.mxu0 0.0
  %1166 = vmatpush2.msra.mxu0 %v300
  %1167 = vmatprep.subr.mxu0 0.0
  %1168 = vmatpush2.msra.mxu0 %v299
  %1169 = vmatprep.subr.mxu0 0.0
  %1170 = vmatpush2.msra.mxu0 %v298
  %1171 = vmatprep.mubr.f32.mxu0 %v504
  %1172 = vmatmul.mubr.f32.gmra.mxu0 %v496
  %v1173 = vpop.f32.mrf.mxu0
  %v1174 = vadd.f32 %v1104, %v1173
  %v1175 = vpop.f32.mrf.mxu0
  %1176 = vdwg.mxu0
  %1177 = vmatprep.subr.mxu0 0.0
  %1178 = vmatpush1.msra.mxu0 %v329
  %1179 = vmatprep.subr.mxu0 0.0
  %1180 = vmatpush1.msra.mxu0 %v328
  %1181 = vmatprep.subr.mxu0 0.0
  %1182 = vmatpush1.msra.mxu0 %v327
  %1183 = vmatprep.subr.mxu0 0.0
  %1184 = vmatpush1.msra.mxu0 %v326
  %1185 = vmatprep.subr.mxu0 0.0
  %1186 = vmatpush1.msra.mxu0 %v325
  %1187 = vmatprep.subr.mxu0 0.0
  %1188 = vmatpush1.msra.mxu0 %v324
  %1189 = vmatprep.subr.mxu0 0.0
  %1190 = vmatpush1.msra.mxu0 %v323
  %1191 = vmatprep.subr.mxu0 0.0
  %1192 = vmatpush1.msra.mxu0 %v322
  %1193 = vmatprep.subr.mxu0 0.0
  %1194 = vmatpush1.msra.mxu0 %v321
  %1195 = vmatprep.subr.mxu0 0.0
  %1196 = vmatpush1.msra.mxu0 %v320
  %1197 = vmatprep.subr.mxu0 0.0
  %1198 = vmatpush1.msra.mxu0 %v319
  %1199 = vmatprep.subr.mxu0 0.0
  %1200 = vmatpush1.msra.mxu0 %v318
  %1201 = vmatprep.subr.mxu0 0.0
  %1202 = vmatpush1.msra.mxu0 %v317
  %1203 = vmatprep.subr.mxu0 0.0
  %1204 = vmatpush1.msra.mxu0 %v316
  %1205 = vmatprep.subr.mxu0 0.0
  %1206 = vmatpush1.msra.mxu0 %v315
  %1207 = vmatprep.subr.mxu0 0.0
  %1208 = vmatpush1.msra.mxu0 %v314
  %1209 = vmatprep.subr.mxu0 0.0
  %1210 = vmatpush2.msra.mxu0 %v345
  %1211 = vmatprep.subr.mxu0 0.0
  %1212 = vmatpush2.msra.mxu0 %v344
  %1213 = vmatprep.subr.mxu0 0.0
  %1214 = vmatpush2.msra.mxu0 %v343
  %1215 = vmatprep.subr.mxu0 0.0
  %1216 = vmatpush2.msra.mxu0 %v342
  %1217 = vmatprep.subr.mxu0 0.0
  %1218 = vmatpush2.msra.mxu0 %v341
  %1219 = vmatprep.subr.mxu0 0.0
  %1220 = vmatpush2.msra.mxu0 %v340
  %1221 = vmatprep.subr.mxu0 0.0
  %1222 = vmatpush2.msra.mxu0 %v339
  %1223 = vmatprep.subr.mxu0 0.0
  %1224 = vmatpush2.msra.mxu0 %v338
  %1225 = vmatprep.subr.mxu0 0.0
  %1226 = vmatpush2.msra.mxu0 %v337
  %1227 = vmatprep.subr.mxu0 0.0
  %1228 = vmatpush2.msra.mxu0 %v336
  %1229 = vmatprep.subr.mxu0 0.0
  %1230 = vmatpush2.msra.mxu0 %v335
  %1231 = vmatprep.subr.mxu0 0.0
  %1232 = vmatpush2.msra.mxu0 %v334
  %1233 = vmatprep.subr.mxu0 0.0
  %1234 = vmatpush2.msra.mxu0 %v333
  %1235 = vmatprep.subr.mxu0 0.0
  %1236 = vmatpush2.msra.mxu0 %v332
  %1237 = vmatprep.subr.mxu0 0.0
  %1238 = vmatpush2.msra.mxu0 %v331
  %1239 = vmatprep.subr.mxu0 0.0
  %1240 = vmatpush2.msra.mxu0 %v330
  %1241 = vmatprep.mubr.f32.mxu0 %v505
  %1242 = vmatmul.mubr.f32.gmra.mxu0 %v503
  %v1243 = vpop.f32.mrf.mxu0
  %v1244 = vadd.f32 %v1174, %v1243
  %v1245 = vpop.f32.mrf.mxu0
  %1246 = vdwg.mxu0
  %1247 = vmatprep.subr.mxu0 0.0
  %1248 = vmatpush1.msra.mxu0 %v361
  %1249 = vmatprep.subr.mxu0 0.0
  %1250 = vmatpush1.msra.mxu0 %v360
  %1251 = vmatprep.subr.mxu0 0.0
  %1252 = vmatpush1.msra.mxu0 %v359
  %1253 = vmatprep.subr.mxu0 0.0
  %1254 = vmatpush1.msra.mxu0 %v358
  %1255 = vmatprep.subr.mxu0 0.0
  %1256 = vmatpush1.msra.mxu0 %v357
  %1257 = vmatprep.subr.mxu0 0.0
  %1258 = vmatpush1.msra.mxu0 %v356
  %1259 = vmatprep.subr.mxu0 0.0
  %1260 = vmatpush1.msra.mxu0 %v355
  %1261 = vmatprep.subr.mxu0 0.0
  %1262 = vmatpush1.msra.mxu0 %v354
  %1263 = vmatprep.subr.mxu0 0.0
  %1264 = vmatpush1.msra.mxu0 %v353
  %1265 = vmatprep.subr.mxu0 0.0
  %1266 = vmatpush1.msra.mxu0 %v352
  %1267 = vmatprep.subr.mxu0 0.0
  %1268 = vmatpush1.msra.mxu0 %v351
  %1269 = vmatprep.subr.mxu0 0.0
  %1270 = vmatpush1.msra.mxu0 %v350
  %1271 = vmatprep.subr.mxu0 0.0
  %1272 = vmatpush1.msra.mxu0 %v349
  %1273 = vmatprep.subr.mxu0 0.0
  %1274 = vmatpush1.msra.mxu0 %v348
  %1275 = vmatprep.subr.mxu0 0.0
  %1276 = vmatpush1.msra.mxu0 %v347
  %1277 = vmatprep.subr.mxu0 0.0
  %1278 = vmatpush1.msra.mxu0 %v346
  %1279 = vmatprep.subr.mxu0 0.0
  %1280 = vmatpush2.msra.mxu0 %v377
  %1281 = vmatprep.subr.mxu0 0.0
  %1282 = vmatpush2.msra.mxu0 %v376
  %1283 = vmatprep.subr.mxu0 0.0
  %1284 = vmatpush2.msra.mxu0 %v375
  %1285 = vmatprep.subr.mxu0 0.0
  %1286 = vmatpush2.msra.mxu0 %v374
  %1287 = vmatprep.subr.mxu0 0.0
  %1288 = vmatpush2.msra.mxu0 %v373
  %1289 = vmatprep.subr.mxu0 0.0
  %1290 = vmatpush2.msra.mxu0 %v372
  %1291 = vmatprep.subr.mxu0 0.0
  %1292 = vmatpush2.msra.mxu0 %v371
  %1293 = vmatprep.subr.mxu0 0.0
  %1294 = vmatpush2.msra.mxu0 %v370
  %1295 = vmatprep.subr.mxu0 0.0
  %1296 = vmatpush2.msra.mxu0 %v369
  %1297 = vmatprep.subr.mxu0 0.0
  %1298 = vmatpush2.msra.mxu0 %v368
  %1299 = vmatprep.subr.mxu0 0.0
  %1300 = vmatpush2.msra.mxu0 %v367
  %1301 = vmatprep.subr.mxu0 0.0
  %1302 = vmatpush2.msra.mxu0 %v366
  %1303 = vmatprep.subr.mxu0 0.0
  %1304 = vmatpush2.msra.mxu0 %v365
  %1305 = vmatprep.subr.mxu0 0.0
  %1306 = vmatpush2.msra.mxu0 %v364
  %1307 = vmatprep.subr.mxu0 0.0
  %1308 = vmatpush2.msra.mxu0 %v363
  %1309 = vmatprep.subr.mxu0 0.0
  %1310 = vmatpush2.msra.mxu0 %v362
  %1311 = vmatprep.mubr.f32.mxu0 %v521
  %1312 = vmatmul.mubr.f32.gmra.mxu0 %v513
  %v1313 = vpop.f32.mrf.mxu0
  %v1314 = vadd.f32 %v1244, %v1313
  %v1315 = vpop.f32.mrf.mxu0
  %1316 = vdwg.mxu0
  %1317 = vmatprep.subr.mxu0 0.0
  %1318 = vmatpush1.msra.mxu0 %v393
  %1319 = vmatprep.subr.mxu0 0.0
  %1320 = vmatpush1.msra.mxu0 %v392
  %1321 = vmatprep.subr.mxu0 0.0
  %1322 = vmatpush1.msra.mxu0 %v391
  %1323 = vmatprep.subr.mxu0 0.0
  %1324 = vmatpush1.msra.mxu0 %v390
  %1325 = vmatprep.subr.mxu0 0.0
  %1326 = vmatpush1.msra.mxu0 %v389
  %1327 = vmatprep.subr.mxu0 0.0
  %1328 = vmatpush1.msra.mxu0 %v388
  %1329 = vmatprep.subr.mxu0 0.0
  %1330 = vmatpush1.msra.mxu0 %v387
  %1331 = vmatprep.subr.mxu0 0.0
  %1332 = vmatpush1.msra.mxu0 %v386
  %1333 = vmatprep.subr.mxu0 0.0
  %1334 = vmatpush1.msra.mxu0 %v385
  %1335 = vmatprep.subr.mxu0 0.0
  %1336 = vmatpush1.msra.mxu0 %v384
  %1337 = vmatprep.subr.mxu0 0.0
  %1338 = vmatpush1.msra.mxu0 %v383
  %1339 = vmatprep.subr.mxu0 0.0
  %1340 = vmatpush1.msra.mxu0 %v382
  %1341 = vmatprep.subr.mxu0 0.0
  %1342 = vmatpush1.msra.mxu0 %v381
  %1343 = vmatprep.subr.mxu0 0.0
  %1344 = vmatpush1.msra.mxu0 %v380
  %1345 = vmatprep.subr.mxu0 0.0
  %1346 = vmatpush1.msra.mxu0 %v379
  %1347 = vmatprep.subr.mxu0 0.0
  %1348 = vmatpush1.msra.mxu0 %v378
  %1349 = vmatprep.subr.mxu0 0.0
  %1350 = vmatpush2.msra.mxu0 %v409
  %1351 = vmatprep.subr.mxu0 0.0
  %1352 = vmatpush2.msra.mxu0 %v408
  %1353 = vmatprep.subr.mxu0 0.0
  %1354 = vmatpush2.msra.mxu0 %v407
  %1355 = vmatprep.subr.mxu0 0.0
  %1356 = vmatpush2.msra.mxu0 %v406
  %1357 = vmatprep.subr.mxu0 0.0
  %1358 = vmatpush2.msra.mxu0 %v405
  %1359 = vmatprep.subr.mxu0 0.0
  %1360 = vmatpush2.msra.mxu0 %v404
  %1361 = vmatprep.subr.mxu0 0.0
  %1362 = vmatpush2.msra.mxu0 %v403
  %1363 = vmatprep.subr.mxu0 0.0
  %1364 = vmatpush2.msra.mxu0 %v402
  %1365 = vmatprep.subr.mxu0 0.0
  %1366 = vmatpush2.msra.mxu0 %v401
  %1367 = vmatprep.subr.mxu0 0.0
  %1368 = vmatpush2.msra.mxu0 %v400
  %1369 = vmatprep.subr.mxu0 0.0
  %1370 = vmatpush2.msra.mxu0 %v399
  %1371 = vmatprep.subr.mxu0 0.0
  %1372 = vmatpush2.msra.mxu0 %v398
  %1373 = vmatprep.subr.mxu0 0.0
  %1374 = vmatpush2.msra.mxu0 %v397
  %1375 = vmatprep.subr.mxu0 0.0
  %1376 = vmatpush2.msra.mxu0 %v396
  %1377 = vmatprep.subr.mxu0 0.0
  %1378 = vmatpush2.msra.mxu0 %v395
  %1379 = vmatprep.subr.mxu0 0.0
  %1380 = vmatpush2.msra.mxu0 %v394
  %1381 = vmatprep.mubr.f32.mxu0 %v522
  %1382 = vmatmul.mubr.f32.gmra.mxu0 %v520
  %v1383 = vpop.f32.mrf.mxu0
  %v1384 = vadd.f32 %v1314, %v1383
  %v1385 = vpop.f32.mrf.mxu0
  %1386 = vdwg.mxu0
  %v1387 = vld [vmem:[%s3] sm:$0xff]
  %v1388 = vld [vmem:[%s3 + $0x8] sm:$0xff]
  %v1389 = vld [vmem:[%s3 + $0x10] sm:$0xff]
  %v1390 = vld [vmem:[%s3 + $0x18] sm:$0xff]
  %v1391 = vld [vmem:[%s3 + $0x20] sm:$0xff]
  %v1392 = vld [vmem:[%s3 + $0x28] sm:$0xff]
  %v1393 = vld [vmem:[%s3 + $0x30] sm:$0xff]
  %v1394 = vld [vmem:[%s3 + $0x38] sm:$0xff]
  %v1395 = vld [vmem:[%s3 + $0x40] sm:$0xff]
  %v1396 = vld [vmem:[%s3 + $0x48] sm:$0xff]
  %v1397 = vld [vmem:[%s3 + $0x50] sm:$0xff]
  %v1398 = vld [vmem:[%s3 + $0x58] sm:$0xff]
  %v1399 = vld [vmem:[%s3 + $0x60] sm:$0xff]
  %v1400 = vld [vmem:[%s3 + $0x68] sm:$0xff]
  %v1401 = vld [vmem:[%s3 + $0x70] sm:$0xff]
  %v1402 = vld [vmem:[%s3 + $0x78] sm:$0xff]
  %v1403 = vld [vmem:[%s3 + $0x80] sm:$0xff]
  %v1404 = vld [vmem:[%s3 + $0x88] sm:$0xff]
  %v1405 = vld [vmem:[%s3 + $0x90] sm:$0xff]
  %v1406 = vld [vmem:[%s3 + $0x98] sm:$0xff]
  %v1407 = vld [vmem:[%s3 + $0xa0] sm:$0xff]
  %v1408 = vld [vmem:[%s3 + $0xa8] sm:$0xff]
  %v1409 = vld [vmem:[%s3 + $0xb0] sm:$0xff]
  %v1410 = vld [vmem:[%s3 + $0xb8] sm:$0xff]
  %v1411 = vld [vmem:[%s3 + $0xc0] sm:$0xff]
  %v1412 = vld [vmem:[%s3 + $0xc8] sm:$0xff]
  %v1413 = vld [vmem:[%s3 + $0xd0] sm:$0xff]
  %v1414 = vld [vmem:[%s3 + $0xd8] sm:$0xff]
  %v1415 = vld [vmem:[%s3 + $0xe0] sm:$0xff]
  %v1416 = vld [vmem:[%s3 + $0xe8] sm:$0xff]
  %v1417 = vld [vmem:[%s3 + $0xf0] sm:$0xff]
  %v1418 = vld [vmem:[%s3 + $0xf8] sm:$0xff]
  %v1419 = vld [vmem:[%s3 + $0x100] sm:$0xff]
  %v1420 = vld [vmem:[%s3 + $0x108] sm:$0xff]
  %v1421 = vld [vmem:[%s3 + $0x110] sm:$0xff]
  %v1422 = vld [vmem:[%s3 + $0x118] sm:$0xff]
  %v1423 = vld [vmem:[%s3 + $0x120] sm:$0xff]
  %v1424 = vld [vmem:[%s3 + $0x128] sm:$0xff]
  %v1425 = vld [vmem:[%s3 + $0x130] sm:$0xff]
  %v1426 = vld [vmem:[%s3 + $0x138] sm:$0xff]
  %v1427 = vld [vmem:[%s3 + $0x140] sm:$0xff]
  %v1428 = vld [vmem:[%s3 + $0x148] sm:$0xff]
  %v1429 = vld [vmem:[%s3 + $0x150] sm:$0xff]
  %v1430 = vld [vmem:[%s3 + $0x158] sm:$0xff]
  %v1431 = vld [vmem:[%s3 + $0x160] sm:$0xff]
  %v1432 = vld [vmem:[%s3 + $0x168] sm:$0xff]
  %v1433 = vld [vmem:[%s3 + $0x170] sm:$0xff]
  %v1434 = vld [vmem:[%s3 + $0x178] sm:$0xff]
  %v1435 = vld [vmem:[%s3 + $0x180] sm:$0xff]
  %v1436 = vld [vmem:[%s3 + $0x188] sm:$0xff]
  %v1437 = vld [vmem:[%s3 + $0x190] sm:$0xff]
  %v1438 = vld [vmem:[%s3 + $0x198] sm:$0xff]
  %v1439 = vld [vmem:[%s3 + $0x1a0] sm:$0xff]
  %v1440 = vld [vmem:[%s3 + $0x1a8] sm:$0xff]
  %v1441 = vld [vmem:[%s3 + $0x1b0] sm:$0xff]
  %v1442 = vld [vmem:[%s3 + $0x1b8] sm:$0xff]
  %v1443 = vld [vmem:[%s3 + $0x1c0] sm:$0xff]
  %v1444 = vld [vmem:[%s3 + $0x1c8] sm:$0xff]
  %v1445 = vld [vmem:[%s3 + $0x1d0] sm:$0xff]
  %v1446 = vld [vmem:[%s3 + $0x1d8] sm:$0xff]
  %v1447 = vld [vmem:[%s3 + $0x1e0] sm:$0xff]
  %v1448 = vld [vmem:[%s3 + $0x1e8] sm:$0xff]
  %v1449 = vld [vmem:[%s3 + $0x1f0] sm:$0xff]
  %v1450 = vld [vmem:[%s3 + $0x1f8] sm:$0xff]
  %v1451 = vld [vmem:[%s3 + $0x200] sm:$0xff]
  %v1452 = vld [vmem:[%s3 + $0x208] sm:$0xff]
  %v1453 = vld [vmem:[%s3 + $0x210] sm:$0xff]
  %v1454 = vld [vmem:[%s3 + $0x218] sm:$0xff]
  %v1455 = vld [vmem:[%s3 + $0x220] sm:$0xff]
  %v1456 = vld [vmem:[%s3 + $0x228] sm:$0xff]
  %v1457 = vld [vmem:[%s3 + $0x230] sm:$0xff]
  %v1458 = vld [vmem:[%s3 + $0x238] sm:$0xff]
  %v1459 = vld [vmem:[%s3 + $0x240] sm:$0xff]
  %v1460 = vld [vmem:[%s3 + $0x248] sm:$0xff]
  %v1461 = vld [vmem:[%s3 + $0x250] sm:$0xff]
  %v1462 = vld [vmem:[%s3 + $0x258] sm:$0xff]
  %v1463 = vld [vmem:[%s3 + $0x260] sm:$0xff]
  %v1464 = vld [vmem:[%s3 + $0x268] sm:$0xff]
  %v1465 = vld [vmem:[%s3 + $0x270] sm:$0xff]
  %v1466 = vld [vmem:[%s3 + $0x278] sm:$0xff]
  %v1467 = vld [vmem:[%s3 + $0x280] sm:$0xff]
  %v1468 = vld [vmem:[%s3 + $0x288] sm:$0xff]
  %v1469 = vld [vmem:[%s3 + $0x290] sm:$0xff]
  %v1470 = vld [vmem:[%s3 + $0x298] sm:$0xff]
  %v1471 = vld [vmem:[%s3 + $0x2a0] sm:$0xff]
  %v1472 = vld [vmem:[%s3 + $0x2a8] sm:$0xff]
  %v1473 = vld [vmem:[%s3 + $0x2b0] sm:$0xff]
  %v1474 = vld [vmem:[%s3 + $0x2b8] sm:$0xff]
  %v1475 = vld [vmem:[%s3 + $0x2c0] sm:$0xff]
  %v1476 = vld [vmem:[%s3 + $0x2c8] sm:$0xff]
  %v1477 = vld [vmem:[%s3 + $0x2d0] sm:$0xff]
  %v1478 = vld [vmem:[%s3 + $0x2d8] sm:$0xff]
  %v1479 = vld [vmem:[%s3 + $0x2e0] sm:$0xff]
  %v1480 = vld [vmem:[%s3 + $0x2e8] sm:$0xff]
  %v1481 = vld [vmem:[%s3 + $0x2f0] sm:$0xff]
  %v1482 = vld [vmem:[%s3 + $0x2f8] sm:$0xff]
  %v1483 = vld [vmem:[%s3 + $0x300] sm:$0xff]
  %v1484 = vld [vmem:[%s3 + $0x308] sm:$0xff]
  %v1485 = vld [vmem:[%s3 + $0x310] sm:$0xff]
  %v1486 = vld [vmem:[%s3 + $0x318] sm:$0xff]
  %v1487 = vld [vmem:[%s3 + $0x320] sm:$0xff]
  %v1488 = vld [vmem:[%s3 + $0x328] sm:$0xff]
  %v1489 = vld [vmem:[%s3 + $0x330] sm:$0xff]
  %v1490 = vld [vmem:[%s3 + $0x338] sm:$0xff]
  %v1491 = vld [vmem:[%s3 + $0x340] sm:$0xff]
  %v1492 = vld [vmem:[%s3 + $0x348] sm:$0xff]
  %v1493 = vld [vmem:[%s3 + $0x350] sm:$0xff]
  %v1494 = vld [vmem:[%s3 + $0x358] sm:$0xff]
  %v1495 = vld [vmem:[%s3 + $0x360] sm:$0xff]
  %v1496 = vld [vmem:[%s3 + $0x368] sm:$0xff]
  %v1497 = vld [vmem:[%s3 + $0x370] sm:$0xff]
  %v1498 = vld [vmem:[%s3 + $0x378] sm:$0xff]
  %v1499 = vld [vmem:[%s3 + $0x380] sm:$0xff]
  %v1500 = vld [vmem:[%s3 + $0x388] sm:$0xff]
  %v1501 = vld [vmem:[%s3 + $0x390] sm:$0xff]
  %v1502 = vld [vmem:[%s3 + $0x398] sm:$0xff]
  %v1503 = vld [vmem:[%s3 + $0x3a0] sm:$0xff]
  %v1504 = vld [vmem:[%s3 + $0x3a8] sm:$0xff]
  %v1505 = vld [vmem:[%s3 + $0x3b0] sm:$0xff]
  %v1506 = vld [vmem:[%s3 + $0x3b8] sm:$0xff]
  %v1507 = vld [vmem:[%s3 + $0x3c0] sm:$0xff]
  %v1508 = vld [vmem:[%s3 + $0x3c8] sm:$0xff]
  %v1509 = vld [vmem:[%s3 + $0x3d0] sm:$0xff]
  %v1510 = vld [vmem:[%s3 + $0x3d8] sm:$0xff]
  %v1511 = vld [vmem:[%s3 + $0x3e0] sm:$0xff]
  %v1512 = vld [vmem:[%s3 + $0x3e8] sm:$0xff]
  %v1513 = vld [vmem:[%s3 + $0x3f0] sm:$0xff]
  %v1514 = vld [vmem:[%s3 + $0x3f8] sm:$0xff]
  %v1515 = vld [vmem:[%s3 + $0x400] sm:$0xff]
  %v1516 = vld [vmem:[%s3 + $0x408] sm:$0xff]
  %v1517 = vld [vmem:[%s3 + $0x410] sm:$0xff]
  %v1518 = vld [vmem:[%s3 + $0x418] sm:$0xff]
  %v1519 = vld [vmem:[%s3 + $0x420] sm:$0xff]
  %v1520 = vld [vmem:[%s3 + $0x428] sm:$0xff]
  %v1521 = vld [vmem:[%s3 + $0x430] sm:$0xff]
  %v1522 = vld [vmem:[%s3 + $0x438] sm:$0xff]
  %v1523 = vld [vmem:[%s3 + $0x440] sm:$0xff]
  %v1524 = vld [vmem:[%s3 + $0x448] sm:$0xff]
  %v1525 = vld [vmem:[%s3 + $0x450] sm:$0xff]
  %v1526 = vld [vmem:[%s3 + $0x458] sm:$0xff]
  %v1527 = vld [vmem:[%s3 + $0x460] sm:$0xff]
  %v1528 = vld [vmem:[%s3 + $0x468] sm:$0xff]
  %v1529 = vld [vmem:[%s3 + $0x470] sm:$0xff]
  %v1530 = vld [vmem:[%s3 + $0x478] sm:$0xff]
  %v1531 = vld [vmem:[%s3 + $0x480] sm:$0xff]
  %v1532 = vld [vmem:[%s3 + $0x488] sm:$0xff]
  %v1533 = vld [vmem:[%s3 + $0x490] sm:$0xff]
  %v1534 = vld [vmem:[%s3 + $0x498] sm:$0xff]
  %v1535 = vld [vmem:[%s3 + $0x4a0] sm:$0xff]
  %v1536 = vld [vmem:[%s3 + $0x4a8] sm:$0xff]
  %v1537 = vld [vmem:[%s3 + $0x4b0] sm:$0xff]
  %v1538 = vld [vmem:[%s3 + $0x4b8] sm:$0xff]
  %v1539 = vld [vmem:[%s3 + $0x4c0] sm:$0xff]
  %v1540 = vld [vmem:[%s3 + $0x4c8] sm:$0xff]
  %v1541 = vld [vmem:[%s3 + $0x4d0] sm:$0xff]
  %v1542 = vld [vmem:[%s3 + $0x4d8] sm:$0xff]
  %v1543 = vld [vmem:[%s3 + $0x4e0] sm:$0xff]
  %v1544 = vld [vmem:[%s3 + $0x4e8] sm:$0xff]
  %v1545 = vld [vmem:[%s3 + $0x4f0] sm:$0xff]
  %v1546 = vld [vmem:[%s3 + $0x4f8] sm:$0xff]
  %v1547 = vld [vmem:[%s3 + $0x500] sm:$0xff]
  %v1548 = vld [vmem:[%s3 + $0x508] sm:$0xff]
  %v1549 = vld [vmem:[%s3 + $0x510] sm:$0xff]
  %v1550 = vld [vmem:[%s3 + $0x518] sm:$0xff]
  %v1551 = vld [vmem:[%s3 + $0x520] sm:$0xff]
  %v1552 = vld [vmem:[%s3 + $0x528] sm:$0xff]
  %v1553 = vld [vmem:[%s3 + $0x530] sm:$0xff]
  %v1554 = vld [vmem:[%s3 + $0x538] sm:$0xff]
  %v1555 = vld [vmem:[%s3 + $0x540] sm:$0xff]
  %v1556 = vld [vmem:[%s3 + $0x548] sm:$0xff]
  %v1557 = vld [vmem:[%s3 + $0x550] sm:$0xff]
  %v1558 = vld [vmem:[%s3 + $0x558] sm:$0xff]
  %v1559 = vld [vmem:[%s3 + $0x560] sm:$0xff]
  %v1560 = vld [vmem:[%s3 + $0x568] sm:$0xff]
  %v1561 = vld [vmem:[%s3 + $0x570] sm:$0xff]
  %v1562 = vld [vmem:[%s3 + $0x578] sm:$0xff]
  %v1563 = vld [vmem:[%s3 + $0x580] sm:$0xff]
  %v1564 = vld [vmem:[%s3 + $0x588] sm:$0xff]
  %v1565 = vld [vmem:[%s3 + $0x590] sm:$0xff]
  %v1566 = vld [vmem:[%s3 + $0x598] sm:$0xff]
  %v1567 = vld [vmem:[%s3 + $0x5a0] sm:$0xff]
  %v1568 = vld [vmem:[%s3 + $0x5a8] sm:$0xff]
  %v1569 = vld [vmem:[%s3 + $0x5b0] sm:$0xff]
  %v1570 = vld [vmem:[%s3 + $0x5b8] sm:$0xff]
  %v1571 = vld [vmem:[%s3 + $0x5c0] sm:$0xff]
  %v1572 = vld [vmem:[%s3 + $0x5c8] sm:$0xff]
  %v1573 = vld [vmem:[%s3 + $0x5d0] sm:$0xff]
  %v1574 = vld [vmem:[%s3 + $0x5d8] sm:$0xff]
  %v1575 = vld [vmem:[%s3 + $0x5e0] sm:$0xff]
  %v1576 = vld [vmem:[%s3 + $0x5e8] sm:$0xff]
  %v1577 = vld [vmem:[%s3 + $0x5f0] sm:$0xff]
  %v1578 = vld [vmem:[%s3 + $0x5f8] sm:$0xff]
  %s1579 = scalar_lea.vmem %s3, 1536
  %v1580 = vld [vmem:[%s1579] ss:$8 sm:$0xf]
  %v1581 = vld [vmem:[%s1] sm:$0xff]
  %v1582 = vld [vmem:[%s1 + $0x8] sm:$0xff]
  %v1583 = vld [vmem:[%s1 + $0x10] sm:$0xff]
  %v1584 = vld [vmem:[%s1 + $0x18] sm:$0xff]
  %v1586 = vlaneseq
  %v1587 = vshrl.u32 %v1586, 7
  %v1588 = vsub.s32 0, %v1587
  %v1589 = vrot.slane %v1580, %v1588
  %v1590 = vlaneseq
  %v1591 = vshrl.u32 %v1590, 7
  %v1592 = vsub.s32 1, %v1591
  %v1593 = vrot.slane %v1580, %v1592
  %v1594 = vlaneseq
  %v1595 = vshrl.u32 %v1594, 7
  %v1596 = vsub.s32 2, %v1595
  %v1597 = vrot.slane %v1580, %v1596
  %v1598 = vlaneseq
  %v1599 = vshrl.u32 %v1598, 7
  %v1600 = vsub.s32 3, %v1599
  %v1601 = vrot.slane %v1580, %v1600
  %1606 = vmatprep.subr.mxu0 %v1448
  %1607 = vmatpush1.msra.mxu0 %v1447
  %1608 = vmatprep.subr.mxu0 %v1444
  %1609 = vmatpush1.msra.mxu0 %v1443
  %1610 = vmatprep.subr.mxu0 %v1440
  %1611 = vmatpush1.msra.mxu0 %v1439
  %1612 = vmatprep.subr.mxu0 %v1436
  %1613 = vmatpush1.msra.mxu0 %v1435
  %1614 = vmatprep.subr.mxu0 %v1432
  %1615 = vmatpush1.msra.mxu0 %v1431
  %1616 = vmatprep.subr.mxu0 %v1428
  %1617 = vmatpush1.msra.mxu0 %v1427
  %1618 = vmatprep.subr.mxu0 %v1424
  %1619 = vmatpush1.msra.mxu0 %v1423
  %1620 = vmatprep.subr.mxu0 %v1420
  %1621 = vmatpush1.msra.mxu0 %v1419
  %1622 = vmatprep.subr.mxu0 %v1416
  %1623 = vmatpush1.msra.mxu0 %v1415
  %1624 = vmatprep.subr.mxu0 %v1412
  %1625 = vmatpush1.msra.mxu0 %v1411
  %1626 = vmatprep.subr.mxu0 %v1408
  %1627 = vmatpush1.msra.mxu0 %v1407
  %1628 = vmatprep.subr.mxu0 %v1404
  %1629 = vmatpush1.msra.mxu0 %v1403
  %1630 = vmatprep.subr.mxu0 %v1400
  %1631 = vmatpush1.msra.mxu0 %v1399
  %1632 = vmatprep.subr.mxu0 %v1396
  %1633 = vmatpush1.msra.mxu0 %v1395
  %1634 = vmatprep.subr.mxu0 %v1392
  %1635 = vmatpush1.msra.mxu0 %v1391
  %1636 = vmatprep.subr.mxu0 %v1388
  %1637 = vmatpush1.msra.mxu0 %v1387
  %1638 = vmatprep.subr.mxu0 %v1512
  %1639 = vmatpush2.msra.mxu0 %v1511
  %1640 = vmatprep.subr.mxu0 %v1508
  %1641 = vmatpush2.msra.mxu0 %v1507
  %1642 = vmatprep.subr.mxu0 %v1504
  %1643 = vmatpush2.msra.mxu0 %v1503
  %1644 = vmatprep.subr.mxu0 %v1500
  %1645 = vmatpush2.msra.mxu0 %v1499
  %1646 = vmatprep.subr.mxu0 %v1496
  %1647 = vmatpush2.msra.mxu0 %v1495
  %1648 = vmatprep.subr.mxu0 %v1492
  %1649 = vmatpush2.msra.mxu0 %v1491
  %1650 = vmatprep.subr.mxu0 %v1488
  %1651 = vmatpush2.msra.mxu0 %v1487
  %1652 = vmatprep.subr.mxu0 %v1484
  %1653 = vmatpush2.msra.mxu0 %v1483
  %1654 = vmatprep.subr.mxu0 %v1480
  %1655 = vmatpush2.msra.mxu0 %v1479
  %1656 = vmatprep.subr.mxu0 %v1476
  %1657 = vmatpush2.msra.mxu0 %v1475
  %1658 = vmatprep.subr.mxu0 %v1472
  %1659 = vmatpush2.msra.mxu0 %v1471
  %1660 = vmatprep.subr.mxu0 %v1468
  %1661 = vmatpush2.msra.mxu0 %v1467
  %1662 = vmatprep.subr.mxu0 %v1464
  %1663 = vmatpush2.msra.mxu0 %v1463
  %1664 = vmatprep.subr.mxu0 %v1460
  %1665 = vmatpush2.msra.mxu0 %v1459
  %1666 = vmatprep.subr.mxu0 %v1456
  %1667 = vmatpush2.msra.mxu0 %v1455
  %1668 = vmatprep.subr.mxu0 %v1452
  %1669 = vmatpush2.msra.mxu0 %v1451
  %1670 = vmatprep.mubr.f32.mxu0 %v1582
  %1671 = vmatmul.mubr.f32.gmra.mxu0 %v1581
  %v1672 = vpop.f32.mrf.mxu0
  %v1673 = vadd.f32 %v1589, %v1672
  %v1674 = vpop.f32.mrf.mxu0
  %v1675 = vadd.f32 %v1593, %v1674
  %1676 = vmatprep.mubr.f32.mxu0 %v1584
  %1677 = vmatmul.mubr.f32.gmra.mxu0 %v1583
  %v1678 = vpop.f32.mrf.mxu0
  %v1679 = vadd.f32 %v1589, %v1678
  %v1680 = vpop.f32.mrf.mxu0
  %v1681 = vadd.f32 %v1593, %v1680
  %1682 = vdwg.mxu0
  %1683 = vmatprep.subr.mxu0 %v1450
  %1684 = vmatpush1.msra.mxu0 %v1449
  %1685 = vmatprep.subr.mxu0 %v1446
  %1686 = vmatpush1.msra.mxu0 %v1445
  %1687 = vmatprep.subr.mxu0 %v1442
  %1688 = vmatpush1.msra.mxu0 %v1441
  %1689 = vmatprep.subr.mxu0 %v1438
  %1690 = vmatpush1.msra.mxu0 %v1437
  %1691 = vmatprep.subr.mxu0 %v1434
  %1692 = vmatpush1.msra.mxu0 %v1433
  %1693 = vmatprep.subr.mxu0 %v1430
  %1694 = vmatpush1.msra.mxu0 %v1429
  %1695 = vmatprep.subr.mxu0 %v1426
  %1696 = vmatpush1.msra.mxu0 %v1425
  %1697 = vmatprep.subr.mxu0 %v1422
  %1698 = vmatpush1.msra.mxu0 %v1421
  %1699 = vmatprep.subr.mxu0 %v1418
  %1700 = vmatpush1.msra.mxu0 %v1417
  %1701 = vmatprep.subr.mxu0 %v1414
  %1702 = vmatpush1.msra.mxu0 %v1413
  %1703 = vmatprep.subr.mxu0 %v1410
  %1704 = vmatpush1.msra.mxu0 %v1409
  %1705 = vmatprep.subr.mxu0 %v1406
  %1706 = vmatpush1.msra.mxu0 %v1405
  %1707 = vmatprep.subr.mxu0 %v1402
  %1708 = vmatpush1.msra.mxu0 %v1401
  %1709 = vmatprep.subr.mxu0 %v1398
  %1710 = vmatpush1.msra.mxu0 %v1397
  %1711 = vmatprep.subr.mxu0 %v1394
  %1712 = vmatpush1.msra.mxu0 %v1393
  %1713 = vmatprep.subr.mxu0 %v1390
  %1714 = vmatpush1.msra.mxu0 %v1389
  %1715 = vmatprep.subr.mxu0 %v1514
  %1716 = vmatpush2.msra.mxu0 %v1513
  %1717 = vmatprep.subr.mxu0 %v1510
  %1718 = vmatpush2.msra.mxu0 %v1509
  %1719 = vmatprep.subr.mxu0 %v1506
  %1720 = vmatpush2.msra.mxu0 %v1505
  %1721 = vmatprep.subr.mxu0 %v1502
  %1722 = vmatpush2.msra.mxu0 %v1501
  %1723 = vmatprep.subr.mxu0 %v1498
  %1724 = vmatpush2.msra.mxu0 %v1497
  %1725 = vmatprep.subr.mxu0 %v1494
  %1726 = vmatpush2.msra.mxu0 %v1493
  %1727 = vmatprep.subr.mxu0 %v1490
  %1728 = vmatpush2.msra.mxu0 %v1489
  %1729 = vmatprep.subr.mxu0 %v1486
  %1730 = vmatpush2.msra.mxu0 %v1485
  %1731 = vmatprep.subr.mxu0 %v1482
  %1732 = vmatpush2.msra.mxu0 %v1481
  %1733 = vmatprep.subr.mxu0 %v1478
  %1734 = vmatpush2.msra.mxu0 %v1477
  %1735 = vmatprep.subr.mxu0 %v1474
  %1736 = vmatpush2.msra.mxu0 %v1473
  %1737 = vmatprep.subr.mxu0 %v1470
  %1738 = vmatpush2.msra.mxu0 %v1469
  %1739 = vmatprep.subr.mxu0 %v1466
  %1740 = vmatpush2.msra.mxu0 %v1465
  %1741 = vmatprep.subr.mxu0 %v1462
  %1742 = vmatpush2.msra.mxu0 %v1461
  %1743 = vmatprep.subr.mxu0 %v1458
  %1744 = vmatpush2.msra.mxu0 %v1457
  %1745 = vmatprep.subr.mxu0 %v1454
  %1746 = vmatpush2.msra.mxu0 %v1453
  %1747 = vmatprep.mubr.f32.mxu0 %v1582
  %1748 = vmatmul.mubr.f32.gmra.mxu0 %v1581
  %v1749 = vpop.f32.mrf.mxu0
  %v1750 = vadd.f32 %v1597, %v1749
  %v1751 = vpop.f32.mrf.mxu0
  %v1752 = vadd.f32 %v1601, %v1751
  %1753 = vmatprep.mubr.f32.mxu0 %v1584
  %1754 = vmatmul.mubr.f32.gmra.mxu0 %v1583
  %v1755 = vpop.f32.mrf.mxu0
  %v1756 = vadd.f32 %v1597, %v1755
  %v1757 = vpop.f32.mrf.mxu0
  %v1758 = vadd.f32 %v1601, %v1757
  %1759 = vdwg.mxu0
  %1760 = vmatprep.subr.mxu0 %v1576
  %1761 = vmatpush1.msra.mxu0 %v1575
  %1762 = vmatprep.subr.mxu0 %v1572
  %1763 = vmatpush1.msra.mxu0 %v1571
  %1764 = vmatprep.subr.mxu0 %v1568
  %1765 = vmatpush1.msra.mxu0 %v1567
  %1766 = vmatprep.subr.mxu0 %v1564
  %1767 = vmatpush1.msra.mxu0 %v1563
  %1768 = vmatprep.subr.mxu0 %v1560
  %1769 = vmatpush1.msra.mxu0 %v1559
  %1770 = vmatprep.subr.mxu0 %v1556
  %1771 = vmatpush1.msra.mxu0 %v1555
  %1772 = vmatprep.subr.mxu0 %v1552
  %1773 = vmatpush1.msra.mxu0 %v1551
  %1774 = vmatprep.subr.mxu0 %v1548
  %1775 = vmatpush1.msra.mxu0 %v1547
  %1776 = vmatprep.subr.mxu0 %v1544
  %1777 = vmatpush1.msra.mxu0 %v1543
  %1778 = vmatprep.subr.mxu0 %v1540
  %1779 = vmatpush1.msra.mxu0 %v1539
  %1780 = vmatprep.subr.mxu0 %v1536
  %1781 = vmatpush1.msra.mxu0 %v1535
  %1782 = vmatprep.subr.mxu0 %v1532
  %1783 = vmatpush1.msra.mxu0 %v1531
  %1784 = vmatprep.subr.mxu0 %v1528
  %1785 = vmatpush1.msra.mxu0 %v1527
  %1786 = vmatprep.subr.mxu0 %v1524
  %1787 = vmatpush1.msra.mxu0 %v1523
  %1788 = vmatprep.subr.mxu0 %v1520
  %1789 = vmatpush1.msra.mxu0 %v1519
  %1790 = vmatprep.subr.mxu0 %v1516
  %1791 = vmatpush1.msra.mxu0 %v1515
  %1792 = vmatprep.subr.mxu0 0.0
  %1793 = vmatpush2.msra.mxu0 0.0
  %1794 = vmatprep.subr.mxu0 0.0
  %1795 = vmatpush2.msra.mxu0 0.0
  %1796 = vmatprep.subr.mxu0 0.0
  %1797 = vmatpush2.msra.mxu0 0.0
  %1798 = vmatprep.subr.mxu0 0.0
  %1799 = vmatpush2.msra.mxu0 0.0
  %1800 = vmatprep.subr.mxu0 0.0
  %1801 = vmatpush2.msra.mxu0 0.0
  %1802 = vmatprep.subr.mxu0 0.0
  %1803 = vmatpush2.msra.mxu0 0.0
  %1804 = vmatprep.subr.mxu0 0.0
  %1805 = vmatpush2.msra.mxu0 0.0
  %1806 = vmatprep.subr.mxu0 0.0
  %1807 = vmatpush2.msra.mxu0 0.0
  %1808 = vmatprep.subr.mxu0 0.0
  %1809 = vmatpush2.msra.mxu0 0.0
  %1810 = vmatprep.subr.mxu0 0.0
  %1811 = vmatpush2.msra.mxu0 0.0
  %1812 = vmatprep.subr.mxu0 0.0
  %1813 = vmatpush2.msra.mxu0 0.0
  %1814 = vmatprep.subr.mxu0 0.0
  %1815 = vmatpush2.msra.mxu0 0.0
  %1816 = vmatprep.subr.mxu0 0.0
  %1817 = vmatpush2.msra.mxu0 0.0
  %1818 = vmatprep.subr.mxu0 0.0
  %1819 = vmatpush2.msra.mxu0 0.0
  %1820 = vmatprep.subr.mxu0 0.0
  %1821 = vmatpush2.msra.mxu0 0.0
  %1822 = vmatprep.subr.mxu0 0.0
  %1823 = vmatpush2.msra.mxu0 0.0
  %1824 = vmatprep.mubr.f32.mxu0 0.0
  %1825 = vmatmul.mubr.f32.gmra.mxu0 0.0
  %v1826 = vpop.f32.mrf.mxu0
  %v1827 = vadd.f32 0.0, %v1826
  %v1828 = vpop.f32.mrf.mxu0
  %v1829 = vadd.f32 0.0, %v1828
  %1830 = vdwg.mxu0
  %1831 = vmatprep.subr.mxu0 %v1578
  %1832 = vmatpush1.msra.mxu0 %v1577
  %1833 = vmatprep.subr.mxu0 %v1574
  %1834 = vmatpush1.msra.mxu0 %v1573
  %1835 = vmatprep.subr.mxu0 %v1570
  %1836 = vmatpush1.msra.mxu0 %v1569
  %1837 = vmatprep.subr.mxu0 %v1566
  %1838 = vmatpush1.msra.mxu0 %v1565
  %1839 = vmatprep.subr.mxu0 %v1562
  %1840 = vmatpush1.msra.mxu0 %v1561
  %1841 = vmatprep.subr.mxu0 %v1558
  %1842 = vmatpush1.msra.mxu0 %v1557
  %1843 = vmatprep.subr.mxu0 %v1554
  %1844 = vmatpush1.msra.mxu0 %v1553
  %1845 = vmatprep.subr.mxu0 %v1550
  %1846 = vmatpush1.msra.mxu0 %v1549
  %1847 = vmatprep.subr.mxu0 %v1546
  %1848 = vmatpush1.msra.mxu0 %v1545
  %1849 = vmatprep.subr.mxu0 %v1542
  %1850 = vmatpush1.msra.mxu0 %v1541
  %1851 = vmatprep.subr.mxu0 %v1538
  %1852 = vmatpush1.msra.mxu0 %v1537
  %1853 = vmatprep.subr.mxu0 %v1534
  %1854 = vmatpush1.msra.mxu0 %v1533
  %1855 = vmatprep.subr.mxu0 %v1530
  %1856 = vmatpush1.msra.mxu0 %v1529
  %1857 = vmatprep.subr.mxu0 %v1526
  %1858 = vmatpush1.msra.mxu0 %v1525
  %1859 = vmatprep.subr.mxu0 %v1522
  %1860 = vmatpush1.msra.mxu0 %v1521
  %1861 = vmatprep.subr.mxu0 %v1518
  %1862 = vmatpush1.msra.mxu0 %v1517
  %1863 = vmatprep.subr.mxu0 0.0
  %1864 = vmatpush2.msra.mxu0 0.0
  %1865 = vmatprep.subr.mxu0 0.0
  %1866 = vmatpush2.msra.mxu0 0.0
  %1867 = vmatprep.subr.mxu0 0.0
  %1868 = vmatpush2.msra.mxu0 0.0
  %1869 = vmatprep.subr.mxu0 0.0
  %1870 = vmatpush2.msra.mxu0 0.0
  %1871 = vmatprep.subr.mxu0 0.0
  %1872 = vmatpush2.msra.mxu0 0.0
  %1873 = vmatprep.subr.mxu0 0.0
  %1874 = vmatpush2.msra.mxu0 0.0
  %1875 = vmatprep.subr.mxu0 0.0
  %1876 = vmatpush2.msra.mxu0 0.0
  %1877 = vmatprep.subr.mxu0 0.0
  %1878 = vmatpush2.msra.mxu0 0.0
  %1879 = vmatprep.subr.mxu0 0.0
  %1880 = vmatpush2.msra.mxu0 0.0
  %1881 = vmatprep.subr.mxu0 0.0
  %1882 = vmatpush2.msra.mxu0 0.0
  %1883 = vmatprep.subr.mxu0 0.0
  %1884 = vmatpush2.msra.mxu0 0.0
  %1885 = vmatprep.subr.mxu0 0.0
  %1886 = vmatpush2.msra.mxu0 0.0
  %1887 = vmatprep.subr.mxu0 0.0
  %1888 = vmatpush2.msra.mxu0 0.0
  %1889 = vmatprep.subr.mxu0 0.0
  %1890 = vmatpush2.msra.mxu0 0.0
  %1891 = vmatprep.subr.mxu0 0.0
  %1892 = vmatpush2.msra.mxu0 0.0
  %1893 = vmatprep.subr.mxu0 0.0
  %1894 = vmatpush2.msra.mxu0 0.0
  %1895 = vmatprep.mubr.f32.mxu0 0.0
  %1896 = vmatmul.mubr.f32.gmra.mxu0 0.0
  %v1897 = vpop.f32.mrf.mxu0
  %v1898 = vadd.f32 0.0, %v1897
  %v1899 = vpop.f32.mrf.mxu0
  %v1900 = vadd.f32 0.0, %v1899
  %1901 = vdwg.mxu0
  %v1902 = vadd.f32 %v1673, %v1827
  %v1903 = vadd.f32 %v1675, %v1829
  %v1904 = vadd.f32 %v1750, %v1898
  %v1905 = vadd.f32 %v1752, %v1900
  %v1906 = vxor.u32 %v1902, 2147483648
  %v1907 = vxor.u32 %v1903, 2147483648
  %v1908 = vxor.u32 %v1904, 2147483648
  %v1909 = vmul.f32 %v1906, 1.442695
  %v1910 = vpow.pop %v1909
  %v1911 = vmul.f32 %v1907, 1.442695
  %v1912 = vpow.pop %v1911
  %v1913 = vmul.f32 %v1908, 1.442695
  %v1914 = vpow.pop %v1913
  %v1915 = vadd.f32 %v1910, 1.0
  %v1916 = vadd.f32 %v1912, 1.0
  %v1917 = vadd.f32 %v1914, 1.0
  %v1918 = vrcp.pop %v1915
  %v1919 = vmul.f32 1.0, %v1918
  %v1920 = vrcp.pop %v1916
  %v1921 = vmul.f32 1.0, %v1920
  %v1922 = vrcp.pop %v1917
  %v1923 = vmul.f32 1.0, %v1922
  %v1924 = vtanh.pop %v1905
  %v1925 = vmul.f32 %v1921, 0.0
  %v1926 = vmul.f32 %v1919, %v1924
  %v1927 = vadd.f32 %v1925, %v1926
  %v1928 = vtanh.pop %v1927
  %v1929 = vmul.f32 %v1923, %v1928
  %1930 = vst [vmem:[#allocation2] sm:$0x3] %v1929
  %1931 = vst [vmem:[#allocation3 + $0xe] sm:$0x3] %v1929
  %1932 = vmatprep.subr.mxu0 %v1576
  %1933 = vmatpush1.msra.mxu0 %v1575
  %1934 = vmatprep.subr.mxu0 %v1572
  %1935 = vmatpush1.msra.mxu0 %v1571
  %1936 = vmatprep.subr.mxu0 %v1568
  %1937 = vmatpush1.msra.mxu0 %v1567
  %1938 = vmatprep.subr.mxu0 %v1564
  %1939 = vmatpush1.msra.mxu0 %v1563
  %1940 = vmatprep.subr.mxu0 %v1560
  %1941 = vmatpush1.msra.mxu0 %v1559
  %1942 = vmatprep.subr.mxu0 %v1556
  %1943 = vmatpush1.msra.mxu0 %v1555
  %1944 = vmatprep.subr.mxu0 %v1552
  %1945 = vmatpush1.msra.mxu0 %v1551
  %1946 = vmatprep.subr.mxu0 %v1548
  %1947 = vmatpush1.msra.mxu0 %v1547
  %1948 = vmatprep.subr.mxu0 %v1544
  %1949 = vmatpush1.msra.mxu0 %v1543
  %1950 = vmatprep.subr.mxu0 %v1540
  %1951 = vmatpush1.msra.mxu0 %v1539
  %1952 = vmatprep.subr.mxu0 %v1536
  %1953 = vmatpush1.msra.mxu0 %v1535
  %1954 = vmatprep.subr.mxu0 %v1532
  %1955 = vmatpush1.msra.mxu0 %v1531
  %1956 = vmatprep.subr.mxu0 %v1528
  %1957 = vmatpush1.msra.mxu0 %v1527
  %1958 = vmatprep.subr.mxu0 %v1524
  %1959 = vmatpush1.msra.mxu0 %v1523
  %1960 = vmatprep.subr.mxu0 %v1520
  %1961 = vmatpush1.msra.mxu0 %v1519
  %1962 = vmatprep.subr.mxu0 %v1516
  %1963 = vmatpush1.msra.mxu0 %v1515
  %1964 = vmatprep.subr.mxu0 0.0
  %1965 = vmatpush2.msra.mxu0 0.0
  %1966 = vmatprep.subr.mxu0 0.0
  %1967 = vmatpush2.msra.mxu0 0.0
  %1968 = vmatprep.subr.mxu0 0.0
  %1969 = vmatpush2.msra.mxu0 0.0
  %1970 = vmatprep.subr.mxu0 0.0
  %1971 = vmatpush2.msra.mxu0 0.0
  %1972 = vmatprep.subr.mxu0 0.0
  %1973 = vmatpush2.msra.mxu0 0.0
  %1974 = vmatprep.subr.mxu0 0.0
  %1975 = vmatpush2.msra.mxu0 0.0
  %1976 = vmatprep.subr.mxu0 0.0
  %1977 = vmatpush2.msra.mxu0 0.0
  %1978 = vmatprep.subr.mxu0 0.0
  %1979 = vmatpush2.msra.mxu0 0.0
  %1980 = vmatprep.subr.mxu0 0.0
  %1981 = vmatpush2.msra.mxu0 0.0
  %1982 = vmatprep.subr.mxu0 0.0
  %1983 = vmatpush2.msra.mxu0 0.0
  %1984 = vmatprep.subr.mxu0 0.0
  %1985 = vmatpush2.msra.mxu0 0.0
  %1986 = vmatprep.subr.mxu0 0.0
  %1987 = vmatpush2.msra.mxu0 0.0
  %1988 = vmatprep.subr.mxu0 0.0
  %1989 = vmatpush2.msra.mxu0 0.0
  %1990 = vmatprep.subr.mxu0 0.0
  %1991 = vmatpush2.msra.mxu0 0.0
  %1992 = vmatprep.subr.mxu0 0.0
  %1993 = vmatpush2.msra.mxu0 0.0
  %1994 = vmatprep.subr.mxu0 0.0
  %1995 = vmatpush2.msra.mxu0 0.0
  %1996 = vmatprep.mubr.f32.mxu0 0.0
  %1997 = vmatmul.mubr.f32.gmra.mxu0 %v1929
  %v1998 = vpop.f32.mrf.mxu0
  %v1999 = vadd.f32 0.0, %v1998
  %v2000 = vpop.f32.mrf.mxu0
  %v2001 = vadd.f32 0.0, %v2000
  %2002 = vdwg.mxu0
  %2003 = vmatprep.subr.mxu0 %v1578
  %2004 = vmatpush1.msra.mxu0 %v1577
  %2005 = vmatprep.subr.mxu0 %v1574
  %2006 = vmatpush1.msra.mxu0 %v1573
  %2007 = vmatprep.subr.mxu0 %v1570
  %2008 = vmatpush1.msra.mxu0 %v1569
  %2009 = vmatprep.subr.mxu0 %v1566
  %2010 = vmatpush1.msra.mxu0 %v1565
  %2011 = vmatprep.subr.mxu0 %v1562
  %2012 = vmatpush1.msra.mxu0 %v1561
  %2013 = vmatprep.subr.mxu0 %v1558
  %2014 = vmatpush1.msra.mxu0 %v1557
  %2015 = vmatprep.subr.mxu0 %v1554
  %2016 = vmatpush1.msra.mxu0 %v1553
  %2017 = vmatprep.subr.mxu0 %v1550
  %2018 = vmatpush1.msra.mxu0 %v1549
  %2019 = vmatprep.subr.mxu0 %v1546
  %2020 = vmatpush1.msra.mxu0 %v1545
  %2021 = vmatprep.subr.mxu0 %v1542
  %2022 = vmatpush1.msra.mxu0 %v1541
  %2023 = vmatprep.subr.mxu0 %v1538
  %2024 = vmatpush1.msra.mxu0 %v1537
  %2025 = vmatprep.subr.mxu0 %v1534
  %2026 = vmatpush1.msra.mxu0 %v1533
  %2027 = vmatprep.subr.mxu0 %v1530
  %2028 = vmatpush1.msra.mxu0 %v1529
  %2029 = vmatprep.subr.mxu0 %v1526
  %2030 = vmatpush1.msra.mxu0 %v1525
  %2031 = vmatprep.subr.mxu0 %v1522
  %2032 = vmatpush1.msra.mxu0 %v1521
  %2033 = vmatprep.subr.mxu0 %v1518
  %2034 = vmatpush1.msra.mxu0 %v1517
  %2035 = vmatprep.subr.mxu0 0.0
  %2036 = vmatpush2.msra.mxu0 0.0
  %2037 = vmatprep.subr.mxu0 0.0
  %2038 = vmatpush2.msra.mxu0 0.0
  %2039 = vmatprep.subr.mxu0 0.0
  %2040 = vmatpush2.msra.mxu0 0.0
  %2041 = vmatprep.subr.mxu0 0.0
  %2042 = vmatpush2.msra.mxu0 0.0
  %2043 = vmatprep.subr.mxu0 0.0
  %2044 = vmatpush2.msra.mxu0 0.0
  %2045 = vmatprep.subr.mxu0 0.0
  %2046 = vmatpush2.msra.mxu0 0.0
  %2047 = vmatprep.subr.mxu0 0.0
  %2048 = vmatpush2.msra.mxu0 0.0
  %2049 = vmatprep.subr.mxu0 0.0
  %2050 = vmatpush2.msra.mxu0 0.0
  %2051 = vmatprep.subr.mxu0 0.0
  %2052 = vmatpush2.msra.mxu0 0.0
  %2053 = vmatprep.subr.mxu0 0.0
  %2054 = vmatpush2.msra.mxu0 0.0
  %2055 = vmatprep.subr.mxu0 0.0
  %2056 = vmatpush2.msra.mxu0 0.0
  %2057 = vmatprep.subr.mxu0 0.0
  %2058 = vmatpush2.msra.mxu0 0.0
  %2059 = vmatprep.subr.mxu0 0.0
  %2060 = vmatpush2.msra.mxu0 0.0
  %2061 = vmatprep.subr.mxu0 0.0
  %2062 = vmatpush2.msra.mxu0 0.0
  %2063 = vmatprep.subr.mxu0 0.0
  %2064 = vmatpush2.msra.mxu0 0.0
  %2065 = vmatprep.subr.mxu0 0.0
  %2066 = vmatpush2.msra.mxu0 0.0
  %2067 = vmatprep.mubr.f32.mxu0 0.0
  %2068 = vmatmul.mubr.f32.gmra.mxu0 %v1929
  %v2069 = vpop.f32.mrf.mxu0
  %v2070 = vadd.f32 0.0, %v2069
  %v2071 = vpop.f32.mrf.mxu0
  %v2072 = vadd.f32 0.0, %v2071
  %2073 = vdwg.mxu0
  %v2078 = vrot.slane %v1999, 6
  %v2079 = vrot.slane %v2001, 6
  %v2080 = vrot.slane %v2070, 6
  %v2081 = vrot.slane %v2072, 6
  %v2086 = vadd.f32 %v1673, %v2078
  %v2087 = vadd.f32 %v1675, %v2079
  %v2088 = vadd.f32 %v1750, %v2080
  %v2089 = vadd.f32 %v1752, %v2081
  %v2090 = vxor.u32 %v2086, 2147483648
  %v2091 = vxor.u32 %v2087, 2147483648
  %v2092 = vxor.u32 %v2088, 2147483648
  %v2093 = vmul.f32 %v2090, 1.442695
  %v2094 = vpow.pop %v2093
  %v2095 = vmul.f32 %v2091, 1.442695
  %v2096 = vpow.pop %v2095
  %v2097 = vmul.f32 %v2092, 1.442695
  %v2098 = vpow.pop %v2097
  %v2099 = vadd.f32 %v2094, 1.0
  %v2100 = vadd.f32 %v2096, 1.0
  %v2101 = vadd.f32 %v2098, 1.0
  %v2102 = vrcp.pop %v2099
  %v2103 = vmul.f32 1.0, %v2102
  %v2104 = vrcp.pop %v2100
  %v2105 = vmul.f32 1.0, %v2104
  %v2106 = vrcp.pop %v2101
  %v2107 = vmul.f32 1.0, %v2106
  %v2108 = vtanh.pop %v2089
  %v2110 = vrot.slane %v1927, 6
  %v2112 = vmul.f32 %v2105, %v2110
  %v2113 = vmul.f32 %v2103, %v2108
  %v2114 = vadd.f32 %v2112, %v2113
  %v2115 = vtanh.pop %v2114
  %v2116 = vmul.f32 %v2107, %v2115
  %2117 = vst [vmem:[#allocation2] sm:$0xc] %v2116
  %2118 = vst [vmem:[#allocation3 + $0xa] sm:$0xc] %v2116
  %v2120 = vrot.slane %v2116, 2
  %2122 = vmatprep.subr.mxu0 %v1576
  %2123 = vmatpush1.msra.mxu0 %v1575
  %2124 = vmatprep.subr.mxu0 %v1572
  %2125 = vmatpush1.msra.mxu0 %v1571
  %2126 = vmatprep.subr.mxu0 %v1568
  %2127 = vmatpush1.msra.mxu0 %v1567
  %2128 = vmatprep.subr.mxu0 %v1564
  %2129 = vmatpush1.msra.mxu0 %v1563
  %2130 = vmatprep.subr.mxu0 %v1560
  %2131 = vmatpush1.msra.mxu0 %v1559
  %2132 = vmatprep.subr.mxu0 %v1556
  %2133 = vmatpush1.msra.mxu0 %v1555
  %2134 = vmatprep.subr.mxu0 %v1552
  %2135 = vmatpush1.msra.mxu0 %v1551
  %2136 = vmatprep.subr.mxu0 %v1548
  %2137 = vmatpush1.msra.mxu0 %v1547
  %2138 = vmatprep.subr.mxu0 %v1544
  %2139 = vmatpush1.msra.mxu0 %v1543
  %2140 = vmatprep.subr.mxu0 %v1540
  %2141 = vmatpush1.msra.mxu0 %v1539
  %2142 = vmatprep.subr.mxu0 %v1536
  %2143 = vmatpush1.msra.mxu0 %v1535
  %2144 = vmatprep.subr.mxu0 %v1532
  %2145 = vmatpush1.msra.mxu0 %v1531
  %2146 = vmatprep.subr.mxu0 %v1528
  %2147 = vmatpush1.msra.mxu0 %v1527
  %2148 = vmatprep.subr.mxu0 %v1524
  %2149 = vmatpush1.msra.mxu0 %v1523
  %2150 = vmatprep.subr.mxu0 %v1520
  %2151 = vmatpush1.msra.mxu0 %v1519
  %2152 = vmatprep.subr.mxu0 %v1516
  %2153 = vmatpush1.msra.mxu0 %v1515
  %2154 = vmatprep.subr.mxu0 0.0
  %2155 = vmatpush2.msra.mxu0 0.0
  %2156 = vmatprep.subr.mxu0 0.0
  %2157 = vmatpush2.msra.mxu0 0.0
  %2158 = vmatprep.subr.mxu0 0.0
  %2159 = vmatpush2.msra.mxu0 0.0
  %2160 = vmatprep.subr.mxu0 0.0
  %2161 = vmatpush2.msra.mxu0 0.0
  %2162 = vmatprep.subr.mxu0 0.0
  %2163 = vmatpush2.msra.mxu0 0.0
  %2164 = vmatprep.subr.mxu0 0.0
  %2165 = vmatpush2.msra.mxu0 0.0
  %2166 = vmatprep.subr.mxu0 0.0
  %2167 = vmatpush2.msra.mxu0 0.0
  %2168 = vmatprep.subr.mxu0 0.0
  %2169 = vmatpush2.msra.mxu0 0.0
  %2170 = vmatprep.subr.mxu0 0.0
  %2171 = vmatpush2.msra.mxu0 0.0
  %2172 = vmatprep.subr.mxu0 0.0
  %2173 = vmatpush2.msra.mxu0 0.0
  %2174 = vmatprep.subr.mxu0 0.0
  %2175 = vmatpush2.msra.mxu0 0.0
  %2176 = vmatprep.subr.mxu0 0.0
  %2177 = vmatpush2.msra.mxu0 0.0
  %2178 = vmatprep.subr.mxu0 0.0
  %2179 = vmatpush2.msra.mxu0 0.0
  %2180 = vmatprep.subr.mxu0 0.0
  %2181 = vmatpush2.msra.mxu0 0.0
  %2182 = vmatprep.subr.mxu0 0.0
  %2183 = vmatpush2.msra.mxu0 0.0
  %2184 = vmatprep.subr.mxu0 0.0
  %2185 = vmatpush2.msra.mxu0 0.0
  %2186 = vmatprep.mubr.f32.mxu0 0.0
  %2187 = vmatmul.mubr.f32.gmra.mxu0 %v2120
  %v2188 = vpop.f32.mrf.mxu0
  %v2189 = vadd.f32 0.0, %v2188
  %v2190 = vpop.f32.mrf.mxu0
  %v2191 = vadd.f32 0.0, %v2190
  %2192 = vdwg.mxu0
  %2193 = vmatprep.subr.mxu0 %v1578
  %2194 = vmatpush1.msra.mxu0 %v1577
  %2195 = vmatprep.subr.mxu0 %v1574
  %2196 = vmatpush1.msra.mxu0 %v1573
  %2197 = vmatprep.subr.mxu0 %v1570
  %2198 = vmatpush1.msra.mxu0 %v1569
  %2199 = vmatprep.subr.mxu0 %v1566
  %2200 = vmatpush1.msra.mxu0 %v1565
  %2201 = vmatprep.subr.mxu0 %v1562
  %2202 = vmatpush1.msra.mxu0 %v1561
  %2203 = vmatprep.subr.mxu0 %v1558
  %2204 = vmatpush1.msra.mxu0 %v1557
  %2205 = vmatprep.subr.mxu0 %v1554
  %2206 = vmatpush1.msra.mxu0 %v1553
  %2207 = vmatprep.subr.mxu0 %v1550
  %2208 = vmatpush1.msra.mxu0 %v1549
  %2209 = vmatprep.subr.mxu0 %v1546
  %2210 = vmatpush1.msra.mxu0 %v1545
  %2211 = vmatprep.subr.mxu0 %v1542
  %2212 = vmatpush1.msra.mxu0 %v1541
  %2213 = vmatprep.subr.mxu0 %v1538
  %2214 = vmatpush1.msra.mxu0 %v1537
  %2215 = vmatprep.subr.mxu0 %v1534
  %2216 = vmatpush1.msra.mxu0 %v1533
  %2217 = vmatprep.subr.mxu0 %v1530
  %2218 = vmatpush1.msra.mxu0 %v1529
  %2219 = vmatprep.subr.mxu0 %v1526
  %2220 = vmatpush1.msra.mxu0 %v1525
  %2221 = vmatprep.subr.mxu0 %v1522
  %2222 = vmatpush1.msra.mxu0 %v1521
  %2223 = vmatprep.subr.mxu0 %v1518
  %2224 = vmatpush1.msra.mxu0 %v1517
  %2225 = vmatprep.subr.mxu0 0.0
  %2226 = vmatpush2.msra.mxu0 0.0
  %2227 = vmatprep.subr.mxu0 0.0
  %2228 = vmatpush2.msra.mxu0 0.0
  %2229 = vmatprep.subr.mxu0 0.0
  %2230 = vmatpush2.msra.mxu0 0.0
  %2231 = vmatprep.subr.mxu0 0.0
  %2232 = vmatpush2.msra.mxu0 0.0
  %2233 = vmatprep.subr.mxu0 0.0
  %2234 = vmatpush2.msra.mxu0 0.0
  %2235 = vmatprep.subr.mxu0 0.0
  %2236 = vmatpush2.msra.mxu0 0.0
  %2237 = vmatprep.subr.mxu0 0.0
  %2238 = vmatpush2.msra.mxu0 0.0
  %2239 = vmatprep.subr.mxu0 0.0
  %2240 = vmatpush2.msra.mxu0 0.0
  %2241 = vmatprep.subr.mxu0 0.0
  %2242 = vmatpush2.msra.mxu0 0.0
  %2243 = vmatprep.subr.mxu0 0.0
  %2244 = vmatpush2.msra.mxu0 0.0
  %2245 = vmatprep.subr.mxu0 0.0
  %2246 = vmatpush2.msra.mxu0 0.0
  %2247 = vmatprep.subr.mxu0 0.0
  %2248 = vmatpush2.msra.mxu0 0.0
  %2249 = vmatprep.subr.mxu0 0.0
  %2250 = vmatpush2.msra.mxu0 0.0
  %2251 = vmatprep.subr.mxu0 0.0
  %2252 = vmatpush2.msra.mxu0 0.0
  %2253 = vmatprep.subr.mxu0 0.0
  %2254 = vmatpush2.msra.mxu0 0.0
  %2255 = vmatprep.subr.mxu0 0.0
  %2256 = vmatpush2.msra.mxu0 0.0
  %2257 = vmatprep.mubr.f32.mxu0 0.0
  %2258 = vmatmul.mubr.f32.gmra.mxu0 %v2120
  %v2259 = vpop.f32.mrf.mxu0
  %v2260 = vadd.f32 0.0, %v2259
  %v2261 = vpop.f32.mrf.mxu0
  %v2262 = vadd.f32 0.0, %v2261
  %2263 = vdwg.mxu0
  %v2268 = vrot.slane %v2189, 4
  %v2269 = vrot.slane %v2191, 4
  %v2270 = vrot.slane %v2260, 4
  %v2271 = vrot.slane %v2262, 4
  %v2276 = vadd.f32 %v1673, %v2268
  %v2277 = vadd.f32 %v1675, %v2269
  %v2278 = vadd.f32 %v1750, %v2270
  %v2279 = vadd.f32 %v1752, %v2271
  %v2280 = vxor.u32 %v2276, 2147483648
  %v2281 = vxor.u32 %v2277, 2147483648
  %v2282 = vxor.u32 %v2278, 2147483648
  %v2283 = vmul.f32 %v2280, 1.442695
  %v2284 = vpow.pop %v2283
  %v2285 = vmul.f32 %v2281, 1.442695
  %v2286 = vpow.pop %v2285
  %v2287 = vmul.f32 %v2282, 1.442695
  %v2288 = vpow.pop %v2287
  %v2289 = vadd.f32 %v2284, 1.0
  %v2290 = vadd.f32 %v2286, 1.0
  %v2291 = vadd.f32 %v2288, 1.0
  %v2292 = vrcp.pop %v2289
  %v2293 = vmul.f32 1.0, %v2292
  %v2294 = vrcp.pop %v2290
  %v2295 = vmul.f32 1.0, %v2294
  %v2296 = vrcp.pop %v2291
  %v2297 = vmul.f32 1.0, %v2296
  %v2298 = vtanh.pop %v2279
  %v2300 = vrot.slane %v2114, 6
  %v2302 = vmul.f32 %v2295, %v2300
  %v2303 = vmul.f32 %v2293, %v2298
  %v2304 = vadd.f32 %v2302, %v2303
  %v2305 = vtanh.pop %v2304
  %v2306 = vmul.f32 %v2297, %v2305
  %2307 = vst [vmem:[#allocation2] sm:$0x30] %v2306
  %2308 = vst [vmem:[#allocation3 + $0x6] sm:$0x30] %v2306
  %v2310 = vrot.slane %v2306, 4
  %2312 = vmatprep.subr.mxu0 %v1576
  %2313 = vmatpush1.msra.mxu0 %v1575
  %2314 = vmatprep.subr.mxu0 %v1572
  %2315 = vmatpush1.msra.mxu0 %v1571
  %2316 = vmatprep.subr.mxu0 %v1568
  %2317 = vmatpush1.msra.mxu0 %v1567
  %2318 = vmatprep.subr.mxu0 %v1564
  %2319 = vmatpush1.msra.mxu0 %v1563
  %2320 = vmatprep.subr.mxu0 %v1560
  %2321 = vmatpush1.msra.mxu0 %v1559
  %2322 = vmatprep.subr.mxu0 %v1556
  %2323 = vmatpush1.msra.mxu0 %v1555
  %2324 = vmatprep.subr.mxu0 %v1552
  %2325 = vmatpush1.msra.mxu0 %v1551
  %2326 = vmatprep.subr.mxu0 %v1548
  %2327 = vmatpush1.msra.mxu0 %v1547
  %2328 = vmatprep.subr.mxu0 %v1544
  %2329 = vmatpush1.msra.mxu0 %v1543
  %2330 = vmatprep.subr.mxu0 %v1540
  %2331 = vmatpush1.msra.mxu0 %v1539
  %2332 = vmatprep.subr.mxu0 %v1536
  %2333 = vmatpush1.msra.mxu0 %v1535
  %2334 = vmatprep.subr.mxu0 %v1532
  %2335 = vmatpush1.msra.mxu0 %v1531
  %2336 = vmatprep.subr.mxu0 %v1528
  %2337 = vmatpush1.msra.mxu0 %v1527
  %2338 = vmatprep.subr.mxu0 %v1524
  %2339 = vmatpush1.msra.mxu0 %v1523
  %2340 = vmatprep.subr.mxu0 %v1520
  %2341 = vmatpush1.msra.mxu0 %v1519
  %2342 = vmatprep.subr.mxu0 %v1516
  %2343 = vmatpush1.msra.mxu0 %v1515
  %2344 = vmatprep.subr.mxu0 0.0
  %2345 = vmatpush2.msra.mxu0 0.0
  %2346 = vmatprep.subr.mxu0 0.0
  %2347 = vmatpush2.msra.mxu0 0.0
  %2348 = vmatprep.subr.mxu0 0.0
  %2349 = vmatpush2.msra.mxu0 0.0
  %2350 = vmatprep.subr.mxu0 0.0
  %2351 = vmatpush2.msra.mxu0 0.0
  %2352 = vmatprep.subr.mxu0 0.0
  %2353 = vmatpush2.msra.mxu0 0.0
  %2354 = vmatprep.subr.mxu0 0.0
  %2355 = vmatpush2.msra.mxu0 0.0
  %2356 = vmatprep.subr.mxu0 0.0
  %2357 = vmatpush2.msra.mxu0 0.0
  %2358 = vmatprep.subr.mxu0 0.0
  %2359 = vmatpush2.msra.mxu0 0.0
  %2360 = vmatprep.subr.mxu0 0.0
  %2361 = vmatpush2.msra.mxu0 0.0
  %2362 = vmatprep.subr.mxu0 0.0
  %2363 = vmatpush2.msra.mxu0 0.0
  %2364 = vmatprep.subr.mxu0 0.0
  %2365 = vmatpush2.msra.mxu0 0.0
  %2366 = vmatprep.subr.mxu0 0.0
  %2367 = vmatpush2.msra.mxu0 0.0
  %2368 = vmatprep.subr.mxu0 0.0
  %2369 = vmatpush2.msra.mxu0 0.0
  %2370 = vmatprep.subr.mxu0 0.0
  %2371 = vmatpush2.msra.mxu0 0.0
  %2372 = vmatprep.subr.mxu0 0.0
  %2373 = vmatpush2.msra.mxu0 0.0
  %2374 = vmatprep.subr.mxu0 0.0
  %2375 = vmatpush2.msra.mxu0 0.0
  %2376 = vmatprep.mubr.f32.mxu0 0.0
  %2377 = vmatmul.mubr.f32.gmra.mxu0 %v2310
  %v2378 = vpop.f32.mrf.mxu0
  %v2379 = vadd.f32 0.0, %v2378
  %v2380 = vpop.f32.mrf.mxu0
  %v2381 = vadd.f32 0.0, %v2380
  %2382 = vdwg.mxu0
  %2383 = vmatprep.subr.mxu0 %v1578
  %2384 = vmatpush1.msra.mxu0 %v1577
  %2385 = vmatprep.subr.mxu0 %v1574
  %2386 = vmatpush1.msra.mxu0 %v1573
  %2387 = vmatprep.subr.mxu0 %v1570
  %2388 = vmatpush1.msra.mxu0 %v1569
  %2389 = vmatprep.subr.mxu0 %v1566
  %2390 = vmatpush1.msra.mxu0 %v1565
  %2391 = vmatprep.subr.mxu0 %v1562
  %2392 = vmatpush1.msra.mxu0 %v1561
  %2393 = vmatprep.subr.mxu0 %v1558
  %2394 = vmatpush1.msra.mxu0 %v1557
  %2395 = vmatprep.subr.mxu0 %v1554
  %2396 = vmatpush1.msra.mxu0 %v1553
  %2397 = vmatprep.subr.mxu0 %v1550
  %2398 = vmatpush1.msra.mxu0 %v1549
  %2399 = vmatprep.subr.mxu0 %v1546
  %2400 = vmatpush1.msra.mxu0 %v1545
  %2401 = vmatprep.subr.mxu0 %v1542
  %2402 = vmatpush1.msra.mxu0 %v1541
  %2403 = vmatprep.subr.mxu0 %v1538
  %2404 = vmatpush1.msra.mxu0 %v1537
  %2405 = vmatprep.subr.mxu0 %v1534
  %2406 = vmatpush1.msra.mxu0 %v1533
  %2407 = vmatprep.subr.mxu0 %v1530
  %2408 = vmatpush1.msra.mxu0 %v1529
  %2409 = vmatprep.subr.mxu0 %v1526
  %2410 = vmatpush1.msra.mxu0 %v1525
  %2411 = vmatprep.subr.mxu0 %v1522
  %2412 = vmatpush1.msra.mxu0 %v1521
  %2413 = vmatprep.subr.mxu0 %v1518
  %2414 = vmatpush1.msra.mxu0 %v1517
  %2415 = vmatprep.subr.mxu0 0.0
  %2416 = vmatpush2.msra.mxu0 0.0
  %2417 = vmatprep.subr.mxu0 0.0
  %2418 = vmatpush2.msra.mxu0 0.0
  %2419 = vmatprep.subr.mxu0 0.0
  %2420 = vmatpush2.msra.mxu0 0.0
  %2421 = vmatprep.subr.mxu0 0.0
  %2422 = vmatpush2.msra.mxu0 0.0
  %2423 = vmatprep.subr.mxu0 0.0
  %2424 = vmatpush2.msra.mxu0 0.0
  %2425 = vmatprep.subr.mxu0 0.0
  %2426 = vmatpush2.msra.mxu0 0.0
  %2427 = vmatprep.subr.mxu0 0.0
  %2428 = vmatpush2.msra.mxu0 0.0
  %2429 = vmatprep.subr.mxu0 0.0
  %2430 = vmatpush2.msra.mxu0 0.0
  %2431 = vmatprep.subr.mxu0 0.0
  %2432 = vmatpush2.msra.mxu0 0.0
  %2433 = vmatprep.subr.mxu0 0.0
  %2434 = vmatpush2.msra.mxu0 0.0
  %2435 = vmatprep.subr.mxu0 0.0
  %2436 = vmatpush2.msra.mxu0 0.0
  %2437 = vmatprep.subr.mxu0 0.0
  %2438 = vmatpush2.msra.mxu0 0.0
  %2439 = vmatprep.subr.mxu0 0.0
  %2440 = vmatpush2.msra.mxu0 0.0
  %2441 = vmatprep.subr.mxu0 0.0
  %2442 = vmatpush2.msra.mxu0 0.0
  %2443 = vmatprep.subr.mxu0 0.0
  %2444 = vmatpush2.msra.mxu0 0.0
  %2445 = vmatprep.subr.mxu0 0.0
  %2446 = vmatpush2.msra.mxu0 0.0
  %2447 = vmatprep.mubr.f32.mxu0 0.0
  %2448 = vmatmul.mubr.f32.gmra.mxu0 %v2310
  %v2449 = vpop.f32.mrf.mxu0
  %v2450 = vadd.f32 0.0, %v2449
  %v2451 = vpop.f32.mrf.mxu0
  %v2452 = vadd.f32 0.0, %v2451
  %2453 = vdwg.mxu0
  %v2458 = vrot.slane %v2379, 2
  %v2459 = vrot.slane %v2381, 2
  %v2460 = vrot.slane %v2450, 2
  %v2461 = vrot.slane %v2452, 2
  %v2466 = vadd.f32 %v1673, %v2458
  %v2467 = vadd.f32 %v1675, %v2459
  %v2468 = vadd.f32 %v1750, %v2460
  %v2469 = vadd.f32 %v1752, %v2461
  %v2470 = vxor.u32 %v2466, 2147483648
  %v2471 = vxor.u32 %v2467, 2147483648
  %v2472 = vxor.u32 %v2468, 2147483648
  %v2473 = vmul.f32 %v2470, 1.442695
  %v2474 = vpow.pop %v2473
  %v2475 = vmul.f32 %v2471, 1.442695
  %v2476 = vpow.pop %v2475
  %v2477 = vmul.f32 %v2472, 1.442695
  %v2478 = vpow.pop %v2477
  %v2479 = vadd.f32 %v2474, 1.0
  %v2480 = vadd.f32 %v2476, 1.0
  %v2481 = vadd.f32 %v2478, 1.0
  %v2482 = vrcp.pop %v2479
  %v2483 = vmul.f32 1.0, %v2482
  %v2484 = vrcp.pop %v2480
  %v2485 = vmul.f32 1.0, %v2484
  %v2486 = vrcp.pop %v2481
  %v2487 = vmul.f32 1.0, %v2486
  %v2488 = vtanh.pop %v2469
  %v2490 = vrot.slane %v2304, 6
  %v2492 = vmul.f32 %v2485, %v2490
  %v2493 = vmul.f32 %v2483, %v2488
  %v2494 = vadd.f32 %v2492, %v2493
  %v2495 = vtanh.pop %v2494
  %v2496 = vmul.f32 %v2487, %v2495
  %2497 = vst [vmem:[#allocation2] sm:$0xc0] %v2496
  %2498 = vst [vmem:[#allocation3 + $0x2] sm:$0xc0] %v2496
  %v2500 = vrot.slane %v2496, 6
  %2502 = vmatprep.subr.mxu0 %v1576
  %2503 = vmatpush1.msra.mxu0 %v1575
  %2504 = vmatprep.subr.mxu0 %v1572
  %2505 = vmatpush1.msra.mxu0 %v1571
  %2506 = vmatprep.subr.mxu0 %v1568
  %2507 = vmatpush1.msra.mxu0 %v1567
  %2508 = vmatprep.subr.mxu0 %v1564
  %2509 = vmatpush1.msra.mxu0 %v1563
  %2510 = vmatprep.subr.mxu0 %v1560
  %2511 = vmatpush1.msra.mxu0 %v1559
  %2512 = vmatprep.subr.mxu0 %v1556
  %2513 = vmatpush1.msra.mxu0 %v1555
  %2514 = vmatprep.subr.mxu0 %v1552
  %2515 = vmatpush1.msra.mxu0 %v1551
  %2516 = vmatprep.subr.mxu0 %v1548
  %2517 = vmatpush1.msra.mxu0 %v1547
  %2518 = vmatprep.subr.mxu0 %v1544
  %2519 = vmatpush1.msra.mxu0 %v1543
  %2520 = vmatprep.subr.mxu0 %v1540
  %2521 = vmatpush1.msra.mxu0 %v1539
  %2522 = vmatprep.subr.mxu0 %v1536
  %2523 = vmatpush1.msra.mxu0 %v1535
  %2524 = vmatprep.subr.mxu0 %v1532
  %2525 = vmatpush1.msra.mxu0 %v1531
  %2526 = vmatprep.subr.mxu0 %v1528
  %2527 = vmatpush1.msra.mxu0 %v1527
  %2528 = vmatprep.subr.mxu0 %v1524
  %2529 = vmatpush1.msra.mxu0 %v1523
  %2530 = vmatprep.subr.mxu0 %v1520
  %2531 = vmatpush1.msra.mxu0 %v1519
  %2532 = vmatprep.subr.mxu0 %v1516
  %2533 = vmatpush1.msra.mxu0 %v1515
  %2534 = vmatprep.subr.mxu0 0.0
  %2535 = vmatpush2.msra.mxu0 0.0
  %2536 = vmatprep.subr.mxu0 0.0
  %2537 = vmatpush2.msra.mxu0 0.0
  %2538 = vmatprep.subr.mxu0 0.0
  %2539 = vmatpush2.msra.mxu0 0.0
  %2540 = vmatprep.subr.mxu0 0.0
  %2541 = vmatpush2.msra.mxu0 0.0
  %2542 = vmatprep.subr.mxu0 0.0
  %2543 = vmatpush2.msra.mxu0 0.0
  %2544 = vmatprep.subr.mxu0 0.0
  %2545 = vmatpush2.msra.mxu0 0.0
  %2546 = vmatprep.subr.mxu0 0.0
  %2547 = vmatpush2.msra.mxu0 0.0
  %2548 = vmatprep.subr.mxu0 0.0
  %2549 = vmatpush2.msra.mxu0 0.0
  %2550 = vmatprep.subr.mxu0 0.0
  %2551 = vmatpush2.msra.mxu0 0.0
  %2552 = vmatprep.subr.mxu0 0.0
  %2553 = vmatpush2.msra.mxu0 0.0
  %2554 = vmatprep.subr.mxu0 0.0
  %2555 = vmatpush2.msra.mxu0 0.0
  %2556 = vmatprep.subr.mxu0 0.0
  %2557 = vmatpush2.msra.mxu0 0.0
  %2558 = vmatprep.subr.mxu0 0.0
  %2559 = vmatpush2.msra.mxu0 0.0
  %2560 = vmatprep.subr.mxu0 0.0
  %2561 = vmatpush2.msra.mxu0 0.0
  %2562 = vmatprep.subr.mxu0 0.0
  %2563 = vmatpush2.msra.mxu0 0.0
  %2564 = vmatprep.subr.mxu0 0.0
  %2565 = vmatpush2.msra.mxu0 0.0
  %2566 = vmatprep.mubr.f32.mxu0 0.0
  %2567 = vmatmul.mubr.f32.gmra.mxu0 %v2500
  %v2568 = vpop.f32.mrf.mxu0
  %v2569 = vadd.f32 0.0, %v2568
  %v2570 = vpop.f32.mrf.mxu0
  %v2571 = vadd.f32 0.0, %v2570
  %2572 = vdwg.mxu0
  %2573 = vmatprep.subr.mxu0 %v1578
  %2574 = vmatpush1.msra.mxu0 %v1577
  %2575 = vmatprep.subr.mxu0 %v1574
  %2576 = vmatpush1.msra.mxu0 %v1573
  %2577 = vmatprep.subr.mxu0 %v1570
  %2578 = vmatpush1.msra.mxu0 %v1569
  %2579 = vmatprep.subr.mxu0 %v1566
  %2580 = vmatpush1.msra.mxu0 %v1565
  %2581 = vmatprep.subr.mxu0 %v1562
  %2582 = vmatpush1.msra.mxu0 %v1561
  %2583 = vmatprep.subr.mxu0 %v1558
  %2584 = vmatpush1.msra.mxu0 %v1557
  %2585 = vmatprep.subr.mxu0 %v1554
  %2586 = vmatpush1.msra.mxu0 %v1553
  %2587 = vmatprep.subr.mxu0 %v1550
  %2588 = vmatpush1.msra.mxu0 %v1549
  %2589 = vmatprep.subr.mxu0 %v1546
  %2590 = vmatpush1.msra.mxu0 %v1545
  %2591 = vmatprep.subr.mxu0 %v1542
  %2592 = vmatpush1.msra.mxu0 %v1541
  %2593 = vmatprep.subr.mxu0 %v1538
  %2594 = vmatpush1.msra.mxu0 %v1537
  %2595 = vmatprep.subr.mxu0 %v1534
  %2596 = vmatpush1.msra.mxu0 %v1533
  %2597 = vmatprep.subr.mxu0 %v1530
  %2598 = vmatpush1.msra.mxu0 %v1529
  %2599 = vmatprep.subr.mxu0 %v1526
  %2600 = vmatpush1.msra.mxu0 %v1525
  %2601 = vmatprep.subr.mxu0 %v1522
  %2602 = vmatpush1.msra.mxu0 %v1521
  %2603 = vmatprep.subr.mxu0 %v1518
  %2604 = vmatpush1.msra.mxu0 %v1517
  %2605 = vmatprep.subr.mxu0 0.0
  %2606 = vmatpush2.msra.mxu0 0.0
  %2607 = vmatprep.subr.mxu0 0.0
  %2608 = vmatpush2.msra.mxu0 0.0
  %2609 = vmatprep.subr.mxu0 0.0
  %2610 = vmatpush2.msra.mxu0 0.0
  %2611 = vmatprep.subr.mxu0 0.0
  %2612 = vmatpush2.msra.mxu0 0.0
  %2613 = vmatprep.subr.mxu0 0.0
  %2614 = vmatpush2.msra.mxu0 0.0
  %2615 = vmatprep.subr.mxu0 0.0
  %2616 = vmatpush2.msra.mxu0 0.0
  %2617 = vmatprep.subr.mxu0 0.0
  %2618 = vmatpush2.msra.mxu0 0.0
  %2619 = vmatprep.subr.mxu0 0.0
  %2620 = vmatpush2.msra.mxu0 0.0
  %2621 = vmatprep.subr.mxu0 0.0
  %2622 = vmatpush2.msra.mxu0 0.0
  %2623 = vmatprep.subr.mxu0 0.0
  %2624 = vmatpush2.msra.mxu0 0.0
  %2625 = vmatprep.subr.mxu0 0.0
  %2626 = vmatpush2.msra.mxu0 0.0
  %2627 = vmatprep.subr.mxu0 0.0
  %2628 = vmatpush2.msra.mxu0 0.0
  %2629 = vmatprep.subr.mxu0 0.0
  %2630 = vmatpush2.msra.mxu0 0.0
  %2631 = vmatprep.subr.mxu0 0.0
  %2632 = vmatpush2.msra.mxu0 0.0
  %2633 = vmatprep.subr.mxu0 0.0
  %2634 = vmatpush2.msra.mxu0 0.0
  %2635 = vmatprep.subr.mxu0 0.0
  %2636 = vmatpush2.msra.mxu0 0.0
  %2637 = vmatprep.mubr.f32.mxu0 0.0
  %2638 = vmatmul.mubr.f32.gmra.mxu0 %v2500
  %v2639 = vpop.f32.mrf.mxu0
  %v2640 = vadd.f32 0.0, %v2639
  %v2641 = vpop.f32.mrf.mxu0
  %v2642 = vadd.f32 0.0, %v2641
  %2643 = vdwg.mxu0
  %v2644 = vadd.f32 %v1679, %v2569
  %v2645 = vadd.f32 %v1681, %v2571
  %v2646 = vadd.f32 %v1756, %v2640
  %v2647 = vadd.f32 %v1758, %v2642
  %v2648 = vxor.u32 %v2644, 2147483648
  %v2649 = vxor.u32 %v2645, 2147483648
  %v2650 = vxor.u32 %v2646, 2147483648
  %v2651 = vmul.f32 %v2648, 1.442695
  %v2652 = vpow.pop %v2651
  %v2653 = vmul.f32 %v2649, 1.442695
  %v2654 = vpow.pop %v2653
  %v2655 = vmul.f32 %v2650, 1.442695
  %v2656 = vpow.pop %v2655
  %v2657 = vadd.f32 %v2652, 1.0
  %v2658 = vadd.f32 %v2654, 1.0
  %v2659 = vadd.f32 %v2656, 1.0
  %v2660 = vrcp.pop %v2657
  %v2661 = vmul.f32 1.0, %v2660
  %v2662 = vrcp.pop %v2658
  %v2663 = vmul.f32 1.0, %v2662
  %v2664 = vrcp.pop %v2659
  %v2665 = vmul.f32 1.0, %v2664
  %v2666 = vtanh.pop %v2647
  %v2668 = vrot.slane %v2494, 6
  %v2670 = vmul.f32 %v2663, %v2668
  %v2671 = vmul.f32 %v2661, %v2666
  %v2672 = vadd.f32 %v2670, %v2671
  %v2673 = vtanh.pop %v2672
  %v2674 = vmul.f32 %v2665, %v2673
  %2675 = vst [vmem:[#allocation2 + $0x8] sm:$0x3] %v2674
  %2676 = vst [vmem:[#allocation3 + $0x6] sm:$0x3] %v2674
  %2677 = vmatprep.subr.mxu0 %v1576
  %2678 = vmatpush1.msra.mxu0 %v1575
  %2679 = vmatprep.subr.mxu0 %v1572
  %2680 = vmatpush1.msra.mxu0 %v1571
  %2681 = vmatprep.subr.mxu0 %v1568
  %2682 = vmatpush1.msra.mxu0 %v1567
  %2683 = vmatprep.subr.mxu0 %v1564
  %2684 = vmatpush1.msra.mxu0 %v1563
  %2685 = vmatprep.subr.mxu0 %v1560
  %2686 = vmatpush1.msra.mxu0 %v1559
  %2687 = vmatprep.subr.mxu0 %v1556
  %2688 = vmatpush1.msra.mxu0 %v1555
  %2689 = vmatprep.subr.mxu0 %v1552
  %2690 = vmatpush1.msra.mxu0 %v1551
  %2691 = vmatprep.subr.mxu0 %v1548
  %2692 = vmatpush1.msra.mxu0 %v1547
  %2693 = vmatprep.subr.mxu0 %v1544
  %2694 = vmatpush1.msra.mxu0 %v1543
  %2695 = vmatprep.subr.mxu0 %v1540
  %2696 = vmatpush1.msra.mxu0 %v1539
  %2697 = vmatprep.subr.mxu0 %v1536
  %2698 = vmatpush1.msra.mxu0 %v1535
  %2699 = vmatprep.subr.mxu0 %v1532
  %2700 = vmatpush1.msra.mxu0 %v1531
  %2701 = vmatprep.subr.mxu0 %v1528
  %2702 = vmatpush1.msra.mxu0 %v1527
  %2703 = vmatprep.subr.mxu0 %v1524
  %2704 = vmatpush1.msra.mxu0 %v1523
  %2705 = vmatprep.subr.mxu0 %v1520
  %2706 = vmatpush1.msra.mxu0 %v1519
  %2707 = vmatprep.subr.mxu0 %v1516
  %2708 = vmatpush1.msra.mxu0 %v1515
  %2709 = vmatprep.subr.mxu0 0.0
  %2710 = vmatpush2.msra.mxu0 0.0
  %2711 = vmatprep.subr.mxu0 0.0
  %2712 = vmatpush2.msra.mxu0 0.0
  %2713 = vmatprep.subr.mxu0 0.0
  %2714 = vmatpush2.msra.mxu0 0.0
  %2715 = vmatprep.subr.mxu0 0.0
  %2716 = vmatpush2.msra.mxu0 0.0
  %2717 = vmatprep.subr.mxu0 0.0
  %2718 = vmatpush2.msra.mxu0 0.0
  %2719 = vmatprep.subr.mxu0 0.0
  %2720 = vmatpush2.msra.mxu0 0.0
  %2721 = vmatprep.subr.mxu0 0.0
  %2722 = vmatpush2.msra.mxu0 0.0
  %2723 = vmatprep.subr.mxu0 0.0
  %2724 = vmatpush2.msra.mxu0 0.0
  %2725 = vmatprep.subr.mxu0 0.0
  %2726 = vmatpush2.msra.mxu0 0.0
  %2727 = vmatprep.subr.mxu0 0.0
  %2728 = vmatpush2.msra.mxu0 0.0
  %2729 = vmatprep.subr.mxu0 0.0
  %2730 = vmatpush2.msra.mxu0 0.0
  %2731 = vmatprep.subr.mxu0 0.0
  %2732 = vmatpush2.msra.mxu0 0.0
  %2733 = vmatprep.subr.mxu0 0.0
  %2734 = vmatpush2.msra.mxu0 0.0
  %2735 = vmatprep.subr.mxu0 0.0
  %2736 = vmatpush2.msra.mxu0 0.0
  %2737 = vmatprep.subr.mxu0 0.0
  %2738 = vmatpush2.msra.mxu0 0.0
  %2739 = vmatprep.subr.mxu0 0.0
  %2740 = vmatpush2.msra.mxu0 0.0
  %2741 = vmatprep.mubr.f32.mxu0 0.0
  %2742 = vmatmul.mubr.f32.gmra.mxu0 %v2674
  %v2743 = vpop.f32.mrf.mxu0
  %v2744 = vadd.f32 0.0, %v2743
  %v2745 = vpop.f32.mrf.mxu0
  %v2746 = vadd.f32 0.0, %v2745
  %2747 = vdwg.mxu0
  %2748 = vmatprep.subr.mxu0 %v1578
  %2749 = vmatpush1.msra.mxu0 %v1577
  %2750 = vmatprep.subr.mxu0 %v1574
  %2751 = vmatpush1.msra.mxu0 %v1573
  %2752 = vmatprep.subr.mxu0 %v1570
  %2753 = vmatpush1.msra.mxu0 %v1569
  %2754 = vmatprep.subr.mxu0 %v1566
  %2755 = vmatpush1.msra.mxu0 %v1565
  %2756 = vmatprep.subr.mxu0 %v1562
  %2757 = vmatpush1.msra.mxu0 %v1561
  %2758 = vmatprep.subr.mxu0 %v1558
  %2759 = vmatpush1.msra.mxu0 %v1557
  %2760 = vmatprep.subr.mxu0 %v1554
  %2761 = vmatpush1.msra.mxu0 %v1553
  %2762 = vmatprep.subr.mxu0 %v1550
  %2763 = vmatpush1.msra.mxu0 %v1549
  %2764 = vmatprep.subr.mxu0 %v1546
  %2765 = vmatpush1.msra.mxu0 %v1545
  %2766 = vmatprep.subr.mxu0 %v1542
  %2767 = vmatpush1.msra.mxu0 %v1541
  %2768 = vmatprep.subr.mxu0 %v1538
  %2769 = vmatpush1.msra.mxu0 %v1537
  %2770 = vmatprep.subr.mxu0 %v1534
  %2771 = vmatpush1.msra.mxu0 %v1533
  %2772 = vmatprep.subr.mxu0 %v1530
  %2773 = vmatpush1.msra.mxu0 %v1529
  %2774 = vmatprep.subr.mxu0 %v1526
  %2775 = vmatpush1.msra.mxu0 %v1525
  %2776 = vmatprep.subr.mxu0 %v1522
  %2777 = vmatpush1.msra.mxu0 %v1521
  %2778 = vmatprep.subr.mxu0 %v1518
  %2779 = vmatpush1.msra.mxu0 %v1517
  %2780 = vmatprep.subr.mxu0 0.0
  %2781 = vmatpush2.msra.mxu0 0.0
  %2782 = vmatprep.subr.mxu0 0.0
  %2783 = vmatpush2.msra.mxu0 0.0
  %2784 = vmatprep.subr.mxu0 0.0
  %2785 = vmatpush2.msra.mxu0 0.0
  %2786 = vmatprep.subr.mxu0 0.0
  %2787 = vmatpush2.msra.mxu0 0.0
  %2788 = vmatprep.subr.mxu0 0.0
  %2789 = vmatpush2.msra.mxu0 0.0
  %2790 = vmatprep.subr.mxu0 0.0
  %2791 = vmatpush2.msra.mxu0 0.0
  %2792 = vmatprep.subr.mxu0 0.0
  %2793 = vmatpush2.msra.mxu0 0.0
  %2794 = vmatprep.subr.mxu0 0.0
  %2795 = vmatpush2.msra.mxu0 0.0
  %2796 = vmatprep.subr.mxu0 0.0
  %2797 = vmatpush2.msra.mxu0 0.0
  %2798 = vmatprep.subr.mxu0 0.0
  %2799 = vmatpush2.msra.mxu0 0.0
  %2800 = vmatprep.subr.mxu0 0.0
  %2801 = vmatpush2.msra.mxu0 0.0
  %2802 = vmatprep.subr.mxu0 0.0
  %2803 = vmatpush2.msra.mxu0 0.0
  %2804 = vmatprep.subr.mxu0 0.0
  %2805 = vmatpush2.msra.mxu0 0.0
  %2806 = vmatprep.subr.mxu0 0.0
  %2807 = vmatpush2.msra.mxu0 0.0
  %2808 = vmatprep.subr.mxu0 0.0
  %2809 = vmatpush2.msra.mxu0 0.0
  %2810 = vmatprep.subr.mxu0 0.0
  %2811 = vmatpush2.msra.mxu0 0.0
  %2812 = vmatprep.mubr.f32.mxu0 0.0
  %2813 = vmatmul.mubr.f32.gmra.mxu0 %v2674
  %v2814 = vpop.f32.mrf.mxu0
  %v2815 = vadd.f32 0.0, %v2814
  %v2816 = vpop.f32.mrf.mxu0
  %v2817 = vadd.f32 0.0, %v2816
  %2818 = vdwg.mxu0
  %v2823 = vrot.slane %v2744, 6
  %v2824 = vrot.slane %v2746, 6
  %v2825 = vrot.slane %v2815, 6
  %v2826 = vrot.slane %v2817, 6
  %v2831 = vadd.f32 %v1679, %v2823
  %v2832 = vadd.f32 %v1681, %v2824
  %v2833 = vadd.f32 %v1756, %v2825
  %v2834 = vadd.f32 %v1758, %v2826
  %v2835 = vxor.u32 %v2831, 2147483648
  %v2836 = vxor.u32 %v2832, 2147483648
  %v2837 = vxor.u32 %v2833, 2147483648
  %v2838 = vmul.f32 %v2835, 1.442695
  %v2839 = vpow.pop %v2838
  %v2840 = vmul.f32 %v2836, 1.442695
  %v2841 = vpow.pop %v2840
  %v2842 = vmul.f32 %v2837, 1.442695
  %v2843 = vpow.pop %v2842
  %v2844 = vadd.f32 %v2839, 1.0
  %v2845 = vadd.f32 %v2841, 1.0
  %v2846 = vadd.f32 %v2843, 1.0
  %v2847 = vrcp.pop %v2844
  %v2848 = vmul.f32 1.0, %v2847
  %v2849 = vrcp.pop %v2845
  %v2850 = vmul.f32 1.0, %v2849
  %v2851 = vrcp.pop %v2846
  %v2852 = vmul.f32 1.0, %v2851
  %v2853 = vtanh.pop %v2834
  %v2855 = vrot.slane %v2672, 6
  %v2857 = vmul.f32 %v2850, %v2855
  %v2858 = vmul.f32 %v2848, %v2853
  %v2859 = vadd.f32 %v2857, %v2858
  %v2860 = vtanh.pop %v2859
  %v2861 = vmul.f32 %v2852, %v2860
  %2862 = vst [vmem:[#allocation2 + $0x8] sm:$0xc] %v2861
  %2863 = vst [vmem:[#allocation3 + $0x2] sm:$0xc] %v2861
  %v2865 = vrot.slane %v2861, 2
  %2867 = vmatprep.subr.mxu0 %v1576
  %2868 = vmatpush1.msra.mxu0 %v1575
  %2869 = vmatprep.subr.mxu0 %v1572
  %2870 = vmatpush1.msra.mxu0 %v1571
  %2871 = vmatprep.subr.mxu0 %v1568
  %2872 = vmatpush1.msra.mxu0 %v1567
  %2873 = vmatprep.subr.mxu0 %v1564
  %2874 = vmatpush1.msra.mxu0 %v1563
  %2875 = vmatprep.subr.mxu0 %v1560
  %2876 = vmatpush1.msra.mxu0 %v1559
  %2877 = vmatprep.subr.mxu0 %v1556
  %2878 = vmatpush1.msra.mxu0 %v1555
  %2879 = vmatprep.subr.mxu0 %v1552
  %2880 = vmatpush1.msra.mxu0 %v1551
  %2881 = vmatprep.subr.mxu0 %v1548
  %2882 = vmatpush1.msra.mxu0 %v1547
  %2883 = vmatprep.subr.mxu0 %v1544
  %2884 = vmatpush1.msra.mxu0 %v1543
  %2885 = vmatprep.subr.mxu0 %v1540
  %2886 = vmatpush1.msra.mxu0 %v1539
  %2887 = vmatprep.subr.mxu0 %v1536
  %2888 = vmatpush1.msra.mxu0 %v1535
  %2889 = vmatprep.subr.mxu0 %v1532
  %2890 = vmatpush1.msra.mxu0 %v1531
  %2891 = vmatprep.subr.mxu0 %v1528
  %2892 = vmatpush1.msra.mxu0 %v1527
  %2893 = vmatprep.subr.mxu0 %v1524
  %2894 = vmatpush1.msra.mxu0 %v1523
  %2895 = vmatprep.subr.mxu0 %v1520
  %2896 = vmatpush1.msra.mxu0 %v1519
  %2897 = vmatprep.subr.mxu0 %v1516
  %2898 = vmatpush1.msra.mxu0 %v1515
  %2899 = vmatprep.subr.mxu0 0.0
  %2900 = vmatpush2.msra.mxu0 0.0
  %2901 = vmatprep.subr.mxu0 0.0
  %2902 = vmatpush2.msra.mxu0 0.0
  %2903 = vmatprep.subr.mxu0 0.0
  %2904 = vmatpush2.msra.mxu0 0.0
  %2905 = vmatprep.subr.mxu0 0.0
  %2906 = vmatpush2.msra.mxu0 0.0
  %2907 = vmatprep.subr.mxu0 0.0
  %2908 = vmatpush2.msra.mxu0 0.0
  %2909 = vmatprep.subr.mxu0 0.0
  %2910 = vmatpush2.msra.mxu0 0.0
  %2911 = vmatprep.subr.mxu0 0.0
  %2912 = vmatpush2.msra.mxu0 0.0
  %2913 = vmatprep.subr.mxu0 0.0
  %2914 = vmatpush2.msra.mxu0 0.0
  %2915 = vmatprep.subr.mxu0 0.0
  %2916 = vmatpush2.msra.mxu0 0.0
  %2917 = vmatprep.subr.mxu0 0.0
  %2918 = vmatpush2.msra.mxu0 0.0
  %2919 = vmatprep.subr.mxu0 0.0
  %2920 = vmatpush2.msra.mxu0 0.0
  %2921 = vmatprep.subr.mxu0 0.0
  %2922 = vmatpush2.msra.mxu0 0.0
  %2923 = vmatprep.subr.mxu0 0.0
  %2924 = vmatpush2.msra.mxu0 0.0
  %2925 = vmatprep.subr.mxu0 0.0
  %2926 = vmatpush2.msra.mxu0 0.0
  %2927 = vmatprep.subr.mxu0 0.0
  %2928 = vmatpush2.msra.mxu0 0.0
  %2929 = vmatprep.subr.mxu0 0.0
  %2930 = vmatpush2.msra.mxu0 0.0
  %2931 = vmatprep.mubr.f32.mxu0 0.0
  %2932 = vmatmul.mubr.f32.gmra.mxu0 %v2865
  %v2933 = vpop.f32.mrf.mxu0
  %v2934 = vadd.f32 0.0, %v2933
  %v2935 = vpop.f32.mrf.mxu0
  %v2936 = vadd.f32 0.0, %v2935
  %2937 = vdwg.mxu0
  %2938 = vmatprep.subr.mxu0 %v1578
  %2939 = vmatpush1.msra.mxu0 %v1577
  %2940 = vmatprep.subr.mxu0 %v1574
  %2941 = vmatpush1.msra.mxu0 %v1573
  %2942 = vmatprep.subr.mxu0 %v1570
  %2943 = vmatpush1.msra.mxu0 %v1569
  %2944 = vmatprep.subr.mxu0 %v1566
  %2945 = vmatpush1.msra.mxu0 %v1565
  %2946 = vmatprep.subr.mxu0 %v1562
  %2947 = vmatpush1.msra.mxu0 %v1561
  %2948 = vmatprep.subr.mxu0 %v1558
  %2949 = vmatpush1.msra.mxu0 %v1557
  %2950 = vmatprep.subr.mxu0 %v1554
  %2951 = vmatpush1.msra.mxu0 %v1553
  %2952 = vmatprep.subr.mxu0 %v1550
  %2953 = vmatpush1.msra.mxu0 %v1549
  %2954 = vmatprep.subr.mxu0 %v1546
  %2955 = vmatpush1.msra.mxu0 %v1545
  %2956 = vmatprep.subr.mxu0 %v1542
  %2957 = vmatpush1.msra.mxu0 %v1541
  %2958 = vmatprep.subr.mxu0 %v1538
  %2959 = vmatpush1.msra.mxu0 %v1537
  %2960 = vmatprep.subr.mxu0 %v1534
  %2961 = vmatpush1.msra.mxu0 %v1533
  %2962 = vmatprep.subr.mxu0 %v1530
  %2963 = vmatpush1.msra.mxu0 %v1529
  %2964 = vmatprep.subr.mxu0 %v1526
  %2965 = vmatpush1.msra.mxu0 %v1525
  %2966 = vmatprep.subr.mxu0 %v1522
  %2967 = vmatpush1.msra.mxu0 %v1521
  %2968 = vmatprep.subr.mxu0 %v1518
  %2969 = vmatpush1.msra.mxu0 %v1517
  %2970 = vmatprep.subr.mxu0 0.0
  %2971 = vmatpush2.msra.mxu0 0.0
  %2972 = vmatprep.subr.mxu0 0.0
  %2973 = vmatpush2.msra.mxu0 0.0
  %2974 = vmatprep.subr.mxu0 0.0
  %2975 = vmatpush2.msra.mxu0 0.0
  %2976 = vmatprep.subr.mxu0 0.0
  %2977 = vmatpush2.msra.mxu0 0.0
  %2978 = vmatprep.subr.mxu0 0.0
  %2979 = vmatpush2.msra.mxu0 0.0
  %2980 = vmatprep.subr.mxu0 0.0
  %2981 = vmatpush2.msra.mxu0 0.0
  %2982 = vmatprep.subr.mxu0 0.0
  %2983 = vmatpush2.msra.mxu0 0.0
  %2984 = vmatprep.subr.mxu0 0.0
  %2985 = vmatpush2.msra.mxu0 0.0
  %2986 = vmatprep.subr.mxu0 0.0
  %2987 = vmatpush2.msra.mxu0 0.0
  %2988 = vmatprep.subr.mxu0 0.0
  %2989 = vmatpush2.msra.mxu0 0.0
  %2990 = vmatprep.subr.mxu0 0.0
  %2991 = vmatpush2.msra.mxu0 0.0
  %2992 = vmatprep.subr.mxu0 0.0
  %2993 = vmatpush2.msra.mxu0 0.0
  %2994 = vmatprep.subr.mxu0 0.0
  %2995 = vmatpush2.msra.mxu0 0.0
  %2996 = vmatprep.subr.mxu0 0.0
  %2997 = vmatpush2.msra.mxu0 0.0
  %2998 = vmatprep.subr.mxu0 0.0
  %2999 = vmatpush2.msra.mxu0 0.0
  %3000 = vmatprep.subr.mxu0 0.0
  %3001 = vmatpush2.msra.mxu0 0.0
  %3002 = vmatprep.mubr.f32.mxu0 0.0
  %3003 = vmatmul.mubr.f32.gmra.mxu0 %v2865
  %v3004 = vpop.f32.mrf.mxu0
  %v3005 = vadd.f32 0.0, %v3004
  %v3006 = vpop.f32.mrf.mxu0
  %v3007 = vadd.f32 0.0, %v3006
  %3008 = vdwg.mxu0
  %v3013 = vrot.slane %v2934, 4
  %v3014 = vrot.slane %v2936, 4
  %v3015 = vrot.slane %v3005, 4
  %v3016 = vrot.slane %v3007, 4
  %v3021 = vadd.f32 %v1679, %v3013
  %v3022 = vadd.f32 %v1681, %v3014
  %v3023 = vadd.f32 %v1756, %v3015
  %v3024 = vadd.f32 %v1758, %v3016
  %v3025 = vxor.u32 %v3021, 2147483648
  %v3026 = vxor.u32 %v3022, 2147483648
  %v3027 = vxor.u32 %v3023, 2147483648
  %v3028 = vmul.f32 %v3025, 1.442695
  %v3029 = vpow.pop %v3028
  %v3030 = vmul.f32 %v3026, 1.442695
  %v3031 = vpow.pop %v3030
  %v3032 = vmul.f32 %v3027, 1.442695
  %v3033 = vpow.pop %v3032
  %v3034 = vadd.f32 %v3029, 1.0
  %v3035 = vadd.f32 %v3031, 1.0
  %v3036 = vadd.f32 %v3033, 1.0
  %v3037 = vrcp.pop %v3034
  %v3038 = vmul.f32 1.0, %v3037
  %v3039 = vrcp.pop %v3035
  %v3040 = vmul.f32 1.0, %v3039
  %v3041 = vrcp.pop %v3036
  %v3042 = vmul.f32 1.0, %v3041
  %v3043 = vtanh.pop %v3024
  %v3045 = vrot.slane %v2859, 6
  %v3047 = vmul.f32 %v3040, %v3045
  %v3048 = vmul.f32 %v3038, %v3043
  %v3049 = vadd.f32 %v3047, %v3048
  %v3050 = vtanh.pop %v3049
  %v3051 = vmul.f32 %v3042, %v3050
  %3052 = vst [vmem:[#allocation2 + $0x8] sm:$0x30] %v3051
  %3053 = vst [vmem:[#allocation3 - $0x2] sm:$0x30] %v3051
  %v3055 = vrot.slane %v3051, 4
  %3057 = vmatprep.subr.mxu0 %v1576
  %3058 = vmatpush1.msra.mxu0 %v1575
  %3059 = vmatprep.subr.mxu0 %v1572
  %3060 = vmatpush1.msra.mxu0 %v1571
  %3061 = vmatprep.subr.mxu0 %v1568
  %3062 = vmatpush1.msra.mxu0 %v1567
  %3063 = vmatprep.subr.mxu0 %v1564
  %3064 = vmatpush1.msra.mxu0 %v1563
  %3065 = vmatprep.subr.mxu0 %v1560
  %3066 = vmatpush1.msra.mxu0 %v1559
  %3067 = vmatprep.subr.mxu0 %v1556
  %3068 = vmatpush1.msra.mxu0 %v1555
  %3069 = vmatprep.subr.mxu0 %v1552
  %3070 = vmatpush1.msra.mxu0 %v1551
  %3071 = vmatprep.subr.mxu0 %v1548
  %3072 = vmatpush1.msra.mxu0 %v1547
  %3073 = vmatprep.subr.mxu0 %v1544
  %3074 = vmatpush1.msra.mxu0 %v1543
  %3075 = vmatprep.subr.mxu0 %v1540
  %3076 = vmatpush1.msra.mxu0 %v1539
  %3077 = vmatprep.subr.mxu0 %v1536
  %3078 = vmatpush1.msra.mxu0 %v1535
  %3079 = vmatprep.subr.mxu0 %v1532
  %3080 = vmatpush1.msra.mxu0 %v1531
  %3081 = vmatprep.subr.mxu0 %v1528
  %3082 = vmatpush1.msra.mxu0 %v1527
  %3083 = vmatprep.subr.mxu0 %v1524
  %3084 = vmatpush1.msra.mxu0 %v1523
  %3085 = vmatprep.subr.mxu0 %v1520
  %3086 = vmatpush1.msra.mxu0 %v1519
  %3087 = vmatprep.subr.mxu0 %v1516
  %3088 = vmatpush1.msra.mxu0 %v1515
  %3089 = vmatprep.subr.mxu0 0.0
  %3090 = vmatpush2.msra.mxu0 0.0
  %3091 = vmatprep.subr.mxu0 0.0
  %3092 = vmatpush2.msra.mxu0 0.0
  %3093 = vmatprep.subr.mxu0 0.0
  %3094 = vmatpush2.msra.mxu0 0.0
  %3095 = vmatprep.subr.mxu0 0.0
  %3096 = vmatpush2.msra.mxu0 0.0
  %3097 = vmatprep.subr.mxu0 0.0
  %3098 = vmatpush2.msra.mxu0 0.0
  %3099 = vmatprep.subr.mxu0 0.0
  %3100 = vmatpush2.msra.mxu0 0.0
  %3101 = vmatprep.subr.mxu0 0.0
  %3102 = vmatpush2.msra.mxu0 0.0
  %3103 = vmatprep.subr.mxu0 0.0
  %3104 = vmatpush2.msra.mxu0 0.0
  %3105 = vmatprep.subr.mxu0 0.0
  %3106 = vmatpush2.msra.mxu0 0.0
  %3107 = vmatprep.subr.mxu0 0.0
  %3108 = vmatpush2.msra.mxu0 0.0
  %3109 = vmatprep.subr.mxu0 0.0
  %3110 = vmatpush2.msra.mxu0 0.0
  %3111 = vmatprep.subr.mxu0 0.0
  %3112 = vmatpush2.msra.mxu0 0.0
  %3113 = vmatprep.subr.mxu0 0.0
  %3114 = vmatpush2.msra.mxu0 0.0
  %3115 = vmatprep.subr.mxu0 0.0
  %3116 = vmatpush2.msra.mxu0 0.0
  %3117 = vmatprep.subr.mxu0 0.0
  %3118 = vmatpush2.msra.mxu0 0.0
  %3119 = vmatprep.subr.mxu0 0.0
  %3120 = vmatpush2.msra.mxu0 0.0
  %3121 = vmatprep.mubr.f32.mxu0 0.0
  %3122 = vmatmul.mubr.f32.gmra.mxu0 %v3055
  %v3123 = vpop.f32.mrf.mxu0
  %v3124 = vadd.f32 0.0, %v3123
  %v3125 = vpop.f32.mrf.mxu0
  %v3126 = vadd.f32 0.0, %v3125
  %3127 = vdwg.mxu0
  %3128 = vmatprep.subr.mxu0 %v1578
  %3129 = vmatpush1.msra.mxu0 %v1577
  %3130 = vmatprep.subr.mxu0 %v1574
  %3131 = vmatpush1.msra.mxu0 %v1573
  %3132 = vmatprep.subr.mxu0 %v1570
  %3133 = vmatpush1.msra.mxu0 %v1569
  %3134 = vmatprep.subr.mxu0 %v1566
  %3135 = vmatpush1.msra.mxu0 %v1565
  %3136 = vmatprep.subr.mxu0 %v1562
  %3137 = vmatpush1.msra.mxu0 %v1561
  %3138 = vmatprep.subr.mxu0 %v1558
  %3139 = vmatpush1.msra.mxu0 %v1557
  %3140 = vmatprep.subr.mxu0 %v1554
  %3141 = vmatpush1.msra.mxu0 %v1553
  %3142 = vmatprep.subr.mxu0 %v1550
  %3143 = vmatpush1.msra.mxu0 %v1549
  %3144 = vmatprep.subr.mxu0 %v1546
  %3145 = vmatpush1.msra.mxu0 %v1545
  %3146 = vmatprep.subr.mxu0 %v1542
  %3147 = vmatpush1.msra.mxu0 %v1541
  %3148 = vmatprep.subr.mxu0 %v1538
  %3149 = vmatpush1.msra.mxu0 %v1537
  %3150 = vmatprep.subr.mxu0 %v1534
  %3151 = vmatpush1.msra.mxu0 %v1533
  %3152 = vmatprep.subr.mxu0 %v1530
  %3153 = vmatpush1.msra.mxu0 %v1529
  %3154 = vmatprep.subr.mxu0 %v1526
  %3155 = vmatpush1.msra.mxu0 %v1525
  %3156 = vmatprep.subr.mxu0 %v1522
  %3157 = vmatpush1.msra.mxu0 %v1521
  %3158 = vmatprep.subr.mxu0 %v1518
  %3159 = vmatpush1.msra.mxu0 %v1517
  %3160 = vmatprep.subr.mxu0 0.0
  %3161 = vmatpush2.msra.mxu0 0.0
  %3162 = vmatprep.subr.mxu0 0.0
  %3163 = vmatpush2.msra.mxu0 0.0
  %3164 = vmatprep.subr.mxu0 0.0
  %3165 = vmatpush2.msra.mxu0 0.0
  %3166 = vmatprep.subr.mxu0 0.0
  %3167 = vmatpush2.msra.mxu0 0.0
  %3168 = vmatprep.subr.mxu0 0.0
  %3169 = vmatpush2.msra.mxu0 0.0
  %3170 = vmatprep.subr.mxu0 0.0
  %3171 = vmatpush2.msra.mxu0 0.0
  %3172 = vmatprep.subr.mxu0 0.0
  %3173 = vmatpush2.msra.mxu0 0.0
  %3174 = vmatprep.subr.mxu0 0.0
  %3175 = vmatpush2.msra.mxu0 0.0
  %3176 = vmatprep.subr.mxu0 0.0
  %3177 = vmatpush2.msra.mxu0 0.0
  %3178 = vmatprep.subr.mxu0 0.0
  %3179 = vmatpush2.msra.mxu0 0.0
  %3180 = vmatprep.subr.mxu0 0.0
  %3181 = vmatpush2.msra.mxu0 0.0
  %3182 = vmatprep.subr.mxu0 0.0
  %3183 = vmatpush2.msra.mxu0 0.0
  %3184 = vmatprep.subr.mxu0 0.0
  %3185 = vmatpush2.msra.mxu0 0.0
  %3186 = vmatprep.subr.mxu0 0.0
  %3187 = vmatpush2.msra.mxu0 0.0
  %3188 = vmatprep.subr.mxu0 0.0
  %3189 = vmatpush2.msra.mxu0 0.0
  %3190 = vmatprep.subr.mxu0 0.0
  %3191 = vmatpush2.msra.mxu0 0.0
  %3192 = vmatprep.mubr.f32.mxu0 0.0
  %3193 = vmatmul.mubr.f32.gmra.mxu0 %v3055
  %v3194 = vpop.f32.mrf.mxu0
  %v3195 = vadd.f32 0.0, %v3194
  %v3196 = vpop.f32.mrf.mxu0
  %v3197 = vadd.f32 0.0, %v3196
  %3198 = vdwg.mxu0
  %v3203 = vrot.slane %v3124, 2
  %v3204 = vrot.slane %v3126, 2
  %v3205 = vrot.slane %v3195, 2
  %v3206 = vrot.slane %v3197, 2
  %v3211 = vadd.f32 %v1679, %v3203
  %v3212 = vadd.f32 %v1681, %v3204
  %v3213 = vadd.f32 %v1756, %v3205
  %v3214 = vadd.f32 %v1758, %v3206
  %v3215 = vxor.u32 %v3211, 2147483648
  %v3216 = vxor.u32 %v3212, 2147483648
  %v3217 = vxor.u32 %v3213, 2147483648
  %v3218 = vmul.f32 %v3215, 1.442695
  %v3219 = vpow.pop %v3218
  %v3220 = vmul.f32 %v3216, 1.442695
  %v3221 = vpow.pop %v3220
  %v3222 = vmul.f32 %v3217, 1.442695
  %v3223 = vpow.pop %v3222
  %v3224 = vadd.f32 %v3219, 1.0
  %v3225 = vadd.f32 %v3221, 1.0
  %v3226 = vadd.f32 %v3223, 1.0
  %v3227 = vrcp.pop %v3224
  %v3228 = vmul.f32 1.0, %v3227
  %v3229 = vrcp.pop %v3225
  %v3230 = vmul.f32 1.0, %v3229
  %v3231 = vrcp.pop %v3226
  %v3232 = vmul.f32 1.0, %v3231
  %v3233 = vtanh.pop %v3214
  %v3235 = vrot.slane %v3049, 6
  %v3237 = vmul.f32 %v3230, %v3235
  %v3238 = vmul.f32 %v3228, %v3233
  %v3239 = vadd.f32 %v3237, %v3238
  %v3240 = vtanh.pop %v3239
  %v3241 = vmul.f32 %v3232, %v3240
  %3242 = vst [vmem:[#allocation2 + $0x8] sm:$0xc0] %v3241
  %3243 = vst [vmem:[#allocation3 - $0x6] sm:$0xc0] %v3241
  %v3244 = vld [vmem:[#allocation2] sm:$0xff]
  %v3245 = vld [vmem:[#allocation2 + $0x8] sm:$0xff]
  %v3246 = vld [vmem:[#allocation3] sm:$0xff]
  %v3247 = vld [vmem:[#allocation3 + $0x8] sm:$0xff]
  %v3248 = vld [vmem:[%s4] sm:$0xff]
  %v3249 = vld [vmem:[%s4 + $0x8] sm:$0xff]
  %v3250 = vld [vmem:[%s4 + $0x10] sm:$0xff]
  %v3251 = vld [vmem:[%s4 + $0x18] sm:$0xff]
  %v3252 = vld [vmem:[%s4 + $0x20] sm:$0xff]
  %v3253 = vld [vmem:[%s4 + $0x28] sm:$0xff]
  %v3254 = vld [vmem:[%s4 + $0x30] sm:$0xff]
  %v3255 = vld [vmem:[%s4 + $0x38] sm:$0xff]
  %v3256 = vld [vmem:[%s4 + $0x40] sm:$0xff]
  %v3257 = vld [vmem:[%s4 + $0x48] sm:$0xff]
  %v3258 = vld [vmem:[%s4 + $0x50] sm:$0xff]
  %v3259 = vld [vmem:[%s4 + $0x58] sm:$0xff]
  %v3260 = vld [vmem:[%s4 + $0x60] sm:$0xff]
  %v3261 = vld [vmem:[%s4 + $0x68] sm:$0xff]
  %v3262 = vld [vmem:[%s4 + $0x70] sm:$0xff]
  %v3263 = vld [vmem:[%s4 + $0x78] sm:$0xff]
  %v3264 = vld [vmem:[%s4 + $0x80] sm:$0xff]
  %v3265 = vld [vmem:[%s4 + $0x88] sm:$0xff]
  %v3266 = vld [vmem:[%s4 + $0x90] sm:$0xff]
  %v3267 = vld [vmem:[%s4 + $0x98] sm:$0xff]
  %v3268 = vld [vmem:[%s4 + $0xa0] sm:$0xff]
  %v3269 = vld [vmem:[%s4 + $0xa8] sm:$0xff]
  %v3270 = vld [vmem:[%s4 + $0xb0] sm:$0xff]
  %v3271 = vld [vmem:[%s4 + $0xb8] sm:$0xff]
  %v3272 = vld [vmem:[%s4 + $0xc0] sm:$0xff]
  %v3273 = vld [vmem:[%s4 + $0xc8] sm:$0xff]
  %v3274 = vld [vmem:[%s4 + $0xd0] sm:$0xff]
  %v3275 = vld [vmem:[%s4 + $0xd8] sm:$0xff]
  %v3276 = vld [vmem:[%s4 + $0xe0] sm:$0xff]
  %v3277 = vld [vmem:[%s4 + $0xe8] sm:$0xff]
  %v3278 = vld [vmem:[%s4 + $0xf0] sm:$0xff]
  %v3279 = vld [vmem:[%s4 + $0xf8] sm:$0xff]
  %v3280 = vld [vmem:[%s4 + $0x100] sm:$0xff]
  %v3281 = vld [vmem:[%s4 + $0x108] sm:$0xff]
  %v3282 = vld [vmem:[%s4 + $0x110] sm:$0xff]
  %v3283 = vld [vmem:[%s4 + $0x118] sm:$0xff]
  %v3284 = vld [vmem:[%s4 + $0x120] sm:$0xff]
  %v3285 = vld [vmem:[%s4 + $0x128] sm:$0xff]
  %v3286 = vld [vmem:[%s4 + $0x130] sm:$0xff]
  %v3287 = vld [vmem:[%s4 + $0x138] sm:$0xff]
  %v3288 = vld [vmem:[%s4 + $0x140] sm:$0xff]
  %v3289 = vld [vmem:[%s4 + $0x148] sm:$0xff]
  %v3290 = vld [vmem:[%s4 + $0x150] sm:$0xff]
  %v3291 = vld [vmem:[%s4 + $0x158] sm:$0xff]
  %v3292 = vld [vmem:[%s4 + $0x160] sm:$0xff]
  %v3293 = vld [vmem:[%s4 + $0x168] sm:$0xff]
  %v3294 = vld [vmem:[%s4 + $0x170] sm:$0xff]
  %v3295 = vld [vmem:[%s4 + $0x178] sm:$0xff]
  %v3296 = vld [vmem:[%s4 + $0x180] sm:$0xff]
  %v3297 = vld [vmem:[%s4 + $0x188] sm:$0xff]
  %v3298 = vld [vmem:[%s4 + $0x190] sm:$0xff]
  %v3299 = vld [vmem:[%s4 + $0x198] sm:$0xff]
  %v3300 = vld [vmem:[%s4 + $0x1a0] sm:$0xff]
  %v3301 = vld [vmem:[%s4 + $0x1a8] sm:$0xff]
  %v3302 = vld [vmem:[%s4 + $0x1b0] sm:$0xff]
  %v3303 = vld [vmem:[%s4 + $0x1b8] sm:$0xff]
  %v3304 = vld [vmem:[%s4 + $0x1c0] sm:$0xff]
  %v3305 = vld [vmem:[%s4 + $0x1c8] sm:$0xff]
  %v3306 = vld [vmem:[%s4 + $0x1d0] sm:$0xff]
  %v3307 = vld [vmem:[%s4 + $0x1d8] sm:$0xff]
  %v3308 = vld [vmem:[%s4 + $0x1e0] sm:$0xff]
  %v3309 = vld [vmem:[%s4 + $0x1e8] sm:$0xff]
  %v3310 = vld [vmem:[%s4 + $0x1f0] sm:$0xff]
  %v3311 = vld [vmem:[%s4 + $0x1f8] sm:$0xff]
  %v3312 = vld [vmem:[%s4 + $0x200] sm:$0xff]
  %v3313 = vld [vmem:[%s4 + $0x208] sm:$0xff]
  %v3314 = vld [vmem:[%s4 + $0x210] sm:$0xff]
  %v3315 = vld [vmem:[%s4 + $0x218] sm:$0xff]
  %v3316 = vld [vmem:[%s4 + $0x220] sm:$0xff]
  %v3317 = vld [vmem:[%s4 + $0x228] sm:$0xff]
  %v3318 = vld [vmem:[%s4 + $0x230] sm:$0xff]
  %v3319 = vld [vmem:[%s4 + $0x238] sm:$0xff]
  %v3320 = vld [vmem:[%s4 + $0x240] sm:$0xff]
  %v3321 = vld [vmem:[%s4 + $0x248] sm:$0xff]
  %v3322 = vld [vmem:[%s4 + $0x250] sm:$0xff]
  %v3323 = vld [vmem:[%s4 + $0x258] sm:$0xff]
  %v3324 = vld [vmem:[%s4 + $0x260] sm:$0xff]
  %v3325 = vld [vmem:[%s4 + $0x268] sm:$0xff]
  %v3326 = vld [vmem:[%s4 + $0x270] sm:$0xff]
  %v3327 = vld [vmem:[%s4 + $0x278] sm:$0xff]
  %s3328 = scalar_lea.vmem %s4, 640
  %v3329 = vld [vmem:[%s3328] ss:$8 sm:$0x3]
  %3330 = vmatprep.subr.mxu0 %v3311
  %3331 = vmatpush1.msra.mxu0 %v3310
  %3332 = vmatprep.subr.mxu0 %v3309
  %3333 = vmatpush1.msra.mxu0 %v3308
  %3334 = vmatprep.subr.mxu0 %v3307
  %3335 = vmatpush1.msra.mxu0 %v3306
  %3336 = vmatprep.subr.mxu0 %v3305
  %3337 = vmatpush1.msra.mxu0 %v3304
  %3338 = vmatprep.subr.mxu0 %v3303
  %3339 = vmatpush1.msra.mxu0 %v3302
  %3340 = vmatprep.subr.mxu0 %v3301
  %3341 = vmatpush1.msra.mxu0 %v3300
  %3342 = vmatprep.subr.mxu0 %v3299
  %3343 = vmatpush1.msra.mxu0 %v3298
  %3344 = vmatprep.subr.mxu0 %v3297
  %3345 = vmatpush1.msra.mxu0 %v3296
  %3346 = vmatprep.subr.mxu0 %v3295
  %3347 = vmatpush1.msra.mxu0 %v3294
  %3348 = vmatprep.subr.mxu0 %v3293
  %3349 = vmatpush1.msra.mxu0 %v3292
  %3350 = vmatprep.subr.mxu0 %v3291
  %3351 = vmatpush1.msra.mxu0 %v3290
  %3352 = vmatprep.subr.mxu0 %v3289
  %3353 = vmatpush1.msra.mxu0 %v3288
  %3354 = vmatprep.subr.mxu0 %v3287
  %3355 = vmatpush1.msra.mxu0 %v3286
  %3356 = vmatprep.subr.mxu0 %v3285
  %3357 = vmatpush1.msra.mxu0 %v3284
  %3358 = vmatprep.subr.mxu0 %v3283
  %3359 = vmatpush1.msra.mxu0 %v3282
  %3360 = vmatprep.subr.mxu0 %v3281
  %3361 = vmatpush1.msra.mxu0 %v3280
  %3362 = vmatprep.subr.mxu0 0.0
  %3363 = vmatpush2.msra.mxu0 0.0
  %3364 = vmatprep.subr.mxu0 0.0
  %3365 = vmatpush2.msra.mxu0 0.0
  %3366 = vmatprep.subr.mxu0 0.0
  %3367 = vmatpush2.msra.mxu0 0.0
  %3368 = vmatprep.subr.mxu0 0.0
  %3369 = vmatpush2.msra.mxu0 0.0
  %3370 = vmatprep.subr.mxu0 0.0
  %3371 = vmatpush2.msra.mxu0 0.0
  %3372 = vmatprep.subr.mxu0 0.0
  %3373 = vmatpush2.msra.mxu0 0.0
  %3374 = vmatprep.subr.mxu0 0.0
  %3375 = vmatpush2.msra.mxu0 0.0
  %3376 = vmatprep.subr.mxu0 0.0
  %3377 = vmatpush2.msra.mxu0 0.0
  %3378 = vmatprep.subr.mxu0 0.0
  %3379 = vmatpush2.msra.mxu0 0.0
  %3380 = vmatprep.subr.mxu0 0.0
  %3381 = vmatpush2.msra.mxu0 0.0
  %3382 = vmatprep.subr.mxu0 0.0
  %3383 = vmatpush2.msra.mxu0 0.0
  %3384 = vmatprep.subr.mxu0 0.0
  %3385 = vmatpush2.msra.mxu0 0.0
  %3386 = vmatprep.subr.mxu0 0.0
  %3387 = vmatpush2.msra.mxu0 0.0
  %3388 = vmatprep.subr.mxu0 0.0
  %3389 = vmatpush2.msra.mxu0 0.0
  %3390 = vmatprep.subr.mxu0 0.0
  %3391 = vmatpush2.msra.mxu0 0.0
  %3392 = vmatprep.subr.mxu0 0.0
  %3393 = vmatpush2.msra.mxu0 0.0
  %3394 = vmatprep.mubr.f32.mxu0 0.0
  %3395 = vmatmul.mubr.f32.gmra.mxu0 %v3246
  %v3396 = vpop.f32.mrf.mxu0
  %v3397 = vadd.f32 0.0, %v3396
  %v3398 = vpop.f32.mrf.mxu0
  %v3399 = vadd.f32 0.0, %v3398
  %3400 = vmatprep.mubr.f32.mxu0 0.0
  %3401 = vmatmul.mubr.f32.gmra.mxu0 %v3247
  %v3402 = vpop.f32.mrf.mxu0
  %v3403 = vadd.f32 0.0, %v3402
  %v3404 = vpop.f32.mrf.mxu0
  %v3405 = vadd.f32 0.0, %v3404
  %3406 = vdwg.mxu0
  %3407 = vmatprep.subr.mxu0 %v3279
  %3408 = vmatpush1.msra.mxu0 %v3278
  %3409 = vmatprep.subr.mxu0 %v3277
  %3410 = vmatpush1.msra.mxu0 %v3276
  %3411 = vmatprep.subr.mxu0 %v3275
  %3412 = vmatpush1.msra.mxu0 %v3274
  %3413 = vmatprep.subr.mxu0 %v3273
  %3414 = vmatpush1.msra.mxu0 %v3272
  %3415 = vmatprep.subr.mxu0 %v3271
  %3416 = vmatpush1.msra.mxu0 %v3270
  %3417 = vmatprep.subr.mxu0 %v3269
  %3418 = vmatpush1.msra.mxu0 %v3268
  %3419 = vmatprep.subr.mxu0 %v3267
  %3420 = vmatpush1.msra.mxu0 %v3266
  %3421 = vmatprep.subr.mxu0 %v3265
  %3422 = vmatpush1.msra.mxu0 %v3264
  %3423 = vmatprep.subr.mxu0 %v3263
  %3424 = vmatpush1.msra.mxu0 %v3262
  %3425 = vmatprep.subr.mxu0 %v3261
  %3426 = vmatpush1.msra.mxu0 %v3260
  %3427 = vmatprep.subr.mxu0 %v3259
  %3428 = vmatpush1.msra.mxu0 %v3258
  %3429 = vmatprep.subr.mxu0 %v3257
  %3430 = vmatpush1.msra.mxu0 %v3256
  %3431 = vmatprep.subr.mxu0 %v3255
  %3432 = vmatpush1.msra.mxu0 %v3254
  %3433 = vmatprep.subr.mxu0 %v3253
  %3434 = vmatpush1.msra.mxu0 %v3252
  %3435 = vmatprep.subr.mxu0 %v3251
  %3436 = vmatpush1.msra.mxu0 %v3250
  %3437 = vmatprep.subr.mxu0 %v3249
  %3438 = vmatpush1.msra.mxu0 %v3248
  %3439 = vmatprep.subr.mxu0 0.0
  %3440 = vmatpush2.msra.mxu0 0.0
  %3441 = vmatprep.subr.mxu0 0.0
  %3442 = vmatpush2.msra.mxu0 0.0
  %3443 = vmatprep.subr.mxu0 0.0
  %3444 = vmatpush2.msra.mxu0 0.0
  %3445 = vmatprep.subr.mxu0 0.0
  %3446 = vmatpush2.msra.mxu0 0.0
  %3447 = vmatprep.subr.mxu0 0.0
  %3448 = vmatpush2.msra.mxu0 0.0
  %3449 = vmatprep.subr.mxu0 0.0
  %3450 = vmatpush2.msra.mxu0 0.0
  %3451 = vmatprep.subr.mxu0 0.0
  %3452 = vmatpush2.msra.mxu0 0.0
  %3453 = vmatprep.subr.mxu0 0.0
  %3454 = vmatpush2.msra.mxu0 0.0
  %3455 = vmatprep.subr.mxu0 0.0
  %3456 = vmatpush2.msra.mxu0 0.0
  %3457 = vmatprep.subr.mxu0 0.0
  %3458 = vmatpush2.msra.mxu0 0.0
  %3459 = vmatprep.subr.mxu0 0.0
  %3460 = vmatpush2.msra.mxu0 0.0
  %3461 = vmatprep.subr.mxu0 0.0
  %3462 = vmatpush2.msra.mxu0 0.0
  %3463 = vmatprep.subr.mxu0 0.0
  %3464 = vmatpush2.msra.mxu0 0.0
  %3465 = vmatprep.subr.mxu0 0.0
  %3466 = vmatpush2.msra.mxu0 0.0
  %3467 = vmatprep.subr.mxu0 0.0
  %3468 = vmatpush2.msra.mxu0 0.0
  %3469 = vmatprep.subr.mxu0 0.0
  %3470 = vmatpush2.msra.mxu0 0.0
  %3471 = vmatprep.mubr.f32.mxu0 0.0
  %3472 = vmatmul.mubr.f32.gmra.mxu0 %v3244
  %v3473 = vpop.f32.mrf.mxu0
  %v3474 = vadd.f32 %v3397, %v3473
  %v3475 = vpop.f32.mrf.mxu0
  %v3476 = vadd.f32 %v3399, %v3475
  %3477 = vmatprep.mubr.f32.mxu0 0.0
  %3478 = vmatmul.mubr.f32.gmra.mxu0 %v3245
  %v3479 = vpop.f32.mrf.mxu0
  %v3480 = vadd.f32 %v3403, %v3479
  %v3481 = vpop.f32.mrf.mxu0
  %v3482 = vadd.f32 %v3405, %v3481
  %3483 = vdwg.mxu0
  %v3485 = vlaneseq
  %v3486 = vshrl.u32 %v3485, 7
  %v3487 = vsub.s32 0, %v3486
  %v3488 = vrot.slane %v3329, %v3487
  %v3489 = vlaneseq
  %v3490 = vshrl.u32 %v3489, 7
  %v3491 = vsub.s32 1, %v3490
  %v3492 = vrot.slane %v3329, %v3491
  %v3495 = vadd.f32 %v3474, %v3488
  %v3496 = vadd.f32 %v3476, %v3492
  %v3497 = vadd.f32 %v3480, %v3488
  %v3498 = vadd.f32 %v3482, %v3492
  %vm3499 = vcmask 523264
  %v3501 = vsel %vm3499, 0.0, 0
  %3503 = vmatprep.subr.mxu0 0.0
  %3504 = vmatpush1.msra.mxu0 0.0
  %3505 = vmatprep.subr.mxu0 0.0
  %3506 = vmatpush1.msra.mxu0 0.0
  %3507 = vmatprep.subr.mxu0 0.0
  %3508 = vmatpush1.msra.mxu0 0.0
  %3509 = vmatprep.subr.mxu0 0.0
  %3510 = vmatpush1.msra.mxu0 0.0
  %3511 = vmatprep.subr.mxu0 0.0
  %3512 = vmatpush1.msra.mxu0 0.0
  %3513 = vmatprep.subr.mxu0 0.0
  %3514 = vmatpush1.msra.mxu0 0.0
  %3515 = vmatprep.subr.mxu0 0.0
  %3516 = vmatpush1.msra.mxu0 0.0
  %3517 = vmatprep.subr.mxu0 0.0
  %3518 = vmatpush1.msra.mxu0 0.0
  %3519 = vmatprep.subr.mxu0 %v3327
  %3520 = vmatpush1.msra.mxu0 %v3326
  %3521 = vmatprep.subr.mxu0 %v3325
  %3522 = vmatpush1.msra.mxu0 %v3324
  %3523 = vmatprep.subr.mxu0 %v3323
  %3524 = vmatpush1.msra.mxu0 %v3322
  %3525 = vmatprep.subr.mxu0 %v3321
  %3526 = vmatpush1.msra.mxu0 %v3320
  %3527 = vmatprep.subr.mxu0 %v3319
  %3528 = vmatpush1.msra.mxu0 %v3318
  %3529 = vmatprep.subr.mxu0 %v3317
  %3530 = vmatpush1.msra.mxu0 %v3316
  %3531 = vmatprep.subr.mxu0 %v3315
  %3532 = vmatpush1.msra.mxu0 %v3314
  %3533 = vmatprep.subr.mxu0 %v3313
  %3534 = vmatpush1.msra.mxu0 %v3312
  %3535 = vmatprep.subr.mxu0 0.0
  %3536 = vmatpush2.msra.mxu0 0.0
  %3537 = vmatprep.subr.mxu0 0.0
  %3538 = vmatpush2.msra.mxu0 0.0
  %3539 = vmatprep.subr.mxu0 0.0
  %3540 = vmatpush2.msra.mxu0 0.0
  %3541 = vmatprep.subr.mxu0 0.0
  %3542 = vmatpush2.msra.mxu0 0.0
  %3543 = vmatprep.subr.mxu0 0.0
  %3544 = vmatpush2.msra.mxu0 0.0
  %3545 = vmatprep.subr.mxu0 0.0
  %3546 = vmatpush2.msra.mxu0 0.0
  %3547 = vmatprep.subr.mxu0 0.0
  %3548 = vmatpush2.msra.mxu0 0.0
  %3549 = vmatprep.subr.mxu0 0.0
  %3550 = vmatpush2.msra.mxu0 0.0
  %3551 = vmatprep.subr.mxu0 0.0
  %3552 = vmatpush2.msra.mxu0 0.0
  %3553 = vmatprep.subr.mxu0 0.0
  %3554 = vmatpush2.msra.mxu0 0.0
  %3555 = vmatprep.subr.mxu0 0.0
  %3556 = vmatpush2.msra.mxu0 0.0
  %3557 = vmatprep.subr.mxu0 0.0
  %3558 = vmatpush2.msra.mxu0 0.0
  %3559 = vmatprep.subr.mxu0 0.0
  %3560 = vmatpush2.msra.mxu0 0.0
  %3561 = vmatprep.subr.mxu0 0.0
  %3562 = vmatpush2.msra.mxu0 0.0
  %3563 = vmatprep.subr.mxu0 0.0
  %3564 = vmatpush2.msra.mxu0 0.0
  %3565 = vmatprep.subr.mxu0 0.0
  %3566 = vmatpush2.msra.mxu0 0.0
  %3567 = vmatprep.mubr.f32.mxu0 0.0
  %3568 = vmatmul.mubr.f32.gmra.mxu0 %v3501
  %v3569 = vpop.f32.mrf.mxu0
  %v3570 = vadd.f32 0.0, %v3569
  %v3571 = vpop.f32.mrf.mxu0
  %v3572 = vadd.f32 0.0, %v3571
  %3573 = vdwg.mxu0
  %v3574 = vadd.f32 %v3495, %v3570
  %v3575 = vadd.f32 %v3496, %v3572
  %v3576 = vxor.u32 %v3574, 2147483648
  %v3577 = vxor.u32 %v3575, 2147483648
  %v3578 = vmul.f32 %v3576, 1.442695
  %v3579 = vpow.pop %v3578
  %v3580 = vmul.f32 %v3577, 1.442695
  %v3581 = vpow.pop %v3580
  %v3582 = vadd.f32 %v3579, 1.0
  %v3583 = vadd.f32 %v3581, 1.0
  %v3584 = vrcp.pop %v3582
  %v3585 = vmul.f32 1.0, %v3584
  %v3586 = vrcp.pop %v3583
  %v3587 = vmul.f32 1.0, %v3586
  %v3588 = vtanh.pop %v3575
  %v3589 = vmul.f32 %v3585, 0.0
  %3591 = vrot.lane.b32.xlu0 %v3588, 64
  %v3592 = vpop.permute.xlu0 %3591
  %v3594 = vmul.f32 %v3585, %v3592
  %3596 = vrot.lane.b32.xlu0 %v3594, 64
  %v3597 = vpop.permute.xlu0 %3596
  %v3599 = vadd.f32 %v3589, %v3597
  %v3600 = vtanh.pop %v3599
  %3602 = vrot.lane.b32.xlu0 %v3600, 64
  %v3603 = vpop.permute.xlu0 %3602
  %v3605 = vmul.f32 %v3587, %v3603
  %v3606 = vadd.f32 %v3605, 0.0
  %v3608 = vsel %vm3499, %v3605, 0
  %3610 = vmatprep.subr.mxu0 0.0
  %3611 = vmatpush1.msra.mxu0 0.0
  %3612 = vmatprep.subr.mxu0 0.0
  %3613 = vmatpush1.msra.mxu0 0.0
  %3614 = vmatprep.subr.mxu0 0.0
  %3615 = vmatpush1.msra.mxu0 0.0
  %3616 = vmatprep.subr.mxu0 0.0
  %3617 = vmatpush1.msra.mxu0 0.0
  %3618 = vmatprep.subr.mxu0 0.0
  %3619 = vmatpush1.msra.mxu0 0.0
  %3620 = vmatprep.subr.mxu0 0.0
  %3621 = vmatpush1.msra.mxu0 0.0
  %3622 = vmatprep.subr.mxu0 0.0
  %3623 = vmatpush1.msra.mxu0 0.0
  %3624 = vmatprep.subr.mxu0 0.0
  %3625 = vmatpush1.msra.mxu0 0.0
  %3626 = vmatprep.subr.mxu0 %v3327
  %3627 = vmatpush1.msra.mxu0 %v3326
  %3628 = vmatprep.subr.mxu0 %v3325
  %3629 = vmatpush1.msra.mxu0 %v3324
  %3630 = vmatprep.subr.mxu0 %v3323
  %3631 = vmatpush1.msra.mxu0 %v3322
  %3632 = vmatprep.subr.mxu0 %v3321
  %3633 = vmatpush1.msra.mxu0 %v3320
  %3634 = vmatprep.subr.mxu0 %v3319
  %3635 = vmatpush1.msra.mxu0 %v3318
  %3636 = vmatprep.subr.mxu0 %v3317
  %3637 = vmatpush1.msra.mxu0 %v3316
  %3638 = vmatprep.subr.mxu0 %v3315
  %3639 = vmatpush1.msra.mxu0 %v3314
  %3640 = vmatprep.subr.mxu0 %v3313
  %3641 = vmatpush1.msra.mxu0 %v3312
  %3642 = vmatprep.subr.mxu0 0.0
  %3643 = vmatpush2.msra.mxu0 0.0
  %3644 = vmatprep.subr.mxu0 0.0
  %3645 = vmatpush2.msra.mxu0 0.0
  %3646 = vmatprep.subr.mxu0 0.0
  %3647 = vmatpush2.msra.mxu0 0.0
  %3648 = vmatprep.subr.mxu0 0.0
  %3649 = vmatpush2.msra.mxu0 0.0
  %3650 = vmatprep.subr.mxu0 0.0
  %3651 = vmatpush2.msra.mxu0 0.0
  %3652 = vmatprep.subr.mxu0 0.0
  %3653 = vmatpush2.msra.mxu0 0.0
  %3654 = vmatprep.subr.mxu0 0.0
  %3655 = vmatpush2.msra.mxu0 0.0
  %3656 = vmatprep.subr.mxu0 0.0
  %3657 = vmatpush2.msra.mxu0 0.0
  %3658 = vmatprep.subr.mxu0 0.0
  %3659 = vmatpush2.msra.mxu0 0.0
  %3660 = vmatprep.subr.mxu0 0.0
  %3661 = vmatpush2.msra.mxu0 0.0
  %3662 = vmatprep.subr.mxu0 0.0
  %3663 = vmatpush2.msra.mxu0 0.0
  %3664 = vmatprep.subr.mxu0 0.0
  %3665 = vmatpush2.msra.mxu0 0.0
  %3666 = vmatprep.subr.mxu0 0.0
  %3667 = vmatpush2.msra.mxu0 0.0
  %3668 = vmatprep.subr.mxu0 0.0
  %3669 = vmatpush2.msra.mxu0 0.0
  %3670 = vmatprep.subr.mxu0 0.0
  %3671 = vmatpush2.msra.mxu0 0.0
  %3672 = vmatprep.subr.mxu0 0.0
  %3673 = vmatpush2.msra.mxu0 0.0
  %3674 = vmatprep.mubr.f32.mxu0 0.0
  %3675 = vmatmul.mubr.f32.gmra.mxu0 %v3608
  %v3676 = vpop.f32.mrf.mxu0
  %v3677 = vadd.f32 0.0, %v3676
  %v3678 = vpop.f32.mrf.mxu0
  %v3679 = vadd.f32 0.0, %v3678
  %3680 = vdwg.mxu0
  %v3683 = vrot.slane %v3677, 6
  %v3684 = vrot.slane %v3679, 6
  %v3687 = vadd.f32 %v3495, %v3683
  %v3688 = vadd.f32 %v3496, %v3684
  %v3689 = vxor.u32 %v3687, 2147483648
  %v3690 = vxor.u32 %v3688, 2147483648
  %v3691 = vmul.f32 %v3689, 1.442695
  %v3692 = vpow.pop %v3691
  %v3693 = vmul.f32 %v3690, 1.442695
  %v3694 = vpow.pop %v3693
  %v3695 = vadd.f32 %v3692, 1.0
  %v3696 = vadd.f32 %v3694, 1.0
  %v3697 = vrcp.pop %v3695
  %v3698 = vmul.f32 1.0, %v3697
  %v3699 = vrcp.pop %v3696
  %v3700 = vmul.f32 1.0, %v3699
  %v3701 = vtanh.pop %v3688
  %v3703 = vrot.slane %v3599, 6
  %v3705 = vmul.f32 %v3698, %v3703
  %3707 = vrot.lane.b32.xlu0 %v3701, 64
  %v3708 = vpop.permute.xlu0 %3707
  %v3710 = vmul.f32 %v3698, %v3708
  %3712 = vrot.lane.b32.xlu0 %v3710, 64
  %v3713 = vpop.permute.xlu0 %3712
  %v3715 = vadd.f32 %v3705, %v3713
  %v3716 = vtanh.pop %v3715
  %3718 = vrot.lane.b32.xlu0 %v3716, 64
  %v3719 = vpop.permute.xlu0 %3718
  %v3721 = vmul.f32 %v3700, %v3719
  %v3723 = vrot.slane %v3721, 2
  %v3725 = vadd.f32 %v3606, %v3723
  %v3726 = vsel %vm3499, %v3723, 0
  %3728 = vmatprep.subr.mxu0 0.0
  %3729 = vmatpush1.msra.mxu0 0.0
  %3730 = vmatprep.subr.mxu0 0.0
  %3731 = vmatpush1.msra.mxu0 0.0
  %3732 = vmatprep.subr.mxu0 0.0
  %3733 = vmatpush1.msra.mxu0 0.0
  %3734 = vmatprep.subr.mxu0 0.0
  %3735 = vmatpush1.msra.mxu0 0.0
  %3736 = vmatprep.subr.mxu0 0.0
  %3737 = vmatpush1.msra.mxu0 0.0
  %3738 = vmatprep.subr.mxu0 0.0
  %3739 = vmatpush1.msra.mxu0 0.0
  %3740 = vmatprep.subr.mxu0 0.0
  %3741 = vmatpush1.msra.mxu0 0.0
  %3742 = vmatprep.subr.mxu0 0.0
  %3743 = vmatpush1.msra.mxu0 0.0
  %3744 = vmatprep.subr.mxu0 %v3327
  %3745 = vmatpush1.msra.mxu0 %v3326
  %3746 = vmatprep.subr.mxu0 %v3325
  %3747 = vmatpush1.msra.mxu0 %v3324
  %3748 = vmatprep.subr.mxu0 %v3323
  %3749 = vmatpush1.msra.mxu0 %v3322
  %3750 = vmatprep.subr.mxu0 %v3321
  %3751 = vmatpush1.msra.mxu0 %v3320
  %3752 = vmatprep.subr.mxu0 %v3319
  %3753 = vmatpush1.msra.mxu0 %v3318
  %3754 = vmatprep.subr.mxu0 %v3317
  %3755 = vmatpush1.msra.mxu0 %v3316
  %3756 = vmatprep.subr.mxu0 %v3315
  %3757 = vmatpush1.msra.mxu0 %v3314
  %3758 = vmatprep.subr.mxu0 %v3313
  %3759 = vmatpush1.msra.mxu0 %v3312
  %3760 = vmatprep.subr.mxu0 0.0
  %3761 = vmatpush2.msra.mxu0 0.0
  %3762 = vmatprep.subr.mxu0 0.0
  %3763 = vmatpush2.msra.mxu0 0.0
  %3764 = vmatprep.subr.mxu0 0.0
  %3765 = vmatpush2.msra.mxu0 0.0
  %3766 = vmatprep.subr.mxu0 0.0
  %3767 = vmatpush2.msra.mxu0 0.0
  %3768 = vmatprep.subr.mxu0 0.0
  %3769 = vmatpush2.msra.mxu0 0.0
  %3770 = vmatprep.subr.mxu0 0.0
  %3771 = vmatpush2.msra.mxu0 0.0
  %3772 = vmatprep.subr.mxu0 0.0
  %3773 = vmatpush2.msra.mxu0 0.0
  %3774 = vmatprep.subr.mxu0 0.0
  %3775 = vmatpush2.msra.mxu0 0.0
  %3776 = vmatprep.subr.mxu0 0.0
  %3777 = vmatpush2.msra.mxu0 0.0
  %3778 = vmatprep.subr.mxu0 0.0
  %3779 = vmatpush2.msra.mxu0 0.0
  %3780 = vmatprep.subr.mxu0 0.0
  %3781 = vmatpush2.msra.mxu0 0.0
  %3782 = vmatprep.subr.mxu0 0.0
  %3783 = vmatpush2.msra.mxu0 0.0
  %3784 = vmatprep.subr.mxu0 0.0
  %3785 = vmatpush2.msra.mxu0 0.0
  %3786 = vmatprep.subr.mxu0 0.0
  %3787 = vmatpush2.msra.mxu0 0.0
  %3788 = vmatprep.subr.mxu0 0.0
  %3789 = vmatpush2.msra.mxu0 0.0
  %3790 = vmatprep.subr.mxu0 0.0
  %3791 = vmatpush2.msra.mxu0 0.0
  %3792 = vmatprep.mubr.f32.mxu0 0.0
  %3793 = vmatmul.mubr.f32.gmra.mxu0 %v3726
  %v3794 = vpop.f32.mrf.mxu0
  %v3795 = vadd.f32 0.0, %v3794
  %v3796 = vpop.f32.mrf.mxu0
  %v3797 = vadd.f32 0.0, %v3796
  %3798 = vdwg.mxu0
  %v3801 = vrot.slane %v3795, 4
  %v3802 = vrot.slane %v3797, 4
  %v3805 = vadd.f32 %v3495, %v3801
  %v3806 = vadd.f32 %v3496, %v3802
  %v3807 = vxor.u32 %v3805, 2147483648
  %v3808 = vxor.u32 %v3806, 2147483648
  %v3809 = vmul.f32 %v3807, 1.442695
  %v3810 = vpow.pop %v3809
  %v3811 = vmul.f32 %v3808, 1.442695
  %v3812 = vpow.pop %v3811
  %v3813 = vadd.f32 %v3810, 1.0
  %v3814 = vadd.f32 %v3812, 1.0
  %v3815 = vrcp.pop %v3813
  %v3816 = vmul.f32 1.0, %v3815
  %v3817 = vrcp.pop %v3814
  %v3818 = vmul.f32 1.0, %v3817
  %v3819 = vtanh.pop %v3806
  %v3821 = vrot.slane %v3715, 6
  %v3823 = vmul.f32 %v3816, %v3821
  %3825 = vrot.lane.b32.xlu0 %v3819, 64
  %v3826 = vpop.permute.xlu0 %3825
  %v3828 = vmul.f32 %v3816, %v3826
  %3830 = vrot.lane.b32.xlu0 %v3828, 64
  %v3831 = vpop.permute.xlu0 %3830
  %v3833 = vadd.f32 %v3823, %v3831
  %v3834 = vtanh.pop %v3833
  %3836 = vrot.lane.b32.xlu0 %v3834, 64
  %v3837 = vpop.permute.xlu0 %3836
  %v3839 = vmul.f32 %v3818, %v3837
  %v3841 = vrot.slane %v3839, 4
  %v3843 = vadd.f32 %v3725, %v3841
  %v3844 = vsel %vm3499, %v3841, 0
  %3846 = vmatprep.subr.mxu0 0.0
  %3847 = vmatpush1.msra.mxu0 0.0
  %3848 = vmatprep.subr.mxu0 0.0
  %3849 = vmatpush1.msra.mxu0 0.0
  %3850 = vmatprep.subr.mxu0 0.0
  %3851 = vmatpush1.msra.mxu0 0.0
  %3852 = vmatprep.subr.mxu0 0.0
  %3853 = vmatpush1.msra.mxu0 0.0
  %3854 = vmatprep.subr.mxu0 0.0
  %3855 = vmatpush1.msra.mxu0 0.0
  %3856 = vmatprep.subr.mxu0 0.0
  %3857 = vmatpush1.msra.mxu0 0.0
  %3858 = vmatprep.subr.mxu0 0.0
  %3859 = vmatpush1.msra.mxu0 0.0
  %3860 = vmatprep.subr.mxu0 0.0
  %3861 = vmatpush1.msra.mxu0 0.0
  %3862 = vmatprep.subr.mxu0 %v3327
  %3863 = vmatpush1.msra.mxu0 %v3326
  %3864 = vmatprep.subr.mxu0 %v3325
  %3865 = vmatpush1.msra.mxu0 %v3324
  %3866 = vmatprep.subr.mxu0 %v3323
  %3867 = vmatpush1.msra.mxu0 %v3322
  %3868 = vmatprep.subr.mxu0 %v3321
  %3869 = vmatpush1.msra.mxu0 %v3320
  %3870 = vmatprep.subr.mxu0 %v3319
  %3871 = vmatpush1.msra.mxu0 %v3318
  %3872 = vmatprep.subr.mxu0 %v3317
  %3873 = vmatpush1.msra.mxu0 %v3316
  %3874 = vmatprep.subr.mxu0 %v3315
  %3875 = vmatpush1.msra.mxu0 %v3314
  %3876 = vmatprep.subr.mxu0 %v3313
  %3877 = vmatpush1.msra.mxu0 %v3312
  %3878 = vmatprep.subr.mxu0 0.0
  %3879 = vmatpush2.msra.mxu0 0.0
  %3880 = vmatprep.subr.mxu0 0.0
  %3881 = vmatpush2.msra.mxu0 0.0
  %3882 = vmatprep.subr.mxu0 0.0
  %3883 = vmatpush2.msra.mxu0 0.0
  %3884 = vmatprep.subr.mxu0 0.0
  %3885 = vmatpush2.msra.mxu0 0.0
  %3886 = vmatprep.subr.mxu0 0.0
  %3887 = vmatpush2.msra.mxu0 0.0
  %3888 = vmatprep.subr.mxu0 0.0
  %3889 = vmatpush2.msra.mxu0 0.0
  %3890 = vmatprep.subr.mxu0 0.0
  %3891 = vmatpush2.msra.mxu0 0.0
  %3892 = vmatprep.subr.mxu0 0.0
  %3893 = vmatpush2.msra.mxu0 0.0
  %3894 = vmatprep.subr.mxu0 0.0
  %3895 = vmatpush2.msra.mxu0 0.0
  %3896 = vmatprep.subr.mxu0 0.0
  %3897 = vmatpush2.msra.mxu0 0.0
  %3898 = vmatprep.subr.mxu0 0.0
  %3899 = vmatpush2.msra.mxu0 0.0
  %3900 = vmatprep.subr.mxu0 0.0
  %3901 = vmatpush2.msra.mxu0 0.0
  %3902 = vmatprep.subr.mxu0 0.0
  %3903 = vmatpush2.msra.mxu0 0.0
  %3904 = vmatprep.subr.mxu0 0.0
  %3905 = vmatpush2.msra.mxu0 0.0
  %3906 = vmatprep.subr.mxu0 0.0
  %3907 = vmatpush2.msra.mxu0 0.0
  %3908 = vmatprep.subr.mxu0 0.0
  %3909 = vmatpush2.msra.mxu0 0.0
  %3910 = vmatprep.mubr.f32.mxu0 0.0
  %3911 = vmatmul.mubr.f32.gmra.mxu0 %v3844
  %v3912 = vpop.f32.mrf.mxu0
  %v3913 = vadd.f32 0.0, %v3912
  %v3914 = vpop.f32.mrf.mxu0
  %v3915 = vadd.f32 0.0, %v3914
  %3916 = vdwg.mxu0
  %v3919 = vrot.slane %v3913, 2
  %v3920 = vrot.slane %v3915, 2
  %v3923 = vadd.f32 %v3495, %v3919
  %v3924 = vadd.f32 %v3496, %v3920
  %v3925 = vxor.u32 %v3923, 2147483648
  %v3926 = vxor.u32 %v3924, 2147483648
  %v3927 = vmul.f32 %v3925, 1.442695
  %v3928 = vpow.pop %v3927
  %v3929 = vmul.f32 %v3926, 1.442695
  %v3930 = vpow.pop %v3929
  %v3931 = vadd.f32 %v3928, 1.0
  %v3932 = vadd.f32 %v3930, 1.0
  %v3933 = vrcp.pop %v3931
  %v3934 = vmul.f32 1.0, %v3933
  %v3935 = vrcp.pop %v3932
  %v3936 = vmul.f32 1.0, %v3935
  %v3937 = vtanh.pop %v3924
  %v3939 = vrot.slane %v3833, 6
  %v3941 = vmul.f32 %v3934, %v3939
  %3943 = vrot.lane.b32.xlu0 %v3937, 64
  %v3944 = vpop.permute.xlu0 %3943
  %v3946 = vmul.f32 %v3934, %v3944
  %3948 = vrot.lane.b32.xlu0 %v3946, 64
  %v3949 = vpop.permute.xlu0 %3948
  %v3951 = vadd.f32 %v3941, %v3949
  %v3952 = vtanh.pop %v3951
  %3954 = vrot.lane.b32.xlu0 %v3952, 64
  %v3955 = vpop.permute.xlu0 %3954
  %v3957 = vmul.f32 %v3936, %v3955
  %v3959 = vrot.slane %v3957, 6
  %v3961 = vadd.f32 %v3843, %v3959
  %v3962 = vsel %vm3499, %v3959, 0
  %3964 = vmatprep.subr.mxu0 0.0
  %3965 = vmatpush1.msra.mxu0 0.0
  %3966 = vmatprep.subr.mxu0 0.0
  %3967 = vmatpush1.msra.mxu0 0.0
  %3968 = vmatprep.subr.mxu0 0.0
  %3969 = vmatpush1.msra.mxu0 0.0
  %3970 = vmatprep.subr.mxu0 0.0
  %3971 = vmatpush1.msra.mxu0 0.0
  %3972 = vmatprep.subr.mxu0 0.0
  %3973 = vmatpush1.msra.mxu0 0.0
  %3974 = vmatprep.subr.mxu0 0.0
  %3975 = vmatpush1.msra.mxu0 0.0
  %3976 = vmatprep.subr.mxu0 0.0
  %3977 = vmatpush1.msra.mxu0 0.0
  %3978 = vmatprep.subr.mxu0 0.0
  %3979 = vmatpush1.msra.mxu0 0.0
  %3980 = vmatprep.subr.mxu0 %v3327
  %3981 = vmatpush1.msra.mxu0 %v3326
  %3982 = vmatprep.subr.mxu0 %v3325
  %3983 = vmatpush1.msra.mxu0 %v3324
  %3984 = vmatprep.subr.mxu0 %v3323
  %3985 = vmatpush1.msra.mxu0 %v3322
  %3986 = vmatprep.subr.mxu0 %v3321
  %3987 = vmatpush1.msra.mxu0 %v3320
  %3988 = vmatprep.subr.mxu0 %v3319
  %3989 = vmatpush1.msra.mxu0 %v3318
  %3990 = vmatprep.subr.mxu0 %v3317
  %3991 = vmatpush1.msra.mxu0 %v3316
  %3992 = vmatprep.subr.mxu0 %v3315
  %3993 = vmatpush1.msra.mxu0 %v3314
  %3994 = vmatprep.subr.mxu0 %v3313
  %3995 = vmatpush1.msra.mxu0 %v3312
  %3996 = vmatprep.subr.mxu0 0.0
  %3997 = vmatpush2.msra.mxu0 0.0
  %3998 = vmatprep.subr.mxu0 0.0
  %3999 = vmatpush2.msra.mxu0 0.0
  %4000 = vmatprep.subr.mxu0 0.0
  %4001 = vmatpush2.msra.mxu0 0.0
  %4002 = vmatprep.subr.mxu0 0.0
  %4003 = vmatpush2.msra.mxu0 0.0
  %4004 = vmatprep.subr.mxu0 0.0
  %4005 = vmatpush2.msra.mxu0 0.0
  %4006 = vmatprep.subr.mxu0 0.0
  %4007 = vmatpush2.msra.mxu0 0.0
  %4008 = vmatprep.subr.mxu0 0.0
  %4009 = vmatpush2.msra.mxu0 0.0
  %4010 = vmatprep.subr.mxu0 0.0
  %4011 = vmatpush2.msra.mxu0 0.0
  %4012 = vmatprep.subr.mxu0 0.0
  %4013 = vmatpush2.msra.mxu0 0.0
  %4014 = vmatprep.subr.mxu0 0.0
  %4015 = vmatpush2.msra.mxu0 0.0
  %4016 = vmatprep.subr.mxu0 0.0
  %4017 = vmatpush2.msra.mxu0 0.0
  %4018 = vmatprep.subr.mxu0 0.0
  %4019 = vmatpush2.msra.mxu0 0.0
  %4020 = vmatprep.subr.mxu0 0.0
  %4021 = vmatpush2.msra.mxu0 0.0
  %4022 = vmatprep.subr.mxu0 0.0
  %4023 = vmatpush2.msra.mxu0 0.0
  %4024 = vmatprep.subr.mxu0 0.0
  %4025 = vmatpush2.msra.mxu0 0.0
  %4026 = vmatprep.subr.mxu0 0.0
  %4027 = vmatpush2.msra.mxu0 0.0
  %4028 = vmatprep.mubr.f32.mxu0 0.0
  %4029 = vmatmul.mubr.f32.gmra.mxu0 %v3962
  %v4030 = vpop.f32.mrf.mxu0
  %v4031 = vadd.f32 0.0, %v4030
  %v4032 = vpop.f32.mrf.mxu0
  %v4033 = vadd.f32 0.0, %v4032
  %4034 = vdwg.mxu0
  %v4035 = vadd.f32 %v3497, %v4031
  %v4036 = vadd.f32 %v3498, %v4033
  %v4037 = vxor.u32 %v4035, 2147483648
  %v4038 = vxor.u32 %v4036, 2147483648
  %v4039 = vmul.f32 %v4037, 1.442695
  %v4040 = vpow.pop %v4039
  %v4041 = vmul.f32 %v4038, 1.442695
  %v4042 = vpow.pop %v4041
  %v4043 = vadd.f32 %v4040, 1.0
  %v4044 = vadd.f32 %v4042, 1.0
  %v4045 = vrcp.pop %v4043
  %v4046 = vmul.f32 1.0, %v4045
  %v4047 = vrcp.pop %v4044
  %v4048 = vmul.f32 1.0, %v4047
  %v4049 = vtanh.pop %v4036
  %v4051 = vrot.slane %v3951, 6
  %v4053 = vmul.f32 %v4046, %v4051
  %4055 = vrot.lane.b32.xlu0 %v4049, 64
  %v4056 = vpop.permute.xlu0 %4055
  %v4058 = vmul.f32 %v4046, %v4056
  %4060 = vrot.lane.b32.xlu0 %v4058, 64
  %v4061 = vpop.permute.xlu0 %4060
  %v4063 = vadd.f32 %v4053, %v4061
  %v4064 = vtanh.pop %v4063
  %4066 = vrot.lane.b32.xlu0 %v4064, 64
  %v4067 = vpop.permute.xlu0 %4066
  %v4069 = vmul.f32 %v4048, %v4067
  %v4070 = vadd.f32 %v3961, %v4069
  %v4072 = vsel %vm3499, %v4069, 0
  %4074 = vmatprep.subr.mxu0 0.0
  %4075 = vmatpush1.msra.mxu0 0.0
  %4076 = vmatprep.subr.mxu0 0.0
  %4077 = vmatpush1.msra.mxu0 0.0
  %4078 = vmatprep.subr.mxu0 0.0
  %4079 = vmatpush1.msra.mxu0 0.0
  %4080 = vmatprep.subr.mxu0 0.0
  %4081 = vmatpush1.msra.mxu0 0.0
  %4082 = vmatprep.subr.mxu0 0.0
  %4083 = vmatpush1.msra.mxu0 0.0
  %4084 = vmatprep.subr.mxu0 0.0
  %4085 = vmatpush1.msra.mxu0 0.0
  %4086 = vmatprep.subr.mxu0 0.0
  %4087 = vmatpush1.msra.mxu0 0.0
  %4088 = vmatprep.subr.mxu0 0.0
  %4089 = vmatpush1.msra.mxu0 0.0
  %4090 = vmatprep.subr.mxu0 %v3327
  %4091 = vmatpush1.msra.mxu0 %v3326
  %4092 = vmatprep.subr.mxu0 %v3325
  %4093 = vmatpush1.msra.mxu0 %v3324
  %4094 = vmatprep.subr.mxu0 %v3323
  %4095 = vmatpush1.msra.mxu0 %v3322
  %4096 = vmatprep.subr.mxu0 %v3321
  %4097 = vmatpush1.msra.mxu0 %v3320
  %4098 = vmatprep.subr.mxu0 %v3319
  %4099 = vmatpush1.msra.mxu0 %v3318
  %4100 = vmatprep.subr.mxu0 %v3317
  %4101 = vmatpush1.msra.mxu0 %v3316
  %4102 = vmatprep.subr.mxu0 %v3315
  %4103 = vmatpush1.msra.mxu0 %v3314
  %4104 = vmatprep.subr.mxu0 %v3313
  %4105 = vmatpush1.msra.mxu0 %v3312
  %4106 = vmatprep.subr.mxu0 0.0
  %4107 = vmatpush2.msra.mxu0 0.0
  %4108 = vmatprep.subr.mxu0 0.0
  %4109 = vmatpush2.msra.mxu0 0.0
  %4110 = vmatprep.subr.mxu0 0.0
  %4111 = vmatpush2.msra.mxu0 0.0
  %4112 = vmatprep.subr.mxu0 0.0
  %4113 = vmatpush2.msra.mxu0 0.0
  %4114 = vmatprep.subr.mxu0 0.0
  %4115 = vmatpush2.msra.mxu0 0.0
  %4116 = vmatprep.subr.mxu0 0.0
  %4117 = vmatpush2.msra.mxu0 0.0
  %4118 = vmatprep.subr.mxu0 0.0
  %4119 = vmatpush2.msra.mxu0 0.0
  %4120 = vmatprep.subr.mxu0 0.0
  %4121 = vmatpush2.msra.mxu0 0.0
  %4122 = vmatprep.subr.mxu0 0.0
  %4123 = vmatpush2.msra.mxu0 0.0
  %4124 = vmatprep.subr.mxu0 0.0
  %4125 = vmatpush2.msra.mxu0 0.0
  %4126 = vmatprep.subr.mxu0 0.0
  %4127 = vmatpush2.msra.mxu0 0.0
  %4128 = vmatprep.subr.mxu0 0.0
  %4129 = vmatpush2.msra.mxu0 0.0
  %4130 = vmatprep.subr.mxu0 0.0
  %4131 = vmatpush2.msra.mxu0 0.0
  %4132 = vmatprep.subr.mxu0 0.0
  %4133 = vmatpush2.msra.mxu0 0.0
  %4134 = vmatprep.subr.mxu0 0.0
  %4135 = vmatpush2.msra.mxu0 0.0
  %4136 = vmatprep.subr.mxu0 0.0
  %4137 = vmatpush2.msra.mxu0 0.0
  %4138 = vmatprep.mubr.f32.mxu0 0.0
  %4139 = vmatmul.mubr.f32.gmra.mxu0 %v4072
  %v4140 = vpop.f32.mrf.mxu0
  %v4141 = vadd.f32 0.0, %v4140
  %v4142 = vpop.f32.mrf.mxu0
  %v4143 = vadd.f32 0.0, %v4142
  %4144 = vdwg.mxu0
  %v4147 = vrot.slane %v4141, 6
  %v4148 = vrot.slane %v4143, 6
  %v4151 = vadd.f32 %v3497, %v4147
  %v4152 = vadd.f32 %v3498, %v4148
  %v4153 = vxor.u32 %v4151, 2147483648
  %v4154 = vxor.u32 %v4152, 2147483648
  %v4155 = vmul.f32 %v4153, 1.442695
  %v4156 = vpow.pop %v4155
  %v4157 = vmul.f32 %v4154, 1.442695
  %v4158 = vpow.pop %v4157
  %v4159 = vadd.f32 %v4156, 1.0
  %v4160 = vadd.f32 %v4158, 1.0
  %v4161 = vrcp.pop %v4159
  %v4162 = vmul.f32 1.0, %v4161
  %v4163 = vrcp.pop %v4160
  %v4164 = vmul.f32 1.0, %v4163
  %v4165 = vtanh.pop %v4152
  %v4167 = vrot.slane %v4063, 6
  %v4169 = vmul.f32 %v4162, %v4167
  %4171 = vrot.lane.b32.xlu0 %v4165, 64
  %v4172 = vpop.permute.xlu0 %4171
  %v4174 = vmul.f32 %v4162, %v4172
  %4176 = vrot.lane.b32.xlu0 %v4174, 64
  %v4177 = vpop.permute.xlu0 %4176
  %v4179 = vadd.f32 %v4169, %v4177
  %v4180 = vtanh.pop %v4179
  %4182 = vrot.lane.b32.xlu0 %v4180, 64
  %v4183 = vpop.permute.xlu0 %4182
  %v4185 = vmul.f32 %v4164, %v4183
  %v4187 = vrot.slane %v4185, 2
  %v4189 = vadd.f32 %v4070, %v4187
  %v4190 = vsel %vm3499, %v4187, 0
  %4192 = vmatprep.subr.mxu0 0.0
  %4193 = vmatpush1.msra.mxu0 0.0
  %4194 = vmatprep.subr.mxu0 0.0
  %4195 = vmatpush1.msra.mxu0 0.0
  %4196 = vmatprep.subr.mxu0 0.0
  %4197 = vmatpush1.msra.mxu0 0.0
  %4198 = vmatprep.subr.mxu0 0.0
  %4199 = vmatpush1.msra.mxu0 0.0
  %4200 = vmatprep.subr.mxu0 0.0
  %4201 = vmatpush1.msra.mxu0 0.0
  %4202 = vmatprep.subr.mxu0 0.0
  %4203 = vmatpush1.msra.mxu0 0.0
  %4204 = vmatprep.subr.mxu0 0.0
  %4205 = vmatpush1.msra.mxu0 0.0
  %4206 = vmatprep.subr.mxu0 0.0
  %4207 = vmatpush1.msra.mxu0 0.0
  %4208 = vmatprep.subr.mxu0 %v3327
  %4209 = vmatpush1.msra.mxu0 %v3326
  %4210 = vmatprep.subr.mxu0 %v3325
  %4211 = vmatpush1.msra.mxu0 %v3324
  %4212 = vmatprep.subr.mxu0 %v3323
  %4213 = vmatpush1.msra.mxu0 %v3322
  %4214 = vmatprep.subr.mxu0 %v3321
  %4215 = vmatpush1.msra.mxu0 %v3320
  %4216 = vmatprep.subr.mxu0 %v3319
  %4217 = vmatpush1.msra.mxu0 %v3318
  %4218 = vmatprep.subr.mxu0 %v3317
  %4219 = vmatpush1.msra.mxu0 %v3316
  %4220 = vmatprep.subr.mxu0 %v3315
  %4221 = vmatpush1.msra.mxu0 %v3314
  %4222 = vmatprep.subr.mxu0 %v3313
  %4223 = vmatpush1.msra.mxu0 %v3312
  %4224 = vmatprep.subr.mxu0 0.0
  %4225 = vmatpush2.msra.mxu0 0.0
  %4226 = vmatprep.subr.mxu0 0.0
  %4227 = vmatpush2.msra.mxu0 0.0
  %4228 = vmatprep.subr.mxu0 0.0
  %4229 = vmatpush2.msra.mxu0 0.0
  %4230 = vmatprep.subr.mxu0 0.0
  %4231 = vmatpush2.msra.mxu0 0.0
  %4232 = vmatprep.subr.mxu0 0.0
  %4233 = vmatpush2.msra.mxu0 0.0
  %4234 = vmatprep.subr.mxu0 0.0
  %4235 = vmatpush2.msra.mxu0 0.0
  %4236 = vmatprep.subr.mxu0 0.0
  %4237 = vmatpush2.msra.mxu0 0.0
  %4238 = vmatprep.subr.mxu0 0.0
  %4239 = vmatpush2.msra.mxu0 0.0
  %4240 = vmatprep.subr.mxu0 0.0
  %4241 = vmatpush2.msra.mxu0 0.0
  %4242 = vmatprep.subr.mxu0 0.0
  %4243 = vmatpush2.msra.mxu0 0.0
  %4244 = vmatprep.subr.mxu0 0.0
  %4245 = vmatpush2.msra.mxu0 0.0
  %4246 = vmatprep.subr.mxu0 0.0
  %4247 = vmatpush2.msra.mxu0 0.0
  %4248 = vmatprep.subr.mxu0 0.0
  %4249 = vmatpush2.msra.mxu0 0.0
  %4250 = vmatprep.subr.mxu0 0.0
  %4251 = vmatpush2.msra.mxu0 0.0
  %4252 = vmatprep.subr.mxu0 0.0
  %4253 = vmatpush2.msra.mxu0 0.0
  %4254 = vmatprep.subr.mxu0 0.0
  %4255 = vmatpush2.msra.mxu0 0.0
  %4256 = vmatprep.mubr.f32.mxu0 0.0
  %4257 = vmatmul.mubr.f32.gmra.mxu0 %v4190
  %v4258 = vpop.f32.mrf.mxu0
  %v4259 = vadd.f32 0.0, %v4258
  %v4260 = vpop.f32.mrf.mxu0
  %v4261 = vadd.f32 0.0, %v4260
  %4262 = vdwg.mxu0
  %v4265 = vrot.slane %v4259, 4
  %v4266 = vrot.slane %v4261, 4
  %v4269 = vadd.f32 %v3497, %v4265
  %v4270 = vadd.f32 %v3498, %v4266
  %v4271 = vxor.u32 %v4269, 2147483648
  %v4272 = vxor.u32 %v4270, 2147483648
  %v4273 = vmul.f32 %v4271, 1.442695
  %v4274 = vpow.pop %v4273
  %v4275 = vmul.f32 %v4272, 1.442695
  %v4276 = vpow.pop %v4275
  %v4277 = vadd.f32 %v4274, 1.0
  %v4278 = vadd.f32 %v4276, 1.0
  %v4279 = vrcp.pop %v4277
  %v4280 = vmul.f32 1.0, %v4279
  %v4281 = vrcp.pop %v4278
  %v4282 = vmul.f32 1.0, %v4281
  %v4283 = vtanh.pop %v4270
  %v4285 = vrot.slane %v4179, 6
  %v4287 = vmul.f32 %v4280, %v4285
  %4289 = vrot.lane.b32.xlu0 %v4283, 64
  %v4290 = vpop.permute.xlu0 %4289
  %v4292 = vmul.f32 %v4280, %v4290
  %4294 = vrot.lane.b32.xlu0 %v4292, 64
  %v4295 = vpop.permute.xlu0 %4294
  %v4297 = vadd.f32 %v4287, %v4295
  %v4298 = vtanh.pop %v4297
  %4300 = vrot.lane.b32.xlu0 %v4298, 64
  %v4301 = vpop.permute.xlu0 %4300
  %v4303 = vmul.f32 %v4282, %v4301
  %v4305 = vrot.slane %v4303, 4
  %v4307 = vadd.f32 %v4189, %v4305
  %v4308 = vsel %vm3499, %v4305, 0
  %4310 = vmatprep.subr.mxu0 0.0
  %4311 = vmatpush1.msra.mxu0 0.0
  %4312 = vmatprep.subr.mxu0 0.0
  %4313 = vmatpush1.msra.mxu0 0.0
  %4314 = vmatprep.subr.mxu0 0.0
  %4315 = vmatpush1.msra.mxu0 0.0
  %4316 = vmatprep.subr.mxu0 0.0
  %4317 = vmatpush1.msra.mxu0 0.0
  %4318 = vmatprep.subr.mxu0 0.0
  %4319 = vmatpush1.msra.mxu0 0.0
  %4320 = vmatprep.subr.mxu0 0.0
  %4321 = vmatpush1.msra.mxu0 0.0
  %4322 = vmatprep.subr.mxu0 0.0
  %4323 = vmatpush1.msra.mxu0 0.0
  %4324 = vmatprep.subr.mxu0 0.0
  %4325 = vmatpush1.msra.mxu0 0.0
  %4326 = vmatprep.subr.mxu0 %v3327
  %4327 = vmatpush1.msra.mxu0 %v3326
  %4328 = vmatprep.subr.mxu0 %v3325
  %4329 = vmatpush1.msra.mxu0 %v3324
  %4330 = vmatprep.subr.mxu0 %v3323
  %4331 = vmatpush1.msra.mxu0 %v3322
  %4332 = vmatprep.subr.mxu0 %v3321
  %4333 = vmatpush1.msra.mxu0 %v3320
  %4334 = vmatprep.subr.mxu0 %v3319
  %4335 = vmatpush1.msra.mxu0 %v3318
  %4336 = vmatprep.subr.mxu0 %v3317
  %4337 = vmatpush1.msra.mxu0 %v3316
  %4338 = vmatprep.subr.mxu0 %v3315
  %4339 = vmatpush1.msra.mxu0 %v3314
  %4340 = vmatprep.subr.mxu0 %v3313
  %4341 = vmatpush1.msra.mxu0 %v3312
  %4342 = vmatprep.subr.mxu0 0.0
  %4343 = vmatpush2.msra.mxu0 0.0
  %4344 = vmatprep.subr.mxu0 0.0
  %4345 = vmatpush2.msra.mxu0 0.0
  %4346 = vmatprep.subr.mxu0 0.0
  %4347 = vmatpush2.msra.mxu0 0.0
  %4348 = vmatprep.subr.mxu0 0.0
  %4349 = vmatpush2.msra.mxu0 0.0
  %4350 = vmatprep.subr.mxu0 0.0
  %4351 = vmatpush2.msra.mxu0 0.0
  %4352 = vmatprep.subr.mxu0 0.0
  %4353 = vmatpush2.msra.mxu0 0.0
  %4354 = vmatprep.subr.mxu0 0.0
  %4355 = vmatpush2.msra.mxu0 0.0
  %4356 = vmatprep.subr.mxu0 0.0
  %4357 = vmatpush2.msra.mxu0 0.0
  %4358 = vmatprep.subr.mxu0 0.0
  %4359 = vmatpush2.msra.mxu0 0.0
  %4360 = vmatprep.subr.mxu0 0.0
  %4361 = vmatpush2.msra.mxu0 0.0
  %4362 = vmatprep.subr.mxu0 0.0
  %4363 = vmatpush2.msra.mxu0 0.0
  %4364 = vmatprep.subr.mxu0 0.0
  %4365 = vmatpush2.msra.mxu0 0.0
  %4366 = vmatprep.subr.mxu0 0.0
  %4367 = vmatpush2.msra.mxu0 0.0
  %4368 = vmatprep.subr.mxu0 0.0
  %4369 = vmatpush2.msra.mxu0 0.0
  %4370 = vmatprep.subr.mxu0 0.0
  %4371 = vmatpush2.msra.mxu0 0.0
  %4372 = vmatprep.subr.mxu0 0.0
  %4373 = vmatpush2.msra.mxu0 0.0
  %4374 = vmatprep.mubr.f32.mxu0 0.0
  %4375 = vmatmul.mubr.f32.gmra.mxu0 %v4308
  %v4376 = vpop.f32.mrf.mxu0
  %v4377 = vadd.f32 0.0, %v4376
  %v4378 = vpop.f32.mrf.mxu0
  %v4379 = vadd.f32 0.0, %v4378
  %4380 = vdwg.mxu0
  %v4383 = vrot.slane %v4377, 2
  %v4384 = vrot.slane %v4379, 2
  %v4387 = vadd.f32 %v3497, %v4383
  %v4388 = vadd.f32 %v3498, %v4384
  %v4389 = vxor.u32 %v4387, 2147483648
  %v4390 = vxor.u32 %v4388, 2147483648
  %v4391 = vmul.f32 %v4389, 1.442695
  %v4392 = vpow.pop %v4391
  %v4393 = vmul.f32 %v4390, 1.442695
  %v4394 = vpow.pop %v4393
  %v4395 = vadd.f32 %v4392, 1.0
  %v4396 = vadd.f32 %v4394, 1.0
  %v4397 = vrcp.pop %v4395
  %v4398 = vmul.f32 1.0, %v4397
  %v4399 = vrcp.pop %v4396
  %v4400 = vmul.f32 1.0, %v4399
  %v4401 = vtanh.pop %v4388
  %v4403 = vrot.slane %v4297, 6
  %v4405 = vmul.f32 %v4398, %v4403
  %4407 = vrot.lane.b32.xlu0 %v4401, 64
  %v4408 = vpop.permute.xlu0 %4407
  %v4410 = vmul.f32 %v4398, %v4408
  %4412 = vrot.lane.b32.xlu0 %v4410, 64
  %v4413 = vpop.permute.xlu0 %4412
  %v4415 = vadd.f32 %v4405, %v4413
  %v4416 = vtanh.pop %v4415
  %4418 = vrot.lane.b32.xlu0 %v4416, 64
  %v4419 = vpop.permute.xlu0 %4418
  %v4421 = vmul.f32 %v4400, %v4419
  %v4423 = vrot.slane %v4421, 6
  %v4425 = vadd.f32 %v4307, %v4423
  %v4426 = vmul.f32 %v4425, 0.125
  %4428 = vrot.lane.b32.xlu0 %v4426, 16
  %v4429 = vpop.permute.xlu0 %4428
  %vm4431 = vcmask 130048
  %v4432 = vsel %vm4431, %v1384, %v4429
  %s4433 = scalar_lea.vmem %s4, 641
  %v4434 = vld [vmem:[%s4433] ss:$8 sm:$0x3]
  %v4436 = vlaneseq
  %v4437 = vshrl.u32 %v4436, 7
  %v4438 = vsub.s32 0, %v4437
  %v4439 = vrot.slane %v4434, %v4438
  %v4441 = vmul.f32 %v4432, %v4439
  %vm4442 = vcmask 648192
  %v4443 = vsel %vm4442, %v4441, 0.0
  %4444 = vadd.xlane.f32.xlu0 %v4443
  %v4445 = vpop.xlane.xlu0 %4444
  %v4446 = vadd.f32 %v4445, %v4439
  %v4447 = vxor.u32 %v4446, 2147483648
  %v4448 = vmul.f32 %v4447, 1.442695
  %v4449 = vpow.pop %v4448
  %v4450 = vadd.f32 %v4449, 1.0
  %v4451 = vrcp.pop %v4450
  %v4452 = vmul.f32 1.0, %v4451
  %4454 = vrot.lane.b32.xlu0 %v4452, 48
  %v4455 = vpop.permute.xlu0 %4454
  %vm4457 = vcmask 1024
  %4458 = vst.msk [vmem:[%s5] sm:$0x3] %vm4457, %v4455
  // Predicated region
  $region22: #{forward.1} parent=0 // pred_check
    _
  $region23: #{forward.1} parent=0 // pred_check_branch
    %4460 = sbr.rel (0) target = $region25
  $region24: #{forward.1} parent=0 // pred_region
    _
  $region25: #{forward.1} parent=0 // pred_fallthru
    _
  // Predicated region
  $region26: #{forward.1} parent=0 // pred_check
    _
  $region27: #{forward.1} parent=0 // pred_check_branch
    %4462 = sbr.rel (0) target = $region29
  $region28: #{forward.1} parent=0 // pred_region
    _
  $region29: #{forward.1} parent=0 // pred_fallthru
    _

</llo_original>
